<compile_context>
chip_gen: v6e
topology: v6e:2x2x1
jax: 0.10.0
libtpu: 0.0.40
codegen_flags: <defaults>
</compile_context>

<pallas_src>
import functools

import jax
import jax.numpy as jnp
from jax import lax
from jax.experimental import pallas as pl
from jax.experimental.pallas import tpu as pltpu

_LANE = 128


def _round_up(x, m):
    return (x + m - 1) // m * m


def _lstm_clf_kernel(xw_ref, mask_ref, whh_ref, wclf_ref, bclf_ref, out_ref,
                     h_sc, c_sc):
    """LSTM recurrence + classifier for one batch tile.

    xw_ref:   (T, TB, 4*Hp) f32   hoisted x_t @ W_ih^T + b (gate-lane-padded)
    mask_ref: (T, TB, 1)    f32   1.0 where t < lengths[b], else 0.0
    whh_ref:  (Hp, 4*Hp)    bf16  recurrent weights (gate-lane-padded)
    wclf_ref: (Hp, Cp)      bf16  classifier weights (padded)
    bclf_ref: (1, Cp)       f32
    out_ref:  (TB, Cp)      f32
    h_sc/c_sc:(TB, Hp)      f32 scratch
    """
    T = xw_ref.shape[0]
    Hp = whh_ref.shape[0]

    h_sc[...] = jnp.zeros_like(h_sc)
    c_sc[...] = jnp.zeros_like(c_sc)

    def step(t, carry):
        # Only the recurrent projection lives on the serial critical path.
        gates = xw_ref[t] + jnp.dot(h_sc[...].astype(jnp.bfloat16),
                                    whh_ref[...],
                                    preferred_element_type=jnp.float32)
        # Each gate spans a full Hp(=128)-lane block -> aligned vreg slices.
        i_g = jax.nn.sigmoid(gates[:, 0 * Hp:1 * Hp])
        f_g = jax.nn.sigmoid(gates[:, 1 * Hp:2 * Hp])
        g_g = jnp.tanh(gates[:, 2 * Hp:3 * Hp])
        o_g = jax.nn.sigmoid(gates[:, 3 * Hp:4 * Hp])

        c_cand = f_g * c_sc[...] + i_g * g_g
        h_cand = o_g * jnp.tanh(c_cand)

        # Freeze the state for t >= lengths[b]; after the loop h holds the
        # output at the last valid timestep (what Net.forward classifies).
        m = mask_ref[t]                                    # (TB, 1) f32
        c_sc[...] = m * c_cand + (1.0 - m) * c_sc[...]
        h_sc[...] = m * h_cand + (1.0 - m) * h_sc[...]
        return carry

    lax.fori_loop(0, T, step, 0, unroll=True)

    out_ref[...] = (jnp.dot(h_sc[...].astype(jnp.bfloat16), wclf_ref[...],
                            preferred_element_type=jnp.float32)
                    + bclf_ref[...])


@jax.jit
def net_forward(x_btd, lengths, params):
    """x_btd: (B, T, D) f32 batch-first (like PyTorch); lengths: (B,) int."""
    w_ih, w_hh, b_ih, b_hh, w_clf, b_clf = params   # unpadded PyTorch layout
    B, T, D = x_btd.shape
    H = w_hh.shape[1]
    C = w_clf.shape[0]
    Hp = _round_up(H, _LANE)          # per-gate lane span (128 for H=32)
    Cp = _round_up(C, _LANE)          # lane-dense classifier output

    # ---- weight layout: transpose + pad each gate to a full Hp-lane span ---
    def pad_gate_cols(w_t):           # (K, 4H) -> (K, 4Hp)
        k = w_t.shape[0]
        out = jnp.zeros((k, 4 * Hp), jnp.float32)
        for g in range(4):
            out = out.at[:, g * Hp:g * Hp + H].set(w_t[:, g * H:(g + 1) * H])
        return out

    wih_p = pad_gate_cols(w_ih.T)                               # (D, 4Hp)
    whh_p = jnp.zeros((Hp, 4 * Hp), jnp.float32)
    whh_p = whh_p.at[:H, :].set(pad_gate_cols(w_hh.T))          # (Hp, 4Hp)
    b_p = pad_gate_cols((b_ih + b_hh).reshape(1, -1))           # (1, 4Hp)
    wclf_p = jnp.zeros((Hp, Cp), jnp.float32).at[:H, :C].set(w_clf.T)
    bclf_p = jnp.zeros((1, Cp), jnp.float32).at[:, :C].set(b_clf)

    # ---- hoisted input projection: one bf16 MXU matmul, f32 accumulate -----
    x_flat = jnp.transpose(x_btd, (1, 0, 2)).reshape(T * B, D)   # time-major
    xw = jnp.dot(x_flat.astype(jnp.bfloat16), wih_p.astype(jnp.bfloat16),
                 preferred_element_type=jnp.float32) + b_p
    xw = xw.reshape(T, B, 4 * Hp)

    # ---- validity mask replaces per-step length compares in the kernel -----
    t_idx = jnp.arange(T, dtype=jnp.int32).reshape(T, 1)
    mask = (t_idx < lengths.astype(jnp.int32).reshape(1, B)).astype(jnp.float32)
    mask = mask.reshape(T, B, 1)

    # ---- batch tiling (trivial grid at B=2, scales to real batches) --------
    block_b = B if B <= 256 else 256
    grid = (pl.cdiv(B, block_b),)

    out_padded = pl.pallas_call(
        _lstm_clf_kernel,
        out_shape=jax.ShapeDtypeStruct((B, Cp), jnp.float32),
        grid_spec=pltpu.PrefetchScalarGridSpec(
            num_scalar_prefetch=0,
            grid=grid,
            in_specs=[
                pl.BlockSpec((T, block_b, 4 * Hp), lambda i: (0, i, 0)),  # xw
                pl.BlockSpec((T, block_b, 1), lambda i: (0, i, 0)),       # mask
                pl.BlockSpec((Hp, 4 * Hp), lambda i: (0, 0)),             # W_hh^T
                pl.BlockSpec((Hp, Cp), lambda i: (0, 0)),                 # W_clf^T
                pl.BlockSpec((1, Cp), lambda i: (0, 0)),                  # b_clf
            ],
            out_specs=pl.BlockSpec((block_b, Cp), lambda i: (i, 0)),
            scratch_shapes=[
                pltpu.VMEM((block_b, Hp), jnp.float32),   # h
                pltpu.VMEM((block_b, Hp), jnp.float32),   # c
            ],
        ),
        compiler_params=pltpu.CompilerParams(
            dimension_semantics=("parallel",)),
    )(xw, mask,
      whh_p.astype(jnp.bfloat16),
      wclf_p.astype(jnp.bfloat16),
      bclf_p)

    return out_padded[:, :C]


def init_params(key, input_size, hidden_size, num_classes):
    """PyTorch-style uniform init; gate order i, f, g, o (nn.LSTM layout)."""
    k = jax.random.split(key, 6)
    bound = 1.0 / jnp.sqrt(hidden_size)
    w_ih = jax.random.uniform(k[0], (4 * hidden_size, input_size),
                              jnp.float32, -bound, bound)
    w_hh = jax.random.uniform(k[1], (4 * hidden_size, hidden_size),
                              jnp.float32, -bound, bound)
    b_ih = jax.random.uniform(k[2], (4 * hidden_size,), jnp.float32, -bound, bound)
    b_hh = jax.random.uniform(k[3], (4 * hidden_size,), jnp.float32, -bound, bound)
    w_clf = jax.random.uniform(k[4], (num_classes, hidden_size),
                               jnp.float32, -bound, bound)
    b_clf = jax.random.uniform(k[5], (num_classes,), jnp.float32, -bound, bound)
    return (w_ih, w_hh, b_ih, b_hh, w_clf, b_clf)


def _reference_forward(x_btd, lengths, params):
    """Pure-JAX f32 reference of the same LSTM + linear."""
    w_ih, w_hh, b_ih, b_hh, w_clf, b_clf = params
    B, T, D = x_btd.shape
    H = w_hh.shape[1]
    b = (b_ih + b_hh).reshape(1, -1)
    h = jnp.zeros((B, H), jnp.float32)
    c = jnp.zeros((B, H), jnp.float32)
    last = jnp.zeros((B, H), jnp.float32)
    for t in range(T):
        g = x_btd[:, t, :] @ w_ih.T + h @ w_hh.T + b
        i_g = jax.nn.sigmoid(g[:, 0 * H:1 * H])
        f_g = jax.nn.sigmoid(g[:, 1 * H:2 * H])
        g_g = jnp.tanh(g[:, 2 * H:3 * H])
        o_g = jax.nn.sigmoid(g[:, 3 * H:4 * H])
        c = f_g * c + i_g * g_g
        h = o_g * jnp.tanh(c)
        last = jnp.where((lengths == (t + 1)).reshape(B, 1), h, last)
    return last @ w_clf.T + b_clf.reshape(1, -1)


if __name__ == "__main__":
    # Small shapes consistent with the module: x is (batch, seq, input_size),
    # lengths is (batch,) of valid sequence lengths.
    B, T, D = 2, 8, 16
    H, C = 32, 10

    key = jax.random.PRNGKey(0)
    kx, kp = jax.random.split(key)
    x = jax.random.normal(kx, (B, T, D), jnp.float32)
    lengths = jnp.array([T, T - 3], dtype=jnp.int32)

    params = init_params(kp, D, H, C)

    out = net_forward(x, lengths, params)
    out = jax.block_until_ready(out)

    ref = _reference_forward(x, lengths, params)
    assert out.shape == (B, C)
    # bf16 MXU operands (f32 accumulation) -> small drift vs the f32 reference.
    assert jnp.allclose(out, ref, atol=2e-2, rtol=2e-2)

    print("KERNEL_OK")
</pallas_src>

<mosaic_0001>
module attributes {stable_mosaic.version = 11 : i64} {
  func.func @_lstm_clf_kernel(%arg0: i32, %arg1: memref<8x2x512xf32, #tpu.memory_space<vmem>>, %arg2: memref<8x2x1xf32, #tpu.memory_space<vmem>>, %arg3: memref<128x512xbf16, #tpu.memory_space<vmem>>, %arg4: memref<128x128xbf16, #tpu.memory_space<vmem>>, %arg5: memref<1x128xf32, #tpu.memory_space<vmem>>, %arg6: memref<2x128xf32, #tpu.memory_space<vmem>>, %arg7: memref<2x128xf32, #tpu.memory_space<vmem>>, %arg8: memref<2x128xf32, #tpu.memory_space<vmem>>) attributes {dimension_semantics = [#tpu.dimension_semantics<parallel>], iteration_bounds = array<i64: 1>, scalar_prefetch = 0 : i64, scratch_operands = 2 : i64, tpu.core_type = #tpu.core_type<tc>, window_params = [{transform_indices = @transform_0, window_bounds = array<i64: 8, 2, 512>}, {transform_indices = @transform_1, window_bounds = array<i64: 8, 2, 1>}, {pipeline_mode = #tpu.pipeline_mode<synchronous>, transform_indices = @transform_2, window_bounds = array<i64: 128, 512>}, {pipeline_mode = #tpu.pipeline_mode<synchronous>, transform_indices = @transform_3, window_bounds = array<i64: 128, 128>}, {pipeline_mode = #tpu.pipeline_mode<synchronous>, transform_indices = @transform_4, window_bounds = array<i64: 1, 128>}, {transform_indices = @transform_5, window_bounds = array<i64: 2, 128>}]} {
    %cst = arith.constant 0.000000e+00 : f32
    %0 = vector.broadcast %cst : f32 to vector<2x128xf32>
    %c0 = arith.constant 0 : index
    %c0_0 = arith.constant 0 : index
    %1 = vector.load %arg7[%c0, %c0_0] : memref<2x128xf32, #tpu.memory_space<vmem>>, vector<2x128xf32>
    tpu.vector_store %arg7[%c0, %c0_0], %0 {strides = array<i32>} : memref<2x128xf32, #tpu.memory_space<vmem>>, vector<2x128xf32>,
    %cst_1 = arith.constant 0.000000e+00 : f32
    %2 = vector.broadcast %cst_1 : f32 to vector<2x128xf32>
    %c0_2 = arith.constant 0 : index
    %c0_3 = arith.constant 0 : index
    %3 = vector.load %arg8[%c0_2, %c0_3] : memref<2x128xf32, #tpu.memory_space<vmem>>, vector<2x128xf32>
    tpu.vector_store %arg8[%c0_2, %c0_3], %2 {strides = array<i32>} : memref<2x128xf32, #tpu.memory_space<vmem>>, vector<2x128xf32>,
    %c0_i32 = arith.constant 0 : i32
    %4 = arith.index_cast %c0_i32 : i32 to index
    %c0_4 = arith.constant 0 : index
    %c0_5 = arith.constant 0 : index
    %5 = vector.load %arg1[%4, %c0_4, %c0_5] : memref<8x2x512xf32, #tpu.memory_space<vmem>>, vector<1x2x512xf32>
    %6 = vector.shape_cast %5 : vector<1x2x512xf32> to vector<2x512xf32>
    %c0_6 = arith.constant 0 : index
    %c0_7 = arith.constant 0 : index
    %7 = vector.load %arg7[%c0_6, %c0_7] : memref<2x128xf32, #tpu.memory_space<vmem>>, vector<2x128xf32>
    %8 = arith.truncf %7 : vector<2x128xf32> to vector<2x128xbf16>
    %c0_8 = arith.constant 0 : index
    %c0_9 = arith.constant 0 : index
    %9 = vector.load %arg3[%c0_8, %c0_9] : memref<128x512xbf16, #tpu.memory_space<vmem>>, vector<128x512xbf16>
    %cst_10 = arith.constant dense<0.000000e+00> : vector<2x512xf32>
    %10 = tpu.matmul %8, %9, %cst_10 {dimension_numbers = #tpu.dot_dimension_numbers<[1], [0], [0], [1], [0, 0, 1, 1], [], []>} : vector<2x128xbf16>, vector<128x512xbf16>, vector<2x512xf32> -> vector<2x512xf32>
    %11 = arith.addf %6, %10 : vector<2x512xf32>
    %12 = vector.extract_strided_slice %11 {offsets = [0, 0], sizes = [2, 128], strides = [1, 1]} : vector<2x512xf32> to vector<2x128xf32>
    %13 = arith.negf %12 : vector<2x128xf32>
    %14 = math.exp %13 : vector<2x128xf32>
    %cst_11 = arith.constant 1.000000e+00 : f32
    %15 = vector.broadcast %cst_11 : f32 to vector<2x128xf32>
    %16 = arith.addf %15, %14 : vector<2x128xf32>
    %17 = arith.divf %15, %16 : vector<2x128xf32>
    %18 = vector.extract_strided_slice %11 {offsets = [0, 128], sizes = [2, 128], strides = [1, 1]} : vector<2x512xf32> to vector<2x128xf32>
    %19 = arith.negf %18 : vector<2x128xf32>
    %20 = math.exp %19 : vector<2x128xf32>
    %cst_12 = arith.constant 1.000000e+00 : f32
    %21 = vector.broadcast %cst_12 : f32 to vector<2x128xf32>
    %22 = arith.addf %21, %20 : vector<2x128xf32>
    %23 = arith.divf %21, %22 : vector<2x128xf32>
    %24 = vector.extract_strided_slice %11 {offsets = [0, 256], sizes = [2, 128], strides = [1, 1]} : vector<2x512xf32> to vector<2x128xf32>
    %25 = math.tanh %24 : vector<2x128xf32>
    %26 = vector.extract_strided_slice %11 {offsets = [0, 384], sizes = [2, 128], strides = [1, 1]} : vector<2x512xf32> to vector<2x128xf32>
    %27 = arith.negf %26 : vector<2x128xf32>
    %28 = math.exp %27 : vector<2x128xf32>
    %cst_13 = arith.constant 1.000000e+00 : f32
    %29 = vector.broadcast %cst_13 : f32 to vector<2x128xf32>
    %30 = arith.addf %29, %28 : vector<2x128xf32>
    %31 = arith.divf %29, %30 : vector<2x128xf32>
    %c0_14 = arith.constant 0 : index
    %c0_15 = arith.constant 0 : index
    %32 = vector.load %arg8[%c0_14, %c0_15] : memref<2x128xf32, #tpu.memory_space<vmem>>, vector<2x128xf32>
    %33 = arith.mulf %23, %32 : vector<2x128xf32>
    %34 = arith.mulf %17, %25 : vector<2x128xf32>
    %35 = arith.addf %33, %34 : vector<2x128xf32>
    %36 = math.tanh %35 : vector<2x128xf32>
    %37 = arith.mulf %31, %36 : vector<2x128xf32>
    %38 = arith.index_cast %c0_i32 : i32 to index
    %c0_16 = arith.constant 0 : index
    %c0_17 = arith.constant 0 : index
    %39 = vector.load %arg2[%38, %c0_16, %c0_17] : memref<8x2x1xf32, #tpu.memory_space<vmem>>, vector<1x2x1xf32>
    %40 = vector.shape_cast %39 : vector<1x2x1xf32> to vector<2x1xf32>
    %41 = vector.broadcast %40 : vector<2x1xf32> to vector<2x128xf32>
    %42 = arith.mulf %41, %35 : vector<2x128xf32>
    %cst_18 = arith.constant 1.000000e+00 : f32
    %43 = vector.broadcast %cst_18 : f32 to vector<2x1xf32>
    %44 = arith.subf %43, %40 : vector<2x1xf32>
    %c0_19 = arith.constant 0 : index
    %c0_20 = arith.constant 0 : index
    %45 = vector.load %arg8[%c0_19, %c0_20] : memref<2x128xf32, #tpu.memory_space<vmem>>, vector<2x128xf32>
    %46 = vector.broadcast %44 : vector<2x1xf32> to vector<2x128xf32>
    %47 = arith.mulf %46, %45 : vector<2x128xf32>
    %48 = arith.addf %42, %47 : vector<2x128xf32>
    %c0_21 = arith.constant 0 : index
    %c0_22 = arith.constant 0 : index
    %49 = vector.load %arg8[%c0_21, %c0_22] : memref<2x128xf32, #tpu.memory_space<vmem>>, vector<2x128xf32>
    tpu.vector_store %arg8[%c0_21, %c0_22], %48 {strides = array<i32>} : memref<2x128xf32, #tpu.memory_space<vmem>>, vector<2x128xf32>,
    %50 = vector.broadcast %40 : vector<2x1xf32> to vector<2x128xf32>
    %51 = arith.mulf %50, %37 : vector<2x128xf32>
    %cst_23 = arith.constant 1.000000e+00 : f32
    %52 = vector.broadcast %cst_23 : f32 to vector<2x1xf32>
    %53 = arith.subf %52, %40 : vector<2x1xf32>
    %c0_24 = arith.constant 0 : index
    %c0_25 = arith.constant 0 : index
    %54 = vector.load %arg7[%c0_24, %c0_25] : memref<2x128xf32, #tpu.memory_space<vmem>>, vector<2x128xf32>
    %55 = vector.broadcast %53 : vector<2x1xf32> to vector<2x128xf32>
    %56 = arith.mulf %55, %54 : vector<2x128xf32>
    %57 = arith.addf %51, %56 : vector<2x128xf32>
    %c0_26 = arith.constant 0 : index
    %c0_27 = arith.constant 0 : index
    %58 = vector.load %arg7[%c0_26, %c0_27] : memref<2x128xf32, #tpu.memory_space<vmem>>, vector<2x128xf32>
    tpu.vector_store %arg7[%c0_26, %c0_27], %57 {strides = array<i32>} : memref<2x128xf32, #tpu.memory_space<vmem>>, vector<2x128xf32>,
    %c1_i32 = arith.constant 1 : i32
    %59 = arith.index_cast %c1_i32 : i32 to index
    %c0_28 = arith.constant 0 : index
    %c0_29 = arith.constant 0 : index
    %60 = vector.load %arg1[%59, %c0_28, %c0_29] : memref<8x2x512xf32, #tpu.memory_space<vmem>>, vector<1x2x512xf32>
    %61 = vector.shape_cast %60 : vector<1x2x512xf32> to vector<2x512xf32>
    %c0_30 = arith.constant 0 : index
    %c0_31 = arith.constant 0 : index
    %62 = vector.load %arg7[%c0_30, %c0_31] : memref<2x128xf32, #tpu.memory_space<vmem>>, vector<2x128xf32>
    %63 = arith.truncf %62 : vector<2x128xf32> to vector<2x128xbf16>
    %c0_32 = arith.constant 0 : index
    %c0_33 = arith.constant 0 : index
    %64 = vector.load %arg3[%c0_32, %c0_33] : memref<128x512xbf16, #tpu.memory_space<vmem>>, vector<128x512xbf16>
    %cst_34 = arith.constant dense<0.000000e+00> : vector<2x512xf32>
    %65 = tpu.matmul %63, %64, %cst_34 {dimension_numbers = #tpu.dot_dimension_numbers<[1], [0], [0], [1], [0, 0, 1, 1], [], []>} : vector<2x128xbf16>, vector<128x512xbf16>, vector<2x512xf32> -> vector<2x512xf32>
    %66 = arith.addf %61, %65 : vector<2x512xf32>
    %67 = vector.extract_strided_slice %66 {offsets = [0, 0], sizes = [2, 128], strides = [1, 1]} : vector<2x512xf32> to vector<2x128xf32>
    %68 = arith.negf %67 : vector<2x128xf32>
    %69 = math.exp %68 : vector<2x128xf32>
    %cst_35 = arith.constant 1.000000e+00 : f32
    %70 = vector.broadcast %cst_35 : f32 to vector<2x128xf32>
    %71 = arith.addf %70, %69 : vector<2x128xf32>
    %72 = arith.divf %70, %71 : vector<2x128xf32>
    %73 = vector.extract_strided_slice %66 {offsets = [0, 128], sizes = [2, 128], strides = [1, 1]} : vector<2x512xf32> to vector<2x128xf32>
    %74 = arith.negf %73 : vector<2x128xf32>
    %75 = math.exp %74 : vector<2x128xf32>
    %cst_36 = arith.constant 1.000000e+00 : f32
    %76 = vector.broadcast %cst_36 : f32 to vector<2x128xf32>
    %77 = arith.addf %76, %75 : vector<2x128xf32>
    %78 = arith.divf %76, %77 : vector<2x128xf32>
    %79 = vector.extract_strided_slice %66 {offsets = [0, 256], sizes = [2, 128], strides = [1, 1]} : vector<2x512xf32> to vector<2x128xf32>
    %80 = math.tanh %79 : vector<2x128xf32>
    %81 = vector.extract_strided_slice %66 {offsets = [0, 384], sizes = [2, 128], strides = [1, 1]} : vector<2x512xf32> to vector<2x128xf32>
    %82 = arith.negf %81 : vector<2x128xf32>
    %83 = math.exp %82 : vector<2x128xf32>
    %cst_37 = arith.constant 1.000000e+00 : f32
    %84 = vector.broadcast %cst_37 : f32 to vector<2x128xf32>
    %85 = arith.addf %84, %83 : vector<2x128xf32>
    %86 = arith.divf %84, %85 : vector<2x128xf32>
    %c0_38 = arith.constant 0 : index
    %c0_39 = arith.constant 0 : index
    %87 = vector.load %arg8[%c0_38, %c0_39] : memref<2x128xf32, #tpu.memory_space<vmem>>, vector<2x128xf32>
    %88 = arith.mulf %78, %87 : vector<2x128xf32>
    %89 = arith.mulf %72, %80 : vector<2x128xf32>
    %90 = arith.addf %88, %89 : vector<2x128xf32>
    %91 = math.tanh %90 : vector<2x128xf32>
    %92 = arith.mulf %86, %91 : vector<2x128xf32>
    %93 = arith.index_cast %c1_i32 : i32 to index
    %c0_40 = arith.constant 0 : index
    %c0_41 = arith.constant 0 : index
    %94 = vector.load %arg2[%93, %c0_40, %c0_41] : memref<8x2x1xf32, #tpu.memory_space<vmem>>, vector<1x2x1xf32>
    %95 = vector.shape_cast %94 : vector<1x2x1xf32> to vector<2x1xf32>
    %96 = vector.broadcast %95 : vector<2x1xf32> to vector<2x128xf32>
    %97 = arith.mulf %96, %90 : vector<2x128xf32>
    %cst_42 = arith.constant 1.000000e+00 : f32
    %98 = vector.broadcast %cst_42 : f32 to vector<2x1xf32>
    %99 = arith.subf %98, %95 : vector<2x1xf32>
    %c0_43 = arith.constant 0 : index
    %c0_44 = arith.constant 0 : index
    %100 = vector.load %arg8[%c0_43, %c0_44] : memref<2x128xf32, #tpu.memory_space<vmem>>, vector<2x128xf32>
    %101 = vector.broadcast %99 : vector<2x1xf32> to vector<2x128xf32>
    %102 = arith.mulf %101, %100 : vector<2x128xf32>
    %103 = arith.addf %97, %102 : vector<2x128xf32>
    %c0_45 = arith.constant 0 : index
    %c0_46 = arith.constant 0 : index
    %104 = vector.load %arg8[%c0_45, %c0_46] : memref<2x128xf32, #tpu.memory_space<vmem>>, vector<2x128xf32>
    tpu.vector_store %arg8[%c0_45, %c0_46], %103 {strides = array<i32>} : memref<2x128xf32, #tpu.memory_space<vmem>>, vector<2x128xf32>,
    %105 = vector.broadcast %95 : vector<2x1xf32> to vector<2x128xf32>
    %106 = arith.mulf %105, %92 : vector<2x128xf32>
    %cst_47 = arith.constant 1.000000e+00 : f32
    %107 = vector.broadcast %cst_47 : f32 to vector<2x1xf32>
    %108 = arith.subf %107, %95 : vector<2x1xf32>
    %c0_48 = arith.constant 0 : index
    %c0_49 = arith.constant 0 : index
    %109 = vector.load %arg7[%c0_48, %c0_49] : memref<2x128xf32, #tpu.memory_space<vmem>>, vector<2x128xf32>
    %110 = vector.broadcast %108 : vector<2x1xf32> to vector<2x128xf32>
    %111 = arith.mulf %110, %109 : vector<2x128xf32>
    %112 = arith.addf %106, %111 : vector<2x128xf32>
    %c0_50 = arith.constant 0 : index
    %c0_51 = arith.constant 0 : index
    %113 = vector.load %arg7[%c0_50, %c0_51] : memref<2x128xf32, #tpu.memory_space<vmem>>, vector<2x128xf32>
    tpu.vector_store %arg7[%c0_50, %c0_51], %112 {strides = array<i32>} : memref<2x128xf32, #tpu.memory_space<vmem>>, vector<2x128xf32>,
    %c2_i32 = arith.constant 2 : i32
    %114 = arith.index_cast %c2_i32 : i32 to index
    %c0_52 = arith.constant 0 : index
    %c0_53 = arith.constant 0 : index
    %115 = vector.load %arg1[%114, %c0_52, %c0_53] : memref<8x2x512xf32, #tpu.memory_space<vmem>>, vector<1x2x512xf32>
    %116 = vector.shape_cast %115 : vector<1x2x512xf32> to vector<2x512xf32>
    %c0_54 = arith.constant 0 : index
    %c0_55 = arith.constant 0 : index
    %117 = vector.load %arg7[%c0_54, %c0_55] : memref<2x128xf32, #tpu.memory_space<vmem>>, vector<2x128xf32>
    %118 = arith.truncf %117 : vector<2x128xf32> to vector<2x128xbf16>
    %c0_56 = arith.constant 0 : index
    %c0_57 = arith.constant 0 : index
    %119 = vector.load %arg3[%c0_56, %c0_57] : memref<128x512xbf16, #tpu.memory_space<vmem>>, vector<128x512xbf16>
    %cst_58 = arith.constant dense<0.000000e+00> : vector<2x512xf32>
    %120 = tpu.matmul %118, %119, %cst_58 {dimension_numbers = #tpu.dot_dimension_numbers<[1], [0], [0], [1], [0, 0, 1, 1], [], []>} : vector<2x128xbf16>, vector<128x512xbf16>, vector<2x512xf32> -> vector<2x512xf32>
    %121 = arith.addf %116, %120 : vector<2x512xf32>
    %122 = vector.extract_strided_slice %121 {offsets = [0, 0], sizes = [2, 128], strides = [1, 1]} : vector<2x512xf32> to vector<2x128xf32>
    %123 = arith.negf %122 : vector<2x128xf32>
    %124 = math.exp %123 : vector<2x128xf32>
    %cst_59 = arith.constant 1.000000e+00 : f32
    %125 = vector.broadcast %cst_59 : f32 to vector<2x128xf32>
    %126 = arith.addf %125, %124 : vector<2x128xf32>
    %127 = arith.divf %125, %126 : vector<2x128xf32>
    %128 = vector.extract_strided_slice %121 {offsets = [0, 128], sizes = [2, 128], strides = [1, 1]} : vector<2x512xf32> to vector<2x128xf32>
    %129 = arith.negf %128 : vector<2x128xf32>
    %130 = math.exp %129 : vector<2x128xf32>
    %cst_60 = arith.constant 1.000000e+00 : f32
    %131 = vector.broadcast %cst_60 : f32 to vector<2x128xf32>
    %132 = arith.addf %131, %130 : vector<2x128xf32>
    %133 = arith.divf %131, %132 : vector<2x128xf32>
    %134 = vector.extract_strided_slice %121 {offsets = [0, 256], sizes = [2, 128], strides = [1, 1]} : vector<2x512xf32> to vector<2x128xf32>
    %135 = math.tanh %134 : vector<2x128xf32>
    %136 = vector.extract_strided_slice %121 {offsets = [0, 384], sizes = [2, 128], strides = [1, 1]} : vector<2x512xf32> to vector<2x128xf32>
    %137 = arith.negf %136 : vector<2x128xf32>
    %138 = math.exp %137 : vector<2x128xf32>
    %cst_61 = arith.constant 1.000000e+00 : f32
    %139 = vector.broadcast %cst_61 : f32 to vector<2x128xf32>
    %140 = arith.addf %139, %138 : vector<2x128xf32>
    %141 = arith.divf %139, %140 : vector<2x128xf32>
    %c0_62 = arith.constant 0 : index
    %c0_63 = arith.constant 0 : index
    %142 = vector.load %arg8[%c0_62, %c0_63] : memref<2x128xf32, #tpu.memory_space<vmem>>, vector<2x128xf32>
    %143 = arith.mulf %133, %142 : vector<2x128xf32>
    %144 = arith.mulf %127, %135 : vector<2x128xf32>
    %145 = arith.addf %143, %144 : vector<2x128xf32>
    %146 = math.tanh %145 : vector<2x128xf32>
    %147 = arith.mulf %141, %146 : vector<2x128xf32>
    %148 = arith.index_cast %c2_i32 : i32 to index
    %c0_64 = arith.constant 0 : index
    %c0_65 = arith.constant 0 : index
    %149 = vector.load %arg2[%148, %c0_64, %c0_65] : memref<8x2x1xf32, #tpu.memory_space<vmem>>, vector<1x2x1xf32>
    %150 = vector.shape_cast %149 : vector<1x2x1xf32> to vector<2x1xf32>
    %151 = vector.broadcast %150 : vector<2x1xf32> to vector<2x128xf32>
    %152 = arith.mulf %151, %145 : vector<2x128xf32>
    %cst_66 = arith.constant 1.000000e+00 : f32
    %153 = vector.broadcast %cst_66 : f32 to vector<2x1xf32>
    %154 = arith.subf %153, %150 : vector<2x1xf32>
    %c0_67 = arith.constant 0 : index
    %c0_68 = arith.constant 0 : index
    %155 = vector.load %arg8[%c0_67, %c0_68] : memref<2x128xf32, #tpu.memory_space<vmem>>, vector<2x128xf32>
    %156 = vector.broadcast %154 : vector<2x1xf32> to vector<2x128xf32>
    %157 = arith.mulf %156, %155 : vector<2x128xf32>
    %158 = arith.addf %152, %157 : vector<2x128xf32>
    %c0_69 = arith.constant 0 : index
    %c0_70 = arith.constant 0 : index
    %159 = vector.load %arg8[%c0_69, %c0_70] : memref<2x128xf32, #tpu.memory_space<vmem>>, vector<2x128xf32>
    tpu.vector_store %arg8[%c0_69, %c0_70], %158 {strides = array<i32>} : memref<2x128xf32, #tpu.memory_space<vmem>>, vector<2x128xf32>,
    %160 = vector.broadcast %150 : vector<2x1xf32> to vector<2x128xf32>
    %161 = arith.mulf %160, %147 : vector<2x128xf32>
    %cst_71 = arith.constant 1.000000e+00 : f32
    %162 = vector.broadcast %cst_71 : f32 to vector<2x1xf32>
    %163 = arith.subf %162, %150 : vector<2x1xf32>
    %c0_72 = arith.constant 0 : index
    %c0_73 = arith.constant 0 : index
    %164 = vector.load %arg7[%c0_72, %c0_73] : memref<2x128xf32, #tpu.memory_space<vmem>>, vector<2x128xf32>
    %165 = vector.broadcast %163 : vector<2x1xf32> to vector<2x128xf32>
    %166 = arith.mulf %165, %164 : vector<2x128xf32>
    %167 = arith.addf %161, %166 : vector<2x128xf32>
    %c0_74 = arith.constant 0 : index
    %c0_75 = arith.constant 0 : index
    %168 = vector.load %arg7[%c0_74, %c0_75] : memref<2x128xf32, #tpu.memory_space<vmem>>, vector<2x128xf32>
    tpu.vector_store %arg7[%c0_74, %c0_75], %167 {strides = array<i32>} : memref<2x128xf32, #tpu.memory_space<vmem>>, vector<2x128xf32>,
    %c3_i32 = arith.constant 3 : i32
    %169 = arith.index_cast %c3_i32 : i32 to index
    %c0_76 = arith.constant 0 : index
    %c0_77 = arith.constant 0 : index
    %170 = vector.load %arg1[%169, %c0_76, %c0_77] : memref<8x2x512xf32, #tpu.memory_space<vmem>>, vector<1x2x512xf32>
    %171 = vector.shape_cast %170 : vector<1x2x512xf32> to vector<2x512xf32>
    %c0_78 = arith.constant 0 : index
    %c0_79 = arith.constant 0 : index
    %172 = vector.load %arg7[%c0_78, %c0_79] : memref<2x128xf32, #tpu.memory_space<vmem>>, vector<2x128xf32>
    %173 = arith.truncf %172 : vector<2x128xf32> to vector<2x128xbf16>
    %c0_80 = arith.constant 0 : index
    %c0_81 = arith.constant 0 : index
    %174 = vector.load %arg3[%c0_80, %c0_81] : memref<128x512xbf16, #tpu.memory_space<vmem>>, vector<128x512xbf16>
    %cst_82 = arith.constant dense<0.000000e+00> : vector<2x512xf32>
    %175 = tpu.matmul %173, %174, %cst_82 {dimension_numbers = #tpu.dot_dimension_numbers<[1], [0], [0], [1], [0, 0, 1, 1], [], []>} : vector<2x128xbf16>, vector<128x512xbf16>, vector<2x512xf32> -> vector<2x512xf32>
    %176 = arith.addf %171, %175 : vector<2x512xf32>
    %177 = vector.extract_strided_slice %176 {offsets = [0, 0], sizes = [2, 128], strides = [1, 1]} : vector<2x512xf32> to vector<2x128xf32>
    %178 = arith.negf %177 : vector<2x128xf32>
    %179 = math.exp %178 : vector<2x128xf32>
    %cst_83 = arith.constant 1.000000e+00 : f32
    %180 = vector.broadcast %cst_83 : f32 to vector<2x128xf32>
    %181 = arith.addf %180, %179 : vector<2x128xf32>
    %182 = arith.divf %180, %181 : vector<2x128xf32>
    %183 = vector.extract_strided_slice %176 {offsets = [0, 128], sizes = [2, 128], strides = [1, 1]} : vector<2x512xf32> to vector<2x128xf32>
    %184 = arith.negf %183 : vector<2x128xf32>
    %185 = math.exp %184 : vector<2x128xf32>
    %cst_84 = arith.constant 1.000000e+00 : f32
    %186 = vector.broadcast %cst_84 : f32 to vector<2x128xf32>
    %187 = arith.addf %186, %185 : vector<2x128xf32>
    %188 = arith.divf %186, %187 : vector<2x128xf32>
    %189 = vector.extract_strided_slice %176 {offsets = [0, 256], sizes = [2, 128], strides = [1, 1]} : vector<2x512xf32> to vector<2x128xf32>
    %190 = math.tanh %189 : vector<2x128xf32>
    %191 = vector.extract_strided_slice %176 {offsets = [0, 384], sizes = [2, 128], strides = [1, 1]} : vector<2x512xf32> to vector<2x128xf32>
    %192 = arith.negf %191 : vector<2x128xf32>
    %193 = math.exp %192 : vector<2x128xf32>
    %cst_85 = arith.constant 1.000000e+00 : f32
    %194 = vector.broadcast %cst_85 : f32 to vector<2x128xf32>
    %195 = arith.addf %194, %193 : vector<2x128xf32>
    %196 = arith.divf %194, %195 : vector<2x128xf32>
    %c0_86 = arith.constant 0 : index
    %c0_87 = arith.constant 0 : index
    %197 = vector.load %arg8[%c0_86, %c0_87] : memref<2x128xf32, #tpu.memory_space<vmem>>, vector<2x128xf32>
    %198 = arith.mulf %188, %197 : vector<2x128xf32>
    %199 = arith.mulf %182, %190 : vector<2x128xf32>
    %200 = arith.addf %198, %199 : vector<2x128xf32>
    %201 = math.tanh %200 : vector<2x128xf32>
    %202 = arith.mulf %196, %201 : vector<2x128xf32>
    %203 = arith.index_cast %c3_i32 : i32 to index
    %c0_88 = arith.constant 0 : index
    %c0_89 = arith.constant 0 : index
    %204 = vector.load %arg2[%203, %c0_88, %c0_89] : memref<8x2x1xf32, #tpu.memory_space<vmem>>, vector<1x2x1xf32>
    %205 = vector.shape_cast %204 : vector<1x2x1xf32> to vector<2x1xf32>
    %206 = vector.broadcast %205 : vector<2x1xf32> to vector<2x128xf32>
    %207 = arith.mulf %206, %200 : vector<2x128xf32>
    %cst_90 = arith.constant 1.000000e+00 : f32
    %208 = vector.broadcast %cst_90 : f32 to vector<2x1xf32>
    %209 = arith.subf %208, %205 : vector<2x1xf32>
    %c0_91 = arith.constant 0 : index
    %c0_92 = arith.constant 0 : index
    %210 = vector.load %arg8[%c0_91, %c0_92] : memref<2x128xf32, #tpu.memory_space<vmem>>, vector<2x128xf32>
    %211 = vector.broadcast %209 : vector<2x1xf32> to vector<2x128xf32>
    %212 = arith.mulf %211, %210 : vector<2x128xf32>
    %213 = arith.addf %207, %212 : vector<2x128xf32>
    %c0_93 = arith.constant 0 : index
    %c0_94 = arith.constant 0 : index
    %214 = vector.load %arg8[%c0_93, %c0_94] : memref<2x128xf32, #tpu.memory_space<vmem>>, vector<2x128xf32>
    tpu.vector_store %arg8[%c0_93, %c0_94], %213 {strides = array<i32>} : memref<2x128xf32, #tpu.memory_space<vmem>>, vector<2x128xf32>,
    %215 = vector.broadcast %205 : vector<2x1xf32> to vector<2x128xf32>
    %216 = arith.mulf %215, %202 : vector<2x128xf32>
    %cst_95 = arith.constant 1.000000e+00 : f32
    %217 = vector.broadcast %cst_95 : f32 to vector<2x1xf32>
    %218 = arith.subf %217, %205 : vector<2x1xf32>
    %c0_96 = arith.constant 0 : index
    %c0_97 = arith.constant 0 : index
    %219 = vector.load %arg7[%c0_96, %c0_97] : memref<2x128xf32, #tpu.memory_space<vmem>>, vector<2x128xf32>
    %220 = vector.broadcast %218 : vector<2x1xf32> to vector<2x128xf32>
    %221 = arith.mulf %220, %219 : vector<2x128xf32>
    %222 = arith.addf %216, %221 : vector<2x128xf32>
    %c0_98 = arith.constant 0 : index
    %c0_99 = arith.constant 0 : index
    %223 = vector.load %arg7[%c0_98, %c0_99] : memref<2x128xf32, #tpu.memory_space<vmem>>, vector<2x128xf32>
    tpu.vector_store %arg7[%c0_98, %c0_99], %222 {strides = array<i32>} : memref<2x128xf32, #tpu.memory_space<vmem>>, vector<2x128xf32>,
    %c4_i32 = arith.constant 4 : i32
    %224 = arith.index_cast %c4_i32 : i32 to index
    %c0_100 = arith.constant 0 : index
    %c0_101 = arith.constant 0 : index
    %225 = vector.load %arg1[%224, %c0_100, %c0_101] : memref<8x2x512xf32, #tpu.memory_space<vmem>>, vector<1x2x512xf32>
    %226 = vector.shape_cast %225 : vector<1x2x512xf32> to vector<2x512xf32>
    %c0_102 = arith.constant 0 : index
    %c0_103 = arith.constant 0 : index
    %227 = vector.load %arg7[%c0_102, %c0_103] : memref<2x128xf32, #tpu.memory_space<vmem>>, vector<2x128xf32>
    %228 = arith.truncf %227 : vector<2x128xf32> to vector<2x128xbf16>
    %c0_104 = arith.constant 0 : index
    %c0_105 = arith.constant 0 : index
    %229 = vector.load %arg3[%c0_104, %c0_105] : memref<128x512xbf16, #tpu.memory_space<vmem>>, vector<128x512xbf16>
    %cst_106 = arith.constant dense<0.000000e+00> : vector<2x512xf32>
    %230 = tpu.matmul %228, %229, %cst_106 {dimension_numbers = #tpu.dot_dimension_numbers<[1], [0], [0], [1], [0, 0, 1, 1], [], []>} : vector<2x128xbf16>, vector<128x512xbf16>, vector<2x512xf32> -> vector<2x512xf32>
    %231 = arith.addf %226, %230 : vector<2x512xf32>
    %232 = vector.extract_strided_slice %231 {offsets = [0, 0], sizes = [2, 128], strides = [1, 1]} : vector<2x512xf32> to vector<2x128xf32>
    %233 = arith.negf %232 : vector<2x128xf32>
    %234 = math.exp %233 : vector<2x128xf32>
    %cst_107 = arith.constant 1.000000e+00 : f32
    %235 = vector.broadcast %cst_107 : f32 to vector<2x128xf32>
    %236 = arith.addf %235, %234 : vector<2x128xf32>
    %237 = arith.divf %235, %236 : vector<2x128xf32>
    %238 = vector.extract_strided_slice %231 {offsets = [0, 128], sizes = [2, 128], strides = [1, 1]} : vector<2x512xf32> to vector<2x128xf32>
    %239 = arith.negf %238 : vector<2x128xf32>
    %240 = math.exp %239 : vector<2x128xf32>
    %cst_108 = arith.constant 1.000000e+00 : f32
    %241 = vector.broadcast %cst_108 : f32 to vector<2x128xf32>
    %242 = arith.addf %241, %240 : vector<2x128xf32>
    %243 = arith.divf %241, %242 : vector<2x128xf32>
    %244 = vector.extract_strided_slice %231 {offsets = [0, 256], sizes = [2, 128], strides = [1, 1]} : vector<2x512xf32> to vector<2x128xf32>
    %245 = math.tanh %244 : vector<2x128xf32>
    %246 = vector.extract_strided_slice %231 {offsets = [0, 384], sizes = [2, 128], strides = [1, 1]} : vector<2x512xf32> to vector<2x128xf32>
    %247 = arith.negf %246 : vector<2x128xf32>
    %248 = math.exp %247 : vector<2x128xf32>
    %cst_109 = arith.constant 1.000000e+00 : f32
    %249 = vector.broadcast %cst_109 : f32 to vector<2x128xf32>
    %250 = arith.addf %249, %248 : vector<2x128xf32>
    %251 = arith.divf %249, %250 : vector<2x128xf32>
    %c0_110 = arith.constant 0 : index
    %c0_111 = arith.constant 0 : index
    %252 = vector.load %arg8[%c0_110, %c0_111] : memref<2x128xf32, #tpu.memory_space<vmem>>, vector<2x128xf32>
    %253 = arith.mulf %243, %252 : vector<2x128xf32>
    %254 = arith.mulf %237, %245 : vector<2x128xf32>
    %255 = arith.addf %253, %254 : vector<2x128xf32>
    %256 = math.tanh %255 : vector<2x128xf32>
    %257 = arith.mulf %251, %256 : vector<2x128xf32>
    %258 = arith.index_cast %c4_i32 : i32 to index
    %c0_112 = arith.constant 0 : index
    %c0_113 = arith.constant 0 : index
    %259 = vector.load %arg2[%258, %c0_112, %c0_113] : memref<8x2x1xf32, #tpu.memory_space<vmem>>, vector<1x2x1xf32>
    %260 = vector.shape_cast %259 : vector<1x2x1xf32> to vector<2x1xf32>
    %261 = vector.broadcast %260 : vector<2x1xf32> to vector<2x128xf32>
    %262 = arith.mulf %261, %255 : vector<2x128xf32>
    %cst_114 = arith.constant 1.000000e+00 : f32
    %263 = vector.broadcast %cst_114 : f32 to vector<2x1xf32>
    %264 = arith.subf %263, %260 : vector<2x1xf32>
    %c0_115 = arith.constant 0 : index
    %c0_116 = arith.constant 0 : index
    %265 = vector.load %arg8[%c0_115, %c0_116] : memref<2x128xf32, #tpu.memory_space<vmem>>, vector<2x128xf32>
    %266 = vector.broadcast %264 : vector<2x1xf32> to vector<2x128xf32>
    %267 = arith.mulf %266, %265 : vector<2x128xf32>
    %268 = arith.addf %262, %267 : vector<2x128xf32>
    %c0_117 = arith.constant 0 : index
    %c0_118 = arith.constant 0 : index
    %269 = vector.load %arg8[%c0_117, %c0_118] : memref<2x128xf32, #tpu.memory_space<vmem>>, vector<2x128xf32>
    tpu.vector_store %arg8[%c0_117, %c0_118], %268 {strides = array<i32>} : memref<2x128xf32, #tpu.memory_space<vmem>>, vector<2x128xf32>,
    %270 = vector.broadcast %260 : vector<2x1xf32> to vector<2x128xf32>
    %271 = arith.mulf %270, %257 : vector<2x128xf32>
    %cst_119 = arith.constant 1.000000e+00 : f32
    %272 = vector.broadcast %cst_119 : f32 to vector<2x1xf32>
    %273 = arith.subf %272, %260 : vector<2x1xf32>
    %c0_120 = arith.constant 0 : index
    %c0_121 = arith.constant 0 : index
    %274 = vector.load %arg7[%c0_120, %c0_121] : memref<2x128xf32, #tpu.memory_space<vmem>>, vector<2x128xf32>
    %275 = vector.broadcast %273 : vector<2x1xf32> to vector<2x128xf32>
    %276 = arith.mulf %275, %274 : vector<2x128xf32>
    %277 = arith.addf %271, %276 : vector<2x128xf32>
    %c0_122 = arith.constant 0 : index
    %c0_123 = arith.constant 0 : index
    %278 = vector.load %arg7[%c0_122, %c0_123] : memref<2x128xf32, #tpu.memory_space<vmem>>, vector<2x128xf32>
    tpu.vector_store %arg7[%c0_122, %c0_123], %277 {strides = array<i32>} : memref<2x128xf32, #tpu.memory_space<vmem>>, vector<2x128xf32>,
    %c5_i32 = arith.constant 5 : i32
    %279 = arith.index_cast %c5_i32 : i32 to index
    %c0_124 = arith.constant 0 : index
    %c0_125 = arith.constant 0 : index
    %280 = vector.load %arg1[%279, %c0_124, %c0_125] : memref<8x2x512xf32, #tpu.memory_space<vmem>>, vector<1x2x512xf32>
    %281 = vector.shape_cast %280 : vector<1x2x512xf32> to vector<2x512xf32>
    %c0_126 = arith.constant 0 : index
    %c0_127 = arith.constant 0 : index
    %282 = vector.load %arg7[%c0_126, %c0_127] : memref<2x128xf32, #tpu.memory_space<vmem>>, vector<2x128xf32>
    %283 = arith.truncf %282 : vector<2x128xf32> to vector<2x128xbf16>
    %c0_128 = arith.constant 0 : index
    %c0_129 = arith.constant 0 : index
    %284 = vector.load %arg3[%c0_128, %c0_129] : memref<128x512xbf16, #tpu.memory_space<vmem>>, vector<128x512xbf16>
    %cst_130 = arith.constant dense<0.000000e+00> : vector<2x512xf32>
    %285 = tpu.matmul %283, %284, %cst_130 {dimension_numbers = #tpu.dot_dimension_numbers<[1], [0], [0], [1], [0, 0, 1, 1], [], []>} : vector<2x128xbf16>, vector<128x512xbf16>, vector<2x512xf32> -> vector<2x512xf32>
    %286 = arith.addf %281, %285 : vector<2x512xf32>
    %287 = vector.extract_strided_slice %286 {offsets = [0, 0], sizes = [2, 128], strides = [1, 1]} : vector<2x512xf32> to vector<2x128xf32>
    %288 = arith.negf %287 : vector<2x128xf32>
    %289 = math.exp %288 : vector<2x128xf32>
    %cst_131 = arith.constant 1.000000e+00 : f32
    %290 = vector.broadcast %cst_131 : f32 to vector<2x128xf32>
    %291 = arith.addf %290, %289 : vector<2x128xf32>
    %292 = arith.divf %290, %291 : vector<2x128xf32>
    %293 = vector.extract_strided_slice %286 {offsets = [0, 128], sizes = [2, 128], strides = [1, 1]} : vector<2x512xf32> to vector<2x128xf32>
    %294 = arith.negf %293 : vector<2x128xf32>
    %295 = math.exp %294 : vector<2x128xf32>
    %cst_132 = arith.constant 1.000000e+00 : f32
    %296 = vector.broadcast %cst_132 : f32 to vector<2x128xf32>
    %297 = arith.addf %296, %295 : vector<2x128xf32>
    %298 = arith.divf %296, %297 : vector<2x128xf32>
    %299 = vector.extract_strided_slice %286 {offsets = [0, 256], sizes = [2, 128], strides = [1, 1]} : vector<2x512xf32> to vector<2x128xf32>
    %300 = math.tanh %299 : vector<2x128xf32>
    %301 = vector.extract_strided_slice %286 {offsets = [0, 384], sizes = [2, 128], strides = [1, 1]} : vector<2x512xf32> to vector<2x128xf32>
    %302 = arith.negf %301 : vector<2x128xf32>
    %303 = math.exp %302 : vector<2x128xf32>
    %cst_133 = arith.constant 1.000000e+00 : f32
    %304 = vector.broadcast %cst_133 : f32 to vector<2x128xf32>
    %305 = arith.addf %304, %303 : vector<2x128xf32>
    %306 = arith.divf %304, %305 : vector<2x128xf32>
    %c0_134 = arith.constant 0 : index
    %c0_135 = arith.constant 0 : index
    %307 = vector.load %arg8[%c0_134, %c0_135] : memref<2x128xf32, #tpu.memory_space<vmem>>, vector<2x128xf32>
    %308 = arith.mulf %298, %307 : vector<2x128xf32>
    %309 = arith.mulf %292, %300 : vector<2x128xf32>
    %310 = arith.addf %308, %309 : vector<2x128xf32>
    %311 = math.tanh %310 : vector<2x128xf32>
    %312 = arith.mulf %306, %311 : vector<2x128xf32>
    %313 = arith.index_cast %c5_i32 : i32 to index
    %c0_136 = arith.constant 0 : index
    %c0_137 = arith.constant 0 : index
    %314 = vector.load %arg2[%313, %c0_136, %c0_137] : memref<8x2x1xf32, #tpu.memory_space<vmem>>, vector<1x2x1xf32>
    %315 = vector.shape_cast %314 : vector<1x2x1xf32> to vector<2x1xf32>
    %316 = vector.broadcast %315 : vector<2x1xf32> to vector<2x128xf32>
    %317 = arith.mulf %316, %310 : vector<2x128xf32>
    %cst_138 = arith.constant 1.000000e+00 : f32
    %318 = vector.broadcast %cst_138 : f32 to vector<2x1xf32>
    %319 = arith.subf %318, %315 : vector<2x1xf32>
    %c0_139 = arith.constant 0 : index
    %c0_140 = arith.constant 0 : index
    %320 = vector.load %arg8[%c0_139, %c0_140] : memref<2x128xf32, #tpu.memory_space<vmem>>, vector<2x128xf32>
    %321 = vector.broadcast %319 : vector<2x1xf32> to vector<2x128xf32>
    %322 = arith.mulf %321, %320 : vector<2x128xf32>
    %323 = arith.addf %317, %322 : vector<2x128xf32>
    %c0_141 = arith.constant 0 : index
    %c0_142 = arith.constant 0 : index
    %324 = vector.load %arg8[%c0_141, %c0_142] : memref<2x128xf32, #tpu.memory_space<vmem>>, vector<2x128xf32>
    tpu.vector_store %arg8[%c0_141, %c0_142], %323 {strides = array<i32>} : memref<2x128xf32, #tpu.memory_space<vmem>>, vector<2x128xf32>,
    %325 = vector.broadcast %315 : vector<2x1xf32> to vector<2x128xf32>
    %326 = arith.mulf %325, %312 : vector<2x128xf32>
    %cst_143 = arith.constant 1.000000e+00 : f32
    %327 = vector.broadcast %cst_143 : f32 to vector<2x1xf32>
    %328 = arith.subf %327, %315 : vector<2x1xf32>
    %c0_144 = arith.constant 0 : index
    %c0_145 = arith.constant 0 : index
    %329 = vector.load %arg7[%c0_144, %c0_145] : memref<2x128xf32, #tpu.memory_space<vmem>>, vector<2x128xf32>
    %330 = vector.broadcast %328 : vector<2x1xf32> to vector<2x128xf32>
    %331 = arith.mulf %330, %329 : vector<2x128xf32>
    %332 = arith.addf %326, %331 : vector<2x128xf32>
    %c0_146 = arith.constant 0 : index
    %c0_147 = arith.constant 0 : index
    %333 = vector.load %arg7[%c0_146, %c0_147] : memref<2x128xf32, #tpu.memory_space<vmem>>, vector<2x128xf32>
    tpu.vector_store %arg7[%c0_146, %c0_147], %332 {strides = array<i32>} : memref<2x128xf32, #tpu.memory_space<vmem>>, vector<2x128xf32>,
    %c6_i32 = arith.constant 6 : i32
    %334 = arith.index_cast %c6_i32 : i32 to index
    %c0_148 = arith.constant 0 : index
    %c0_149 = arith.constant 0 : index
    %335 = vector.load %arg1[%334, %c0_148, %c0_149] : memref<8x2x512xf32, #tpu.memory_space<vmem>>, vector<1x2x512xf32>
    %336 = vector.shape_cast %335 : vector<1x2x512xf32> to vector<2x512xf32>
    %c0_150 = arith.constant 0 : index
    %c0_151 = arith.constant 0 : index
    %337 = vector.load %arg7[%c0_150, %c0_151] : memref<2x128xf32, #tpu.memory_space<vmem>>, vector<2x128xf32>
    %338 = arith.truncf %337 : vector<2x128xf32> to vector<2x128xbf16>
    %c0_152 = arith.constant 0 : index
    %c0_153 = arith.constant 0 : index
    %339 = vector.load %arg3[%c0_152, %c0_153] : memref<128x512xbf16, #tpu.memory_space<vmem>>, vector<128x512xbf16>
    %cst_154 = arith.constant dense<0.000000e+00> : vector<2x512xf32>
    %340 = tpu.matmul %338, %339, %cst_154 {dimension_numbers = #tpu.dot_dimension_numbers<[1], [0], [0], [1], [0, 0, 1, 1], [], []>} : vector<2x128xbf16>, vector<128x512xbf16>, vector<2x512xf32> -> vector<2x512xf32>
    %341 = arith.addf %336, %340 : vector<2x512xf32>
    %342 = vector.extract_strided_slice %341 {offsets = [0, 0], sizes = [2, 128], strides = [1, 1]} : vector<2x512xf32> to vector<2x128xf32>
    %343 = arith.negf %342 : vector<2x128xf32>
    %344 = math.exp %343 : vector<2x128xf32>
    %cst_155 = arith.constant 1.000000e+00 : f32
    %345 = vector.broadcast %cst_155 : f32 to vector<2x128xf32>
    %346 = arith.addf %345, %344 : vector<2x128xf32>
    %347 = arith.divf %345, %346 : vector<2x128xf32>
    %348 = vector.extract_strided_slice %341 {offsets = [0, 128], sizes = [2, 128], strides = [1, 1]} : vector<2x512xf32> to vector<2x128xf32>
    %349 = arith.negf %348 : vector<2x128xf32>
    %350 = math.exp %349 : vector<2x128xf32>
    %cst_156 = arith.constant 1.000000e+00 : f32
    %351 = vector.broadcast %cst_156 : f32 to vector<2x128xf32>
    %352 = arith.addf %351, %350 : vector<2x128xf32>
    %353 = arith.divf %351, %352 : vector<2x128xf32>
    %354 = vector.extract_strided_slice %341 {offsets = [0, 256], sizes = [2, 128], strides = [1, 1]} : vector<2x512xf32> to vector<2x128xf32>
    %355 = math.tanh %354 : vector<2x128xf32>
    %356 = vector.extract_strided_slice %341 {offsets = [0, 384], sizes = [2, 128], strides = [1, 1]} : vector<2x512xf32> to vector<2x128xf32>
    %357 = arith.negf %356 : vector<2x128xf32>
    %358 = math.exp %357 : vector<2x128xf32>
    %cst_157 = arith.constant 1.000000e+00 : f32
    %359 = vector.broadcast %cst_157 : f32 to vector<2x128xf32>
    %360 = arith.addf %359, %358 : vector<2x128xf32>
    %361 = arith.divf %359, %360 : vector<2x128xf32>
    %c0_158 = arith.constant 0 : index
    %c0_159 = arith.constant 0 : index
    %362 = vector.load %arg8[%c0_158, %c0_159] : memref<2x128xf32, #tpu.memory_space<vmem>>, vector<2x128xf32>
    %363 = arith.mulf %353, %362 : vector<2x128xf32>
    %364 = arith.mulf %347, %355 : vector<2x128xf32>
    %365 = arith.addf %363, %364 : vector<2x128xf32>
    %366 = math.tanh %365 : vector<2x128xf32>
    %367 = arith.mulf %361, %366 : vector<2x128xf32>
    %368 = arith.index_cast %c6_i32 : i32 to index
    %c0_160 = arith.constant 0 : index
    %c0_161 = arith.constant 0 : index
    %369 = vector.load %arg2[%368, %c0_160, %c0_161] : memref<8x2x1xf32, #tpu.memory_space<vmem>>, vector<1x2x1xf32>
    %370 = vector.shape_cast %369 : vector<1x2x1xf32> to vector<2x1xf32>
    %371 = vector.broadcast %370 : vector<2x1xf32> to vector<2x128xf32>
    %372 = arith.mulf %371, %365 : vector<2x128xf32>
    %cst_162 = arith.constant 1.000000e+00 : f32
    %373 = vector.broadcast %cst_162 : f32 to vector<2x1xf32>
    %374 = arith.subf %373, %370 : vector<2x1xf32>
    %c0_163 = arith.constant 0 : index
    %c0_164 = arith.constant 0 : index
    %375 = vector.load %arg8[%c0_163, %c0_164] : memref<2x128xf32, #tpu.memory_space<vmem>>, vector<2x128xf32>
    %376 = vector.broadcast %374 : vector<2x1xf32> to vector<2x128xf32>
    %377 = arith.mulf %376, %375 : vector<2x128xf32>
    %378 = arith.addf %372, %377 : vector<2x128xf32>
    %c0_165 = arith.constant 0 : index
    %c0_166 = arith.constant 0 : index
    %379 = vector.load %arg8[%c0_165, %c0_166] : memref<2x128xf32, #tpu.memory_space<vmem>>, vector<2x128xf32>
    tpu.vector_store %arg8[%c0_165, %c0_166], %378 {strides = array<i32>} : memref<2x128xf32, #tpu.memory_space<vmem>>, vector<2x128xf32>,
    %380 = vector.broadcast %370 : vector<2x1xf32> to vector<2x128xf32>
    %381 = arith.mulf %380, %367 : vector<2x128xf32>
    %cst_167 = arith.constant 1.000000e+00 : f32
    %382 = vector.broadcast %cst_167 : f32 to vector<2x1xf32>
    %383 = arith.subf %382, %370 : vector<2x1xf32>
    %c0_168 = arith.constant 0 : index
    %c0_169 = arith.constant 0 : index
    %384 = vector.load %arg7[%c0_168, %c0_169] : memref<2x128xf32, #tpu.memory_space<vmem>>, vector<2x128xf32>
    %385 = vector.broadcast %383 : vector<2x1xf32> to vector<2x128xf32>
    %386 = arith.mulf %385, %384 : vector<2x128xf32>
    %387 = arith.addf %381, %386 : vector<2x128xf32>
    %c0_170 = arith.constant 0 : index
    %c0_171 = arith.constant 0 : index
    %388 = vector.load %arg7[%c0_170, %c0_171] : memref<2x128xf32, #tpu.memory_space<vmem>>, vector<2x128xf32>
    tpu.vector_store %arg7[%c0_170, %c0_171], %387 {strides = array<i32>} : memref<2x128xf32, #tpu.memory_space<vmem>>, vector<2x128xf32>,
    %c7_i32 = arith.constant 7 : i32
    %389 = arith.index_cast %c7_i32 : i32 to index
    %c0_172 = arith.constant 0 : index
    %c0_173 = arith.constant 0 : index
    %390 = vector.load %arg1[%389, %c0_172, %c0_173] : memref<8x2x512xf32, #tpu.memory_space<vmem>>, vector<1x2x512xf32>
    %391 = vector.shape_cast %390 : vector<1x2x512xf32> to vector<2x512xf32>
    %c0_174 = arith.constant 0 : index
    %c0_175 = arith.constant 0 : index
    %392 = vector.load %arg7[%c0_174, %c0_175] : memref<2x128xf32, #tpu.memory_space<vmem>>, vector<2x128xf32>
    %393 = arith.truncf %392 : vector<2x128xf32> to vector<2x128xbf16>
    %c0_176 = arith.constant 0 : index
    %c0_177 = arith.constant 0 : index
    %394 = vector.load %arg3[%c0_176, %c0_177] : memref<128x512xbf16, #tpu.memory_space<vmem>>, vector<128x512xbf16>
    %cst_178 = arith.constant dense<0.000000e+00> : vector<2x512xf32>
    %395 = tpu.matmul %393, %394, %cst_178 {dimension_numbers = #tpu.dot_dimension_numbers<[1], [0], [0], [1], [0, 0, 1, 1], [], []>} : vector<2x128xbf16>, vector<128x512xbf16>, vector<2x512xf32> -> vector<2x512xf32>
    %396 = arith.addf %391, %395 : vector<2x512xf32>
    %397 = vector.extract_strided_slice %396 {offsets = [0, 0], sizes = [2, 128], strides = [1, 1]} : vector<2x512xf32> to vector<2x128xf32>
    %398 = arith.negf %397 : vector<2x128xf32>
    %399 = math.exp %398 : vector<2x128xf32>
    %cst_179 = arith.constant 1.000000e+00 : f32
    %400 = vector.broadcast %cst_179 : f32 to vector<2x128xf32>
    %401 = arith.addf %400, %399 : vector<2x128xf32>
    %402 = arith.divf %400, %401 : vector<2x128xf32>
    %403 = vector.extract_strided_slice %396 {offsets = [0, 128], sizes = [2, 128], strides = [1, 1]} : vector<2x512xf32> to vector<2x128xf32>
    %404 = arith.negf %403 : vector<2x128xf32>
    %405 = math.exp %404 : vector<2x128xf32>
    %cst_180 = arith.constant 1.000000e+00 : f32
    %406 = vector.broadcast %cst_180 : f32 to vector<2x128xf32>
    %407 = arith.addf %406, %405 : vector<2x128xf32>
    %408 = arith.divf %406, %407 : vector<2x128xf32>
    %409 = vector.extract_strided_slice %396 {offsets = [0, 256], sizes = [2, 128], strides = [1, 1]} : vector<2x512xf32> to vector<2x128xf32>
    %410 = math.tanh %409 : vector<2x128xf32>
    %411 = vector.extract_strided_slice %396 {offsets = [0, 384], sizes = [2, 128], strides = [1, 1]} : vector<2x512xf32> to vector<2x128xf32>
    %412 = arith.negf %411 : vector<2x128xf32>
    %413 = math.exp %412 : vector<2x128xf32>
    %cst_181 = arith.constant 1.000000e+00 : f32
    %414 = vector.broadcast %cst_181 : f32 to vector<2x128xf32>
    %415 = arith.addf %414, %413 : vector<2x128xf32>
    %416 = arith.divf %414, %415 : vector<2x128xf32>
    %c0_182 = arith.constant 0 : index
    %c0_183 = arith.constant 0 : index
    %417 = vector.load %arg8[%c0_182, %c0_183] : memref<2x128xf32, #tpu.memory_space<vmem>>, vector<2x128xf32>
    %418 = arith.mulf %408, %417 : vector<2x128xf32>
    %419 = arith.mulf %402, %410 : vector<2x128xf32>
    %420 = arith.addf %418, %419 : vector<2x128xf32>
    %421 = math.tanh %420 : vector<2x128xf32>
    %422 = arith.mulf %416, %421 : vector<2x128xf32>
    %423 = arith.index_cast %c7_i32 : i32 to index
    %c0_184 = arith.constant 0 : index
    %c0_185 = arith.constant 0 : index
    %424 = vector.load %arg2[%423, %c0_184, %c0_185] : memref<8x2x1xf32, #tpu.memory_space<vmem>>, vector<1x2x1xf32>
    %425 = vector.shape_cast %424 : vector<1x2x1xf32> to vector<2x1xf32>
    %426 = vector.broadcast %425 : vector<2x1xf32> to vector<2x128xf32>
    %427 = arith.mulf %426, %420 : vector<2x128xf32>
    %cst_186 = arith.constant 1.000000e+00 : f32
    %428 = vector.broadcast %cst_186 : f32 to vector<2x1xf32>
    %429 = arith.subf %428, %425 : vector<2x1xf32>
    %c0_187 = arith.constant 0 : index
    %c0_188 = arith.constant 0 : index
    %430 = vector.load %arg8[%c0_187, %c0_188] : memref<2x128xf32, #tpu.memory_space<vmem>>, vector<2x128xf32>
    %431 = vector.broadcast %429 : vector<2x1xf32> to vector<2x128xf32>
    %432 = arith.mulf %431, %430 : vector<2x128xf32>
    %433 = arith.addf %427, %432 : vector<2x128xf32>
    %c0_189 = arith.constant 0 : index
    %c0_190 = arith.constant 0 : index
    %434 = vector.load %arg8[%c0_189, %c0_190] : memref<2x128xf32, #tpu.memory_space<vmem>>, vector<2x128xf32>
    tpu.vector_store %arg8[%c0_189, %c0_190], %433 {strides = array<i32>} : memref<2x128xf32, #tpu.memory_space<vmem>>, vector<2x128xf32>,
    %435 = vector.broadcast %425 : vector<2x1xf32> to vector<2x128xf32>
    %436 = arith.mulf %435, %422 : vector<2x128xf32>
    %cst_191 = arith.constant 1.000000e+00 : f32
    %437 = vector.broadcast %cst_191 : f32 to vector<2x1xf32>
    %438 = arith.subf %437, %425 : vector<2x1xf32>
    %c0_192 = arith.constant 0 : index
    %c0_193 = arith.constant 0 : index
    %439 = vector.load %arg7[%c0_192, %c0_193] : memref<2x128xf32, #tpu.memory_space<vmem>>, vector<2x128xf32>
    %440 = vector.broadcast %438 : vector<2x1xf32> to vector<2x128xf32>
    %441 = arith.mulf %440, %439 : vector<2x128xf32>
    %442 = arith.addf %436, %441 : vector<2x128xf32>
    %c0_194 = arith.constant 0 : index
    %c0_195 = arith.constant 0 : index
    %443 = vector.load %arg7[%c0_194, %c0_195] : memref<2x128xf32, #tpu.memory_space<vmem>>, vector<2x128xf32>
    tpu.vector_store %arg7[%c0_194, %c0_195], %442 {strides = array<i32>} : memref<2x128xf32, #tpu.memory_space<vmem>>, vector<2x128xf32>,
    %c8_i32 = arith.constant 8 : i32
    %c0_196 = arith.constant 0 : index
    %c0_197 = arith.constant 0 : index
    %444 = vector.load %arg7[%c0_196, %c0_197] : memref<2x128xf32, #tpu.memory_space<vmem>>, vector<2x128xf32>
    %445 = arith.truncf %444 : vector<2x128xf32> to vector<2x128xbf16>
    %c0_198 = arith.constant 0 : index
    %c0_199 = arith.constant 0 : index
    %446 = vector.load %arg4[%c0_198, %c0_199] : memref<128x128xbf16, #tpu.memory_space<vmem>>, vector<128x128xbf16>
    %cst_200 = arith.constant dense<0.000000e+00> : vector<2x128xf32>
    %447 = tpu.matmul %445, %446, %cst_200 {dimension_numbers = #tpu.dot_dimension_numbers<[1], [0], [0], [1], [0, 0, 1, 1], [], []>} : vector<2x128xbf16>, vector<128x128xbf16>, vector<2x128xf32> -> vector<2x128xf32>
    %c0_201 = arith.constant 0 : index
    %c0_202 = arith.constant 0 : index
    %448 = vector.load %arg5[%c0_201, %c0_202] : memref<1x128xf32, #tpu.memory_space<vmem>>, vector<1x128xf32>
    %449 = vector.broadcast %448 : vector<1x128xf32> to vector<2x128xf32>
    %450 = arith.addf %447, %449 : vector<2x128xf32>
    %c0_203 = arith.constant 0 : index
    %c0_204 = arith.constant 0 : index
    %451 = vector.load %arg6[%c0_203, %c0_204] : memref<2x128xf32, #tpu.memory_space<vmem>>, vector<2x128xf32>
    tpu.vector_store %arg6[%c0_203, %c0_204], %450 {strides = array<i32>} : memref<2x128xf32, #tpu.memory_space<vmem>>, vector<2x128xf32>,
    return
  }
  func.func @transform_0(%arg0: i32) -> (i32, i32, i32) {
    %c0_i32 = arith.constant 0 : i32
    %c0_i32_0 = arith.constant 0 : i32
    %c0_i32_1 = arith.constant 0 : i32
    return %c0_i32, %arg0, %c0_i32_0 : i32, i32, i32
  }
  func.func @transform_1(%arg0: i32) -> (i32, i32, i32) {
    %c0_i32 = arith.constant 0 : i32
    %c0_i32_0 = arith.constant 0 : i32
    %c0_i32_1 = arith.constant 0 : i32
    return %c0_i32, %arg0, %c0_i32_0 : i32, i32, i32
  }
  func.func @transform_2(%arg0: i32) -> (i32, i32) {
    %c0_i32 = arith.constant 0 : i32
    %c0_i32_0 = arith.constant 0 : i32
    %c0_i32_1 = arith.constant 0 : i32
    return %c0_i32, %c0_i32_0 : i32, i32
  }
  func.func @transform_3(%arg0: i32) -> (i32, i32) {
    %c0_i32 = arith.constant 0 : i32
    %c0_i32_0 = arith.constant 0 : i32
    %c0_i32_1 = arith.constant 0 : i32
    return %c0_i32, %c0_i32_0 : i32, i32
  }
  func.func @transform_4(%arg0: i32) -> (i32, i32) {
    %c0_i32 = arith.constant 0 : i32
    %c0_i32_0 = arith.constant 0 : i32
    %c0_i32_1 = arith.constant 0 : i32
    return %c0_i32, %c0_i32_0 : i32, i32
  }
  func.func @transform_5(%arg0: i32) -> (i32, i32) {
    %c0_i32 = arith.constant 0 : i32
    %c0_i32_0 = arith.constant 0 : i32
    return %arg0, %c0_i32 : i32, i32
  }
}

</mosaic_0001>

<llo_original>
// kernel: net_forward.1
$region0: #{net_forward.1}
  #allocation0 [shape = 'u32[]', space=smem, size = 0x4, offset = 0x4, fixed_abs, tag = 'smem constant byte address 0x4 - core index']
  #allocation1 [shape = 'u32[144,128]{1,0:T(1,128)}', space=vmem, size = 0x12000, scoped, tag = 'internal scratch']
  #allocation2 [shape = 'f32[2,128]{1,0:T(2,128)}', space=vmem, size = 0x400, scoped, tag = 'scratch operand']
  #allocation3 [shape = 'f32[2,128]{1,0:T(2,128)}', space=vmem, size = 0x400, scoped, tag = 'scratch operand']
  %s0 = inlined_call_operand.vmem [shape: f32[8,2,512], index: 0, kind: input, shape index: {}]
  %s1 = inlined_call_operand.vmem [shape: f32[8,2,1], index: 1, kind: input, shape index: {}]
  %s2 = inlined_call_operand.vmem [shape: bf16[128,512], index: 2, kind: input, shape index: {}]
  %s3 = inlined_call_operand.vmem [shape: bf16[128,128], index: 3, kind: input, shape index: {}]
  %s4 = inlined_call_operand.vmem [shape: f32[1,128], index: 4, kind: input, shape index: {}]
  %s5 = inlined_call_operand.hbm [shape: f32[2,128], index: 5, kind: output, shape index: {}]
  %s6 = sld [smem:[#allocation0]]
  $region30: #{net_forward.1} parent=0
    _
  %s8 = ssub.s32 1, %s6
  %s9 = scalar_select 0, %s8, %s6
  $region1: #{net_forward.1} parent=0
    #allocation4 [shape = 'u8[1024]{0}', space=vmem, size = 0x400, scoped, tag = 'output window, operand 0, single buffered']
    #allocation5 [shape = 's32[1]{0}', space=sflag, size = 0x4, scoped, tag = 'scoped memory for net_forward.1']
    %10 = vsyncpa [#allocation5], 0
    // Predicated region
    $region2: #{net_forward.1} parent=1 // pred_check
      _
    $region3: #{net_forward.1} parent=1 // pred_check_branch
      %12 = sbr.rel (0) target = $region5
    $region4: #{net_forward.1} parent=1 // pred_region
      _
    $region5: #{net_forward.1} parent=1 // pred_fallthru
      _
    // Predicated region
    $region6: #{net_forward.1} parent=1 // pred_check
      _
    $region7: #{net_forward.1} parent=1 // pred_check_branch
      %14 = sbr.rel (0) target = $region9
    $region8: #{net_forward.1} parent=1 // pred_region
      _
    $region9: #{net_forward.1} parent=1 // pred_fallthru
      _
    // Predicated region
    $region10: #{net_forward.1} parent=1 // pred_check
      _
    $region11: #{net_forward.1} parent=1 // pred_check_branch
      %16 = sbr.rel (0) target = $region13
    $region12: #{net_forward.1} parent=1 // pred_region
      _
    $region13: #{net_forward.1} parent=1 // pred_fallthru
      _
    // Predicated region
    $region14: #{net_forward.1} parent=1 // pred_check
      _
    $region15: #{net_forward.1} parent=1 // pred_check_branch
      %18 = sbr.rel (0) target = $region17
    $region16: #{net_forward.1} parent=1 // pred_region
      _
    $region17: #{net_forward.1} parent=1 // pred_fallthru
      _
    // Predicated region
    $region18: #{net_forward.1} parent=1 // pred_check
      _
    $region19: #{net_forward.1} parent=1 // pred_check_branch
      %20 = sbr.rel (0) target = $region21
    $region20: #{net_forward.1} parent=1 // pred_region
      _
    $region21: #{net_forward.1} parent=1 // pred_fallthru
      _
    %22 = vst [vmem:[#allocation2] sm:$0x3] 0.0
    %23 = vst [vmem:[#allocation3] sm:$0x3] 0.0
    %v24 = vld [vmem:[%s0] sm:$0xff]
    %v25 = vld [vmem:[#allocation2] sm:$0x3]
    %v26 = vpack.c.bf16 %v25, %v25
    %v27 = vld [vmem:[%s2] sm:$0xff]
    %v28 = vld [vmem:[%s2 + $0x8] sm:$0xff]
    %v29 = vld [vmem:[%s2 + $0x10] sm:$0xff]
    %v30 = vld [vmem:[%s2 + $0x18] sm:$0xff]
    %v31 = vld [vmem:[%s2 + $0x20] sm:$0xff]
    %v32 = vld [vmem:[%s2 + $0x28] sm:$0xff]
    %v33 = vld [vmem:[%s2 + $0x30] sm:$0xff]
    %v34 = vld [vmem:[%s2 + $0x38] sm:$0xff]
    %v35 = vld [vmem:[%s2 + $0x40] sm:$0xff]
    %v36 = vld [vmem:[%s2 + $0x48] sm:$0xff]
    %v37 = vld [vmem:[%s2 + $0x50] sm:$0xff]
    %v38 = vld [vmem:[%s2 + $0x58] sm:$0xff]
    %v39 = vld [vmem:[%s2 + $0x60] sm:$0xff]
    %v40 = vld [vmem:[%s2 + $0x68] sm:$0xff]
    %v41 = vld [vmem:[%s2 + $0x70] sm:$0xff]
    %v42 = vld [vmem:[%s2 + $0x78] sm:$0xff]
    %v43 = vld [vmem:[%s2 + $0x80] sm:$0xff]
    %v44 = vld [vmem:[%s2 + $0x88] sm:$0xff]
    %v45 = vld [vmem:[%s2 + $0x90] sm:$0xff]
    %v46 = vld [vmem:[%s2 + $0x98] sm:$0xff]
    %v47 = vld [vmem:[%s2 + $0xa0] sm:$0xff]
    %v48 = vld [vmem:[%s2 + $0xa8] sm:$0xff]
    %v49 = vld [vmem:[%s2 + $0xb0] sm:$0xff]
    %v50 = vld [vmem:[%s2 + $0xb8] sm:$0xff]
    %v51 = vld [vmem:[%s2 + $0xc0] sm:$0xff]
    %v52 = vld [vmem:[%s2 + $0xc8] sm:$0xff]
    %v53 = vld [vmem:[%s2 + $0xd0] sm:$0xff]
    %v54 = vld [vmem:[%s2 + $0xd8] sm:$0xff]
    %v55 = vld [vmem:[%s2 + $0xe0] sm:$0xff]
    %v56 = vld [vmem:[%s2 + $0xe8] sm:$0xff]
    %v57 = vld [vmem:[%s2 + $0xf0] sm:$0xff]
    %v58 = vld [vmem:[%s2 + $0xf8] sm:$0xff]
    %v91 = vunpack.c.l.b16 %v27
    %v92 = vunpack.c.h.b16 %v27
    %v93 = vunpack.c.l.b16 %v28
    %v94 = vunpack.c.h.b16 %v28
    %v95 = vunpack.c.l.b16 %v29
    %v96 = vunpack.c.h.b16 %v29
    %v97 = vunpack.c.l.b16 %v30
    %v98 = vunpack.c.h.b16 %v30
    %v99 = vunpack.c.l.b16 %v31
    %v100 = vunpack.c.h.b16 %v31
    %v101 = vunpack.c.l.b16 %v32
    %v102 = vunpack.c.h.b16 %v32
    %v103 = vunpack.c.l.b16 %v33
    %v104 = vunpack.c.h.b16 %v33
    %v105 = vunpack.c.l.b16 %v34
    %v106 = vunpack.c.h.b16 %v34
    %v107 = vunpack.c.l.b16 %v35
    %v108 = vunpack.c.h.b16 %v35
    %v109 = vunpack.c.l.b16 %v36
    %v110 = vunpack.c.h.b16 %v36
    %v111 = vunpack.c.l.b16 %v37
    %v112 = vunpack.c.h.b16 %v37
    %v113 = vunpack.c.l.b16 %v38
    %v114 = vunpack.c.h.b16 %v38
    %v115 = vunpack.c.l.b16 %v39
    %v116 = vunpack.c.h.b16 %v39
    %v117 = vunpack.c.l.b16 %v40
    %v118 = vunpack.c.h.b16 %v40
    %v119 = vunpack.c.l.b16 %v41
    %v120 = vunpack.c.h.b16 %v41
    %v121 = vunpack.c.l.b16 %v42
    %v122 = vunpack.c.h.b16 %v42
    %v123 = vunpack.c.l.b16 %v43
    %v124 = vunpack.c.h.b16 %v43
    %v125 = vunpack.c.l.b16 %v44
    %v126 = vunpack.c.h.b16 %v44
    %v127 = vunpack.c.l.b16 %v45
    %v128 = vunpack.c.h.b16 %v45
    %v129 = vunpack.c.l.b16 %v46
    %v130 = vunpack.c.h.b16 %v46
    %v131 = vunpack.c.l.b16 %v47
    %v132 = vunpack.c.h.b16 %v47
    %v133 = vunpack.c.l.b16 %v48
    %v134 = vunpack.c.h.b16 %v48
    %v135 = vunpack.c.l.b16 %v49
    %v136 = vunpack.c.h.b16 %v49
    %v137 = vunpack.c.l.b16 %v50
    %v138 = vunpack.c.h.b16 %v50
    %v139 = vunpack.c.l.b16 %v51
    %v140 = vunpack.c.h.b16 %v51
    %v141 = vunpack.c.l.b16 %v52
    %v142 = vunpack.c.h.b16 %v52
    %v143 = vunpack.c.l.b16 %v53
    %v144 = vunpack.c.h.b16 %v53
    %v145 = vunpack.c.l.b16 %v54
    %v146 = vunpack.c.h.b16 %v54
    %v147 = vunpack.c.l.b16 %v55
    %v148 = vunpack.c.h.b16 %v55
    %v149 = vunpack.c.l.b16 %v56
    %v150 = vunpack.c.h.b16 %v56
    %v151 = vunpack.c.l.b16 %v57
    %v152 = vunpack.c.h.b16 %v57
    %v153 = vunpack.c.l.b16 %v58
    %v154 = vunpack.c.h.b16 %v58
    %v155 = vpack.c.b16 %v95, %v91
    %v156 = vpack.c.b16 %v96, %v92
    %v157 = vpack.c.b16 %v97, %v93
    %v158 = vpack.c.b16 %v98, %v94
    %v159 = vpack.c.b16 %v103, %v99
    %v160 = vpack.c.b16 %v104, %v100
    %v161 = vpack.c.b16 %v105, %v101
    %v162 = vpack.c.b16 %v106, %v102
    %v163 = vpack.c.b16 %v111, %v107
    %v164 = vpack.c.b16 %v112, %v108
    %v165 = vpack.c.b16 %v113, %v109
    %v166 = vpack.c.b16 %v114, %v110
    %v167 = vpack.c.b16 %v119, %v115
    %v168 = vpack.c.b16 %v120, %v116
    %v169 = vpack.c.b16 %v121, %v117
    %v170 = vpack.c.b16 %v122, %v118
    %v171 = vpack.c.b16 %v127, %v123
    %v172 = vpack.c.b16 %v128, %v124
    %v173 = vpack.c.b16 %v129, %v125
    %v174 = vpack.c.b16 %v130, %v126
    %v175 = vpack.c.b16 %v135, %v131
    %v176 = vpack.c.b16 %v136, %v132
    %v177 = vpack.c.b16 %v137, %v133
    %v178 = vpack.c.b16 %v138, %v134
    %v179 = vpack.c.b16 %v143, %v139
    %v180 = vpack.c.b16 %v144, %v140
    %v181 = vpack.c.b16 %v145, %v141
    %v182 = vpack.c.b16 %v146, %v142
    %v183 = vpack.c.b16 %v151, %v147
    %v184 = vpack.c.b16 %v152, %v148
    %v185 = vpack.c.b16 %v153, %v149
    %v186 = vpack.c.b16 %v154, %v150
    %219 = vmatprep.subr.bf16.mxu0 %v184
    %220 = vmatpush1.bf16.msra.mxu0 %v183
    %221 = vmatprep.subr.bf16.mxu0 %v180
    %222 = vmatpush1.bf16.msra.mxu0 %v179
    %223 = vmatprep.subr.bf16.mxu0 %v176
    %224 = vmatpush1.bf16.msra.mxu0 %v175
    %225 = vmatprep.subr.bf16.mxu0 %v172
    %226 = vmatpush1.bf16.msra.mxu0 %v171
    %227 = vmatprep.subr.bf16.mxu0 %v168
    %228 = vmatpush1.bf16.msra.mxu0 %v167
    %229 = vmatprep.subr.bf16.mxu0 %v164
    %230 = vmatpush1.bf16.msra.mxu0 %v163
    %231 = vmatprep.subr.bf16.mxu0 %v160
    %232 = vmatpush1.bf16.msra.mxu0 %v159
    %233 = vmatprep.subr.bf16.mxu0 %v156
    %234 = vmatpush1.bf16.msra.mxu0 %v155
    %235 = vmatprep.subr.bf16.mxu0 0
    %236 = vmatpush2.bf16.msra.mxu0 0
    %237 = vmatprep.subr.bf16.mxu0 0
    %238 = vmatpush2.bf16.msra.mxu0 0
    %239 = vmatprep.subr.bf16.mxu0 0
    %240 = vmatpush2.bf16.msra.mxu0 0
    %241 = vmatprep.subr.bf16.mxu0 0
    %242 = vmatpush2.bf16.msra.mxu0 0
    %243 = vmatprep.subr.bf16.mxu0 0
    %244 = vmatpush2.bf16.msra.mxu0 0
    %245 = vmatprep.subr.bf16.mxu0 0
    %246 = vmatpush2.bf16.msra.mxu0 0
    %247 = vmatprep.subr.bf16.mxu0 0
    %248 = vmatpush2.bf16.msra.mxu0 0
    %249 = vmatprep.subr.bf16.mxu0 0
    %250 = vmatpush2.bf16.msra.mxu0 0
    %251 = vmatprep.mubr.bf16.mxu0 0
    %252 = vmatmul.mubr.bf16.gmra.mxu0 %v26
    %v253 = vpop.f32.mrf.mxu0
    %v254 = vadd.f32 0.0, %v253
    %v255 = vpop.f32.mrf.mxu0
    %v256 = vadd.f32 0.0, %v255
    %v257 = vpop.f32.mrf.mxu0
    %v258 = vpop.f32.mrf.mxu0
    %259 = vdwg.mxu0
    %260 = vmatprep.subr.bf16.mxu0 %v186
    %261 = vmatpush1.bf16.msra.mxu0 %v185
    %262 = vmatprep.subr.bf16.mxu0 %v182
    %263 = vmatpush1.bf16.msra.mxu0 %v181
    %264 = vmatprep.subr.bf16.mxu0 %v178
    %265 = vmatpush1.bf16.msra.mxu0 %v177
    %266 = vmatprep.subr.bf16.mxu0 %v174
    %267 = vmatpush1.bf16.msra.mxu0 %v173
    %268 = vmatprep.subr.bf16.mxu0 %v170
    %269 = vmatpush1.bf16.msra.mxu0 %v169
    %270 = vmatprep.subr.bf16.mxu0 %v166
    %271 = vmatpush1.bf16.msra.mxu0 %v165
    %272 = vmatprep.subr.bf16.mxu0 %v162
    %273 = vmatpush1.bf16.msra.mxu0 %v161
    %274 = vmatprep.subr.bf16.mxu0 %v158
    %275 = vmatpush1.bf16.msra.mxu0 %v157
    %276 = vmatprep.subr.bf16.mxu0 0
    %277 = vmatpush2.bf16.msra.mxu0 0
    %278 = vmatprep.subr.bf16.mxu0 0
    %279 = vmatpush2.bf16.msra.mxu0 0
    %280 = vmatprep.subr.bf16.mxu0 0
    %281 = vmatpush2.bf16.msra.mxu0 0
    %282 = vmatprep.subr.bf16.mxu0 0
    %283 = vmatpush2.bf16.msra.mxu0 0
    %284 = vmatprep.subr.bf16.mxu0 0
    %285 = vmatpush2.bf16.msra.mxu0 0
    %286 = vmatprep.subr.bf16.mxu0 0
    %287 = vmatpush2.bf16.msra.mxu0 0
    %288 = vmatprep.subr.bf16.mxu0 0
    %289 = vmatpush2.bf16.msra.mxu0 0
    %290 = vmatprep.subr.bf16.mxu0 0
    %291 = vmatpush2.bf16.msra.mxu0 0
    %292 = vmatprep.mubr.bf16.mxu0 0
    %293 = vmatmul.mubr.bf16.gmra.mxu0 %v26
    %v294 = vpop.f32.mrf.mxu0
    %v295 = vadd.f32 0.0, %v294
    %v296 = vpop.f32.mrf.mxu0
    %v297 = vadd.f32 0.0, %v296
    %v298 = vpop.f32.mrf.mxu0
    %v299 = vpop.f32.mrf.mxu0
    %300 = vdwg.mxu0
    %v305 = vcombine.low %v254, %v256
    %v306 = vcombine.low %v295, %v297
    %v308 = vunpack.c.l.s4 1983009808
    %v309 = vunpack.c.0.s8 %v308
    %v310 = vlaneseq
    %v311 = vshrl.u32 %v310, 7
    %v312 = vsub.s32 %v309, %v311
    %v313 = vrot.slane %v305, %v312
    %v315 = vunpack.c.l.s4 1983009808
    %v316 = vunpack.c.0.s8 %v315
    %v317 = vlaneseq
    %v318 = vshrl.u32 %v317, 7
    %v319 = vsub.s32 %v316, %v318
    %v320 = vrot.slane %v306, %v319
    %v321 = vcombine.low %v313, %v320
    %v323 = vadd.f32 %v24, %v321
    %v324 = vxor.u32 %v323, 2147483648
    %v325 = vmul.f32 %v324, 1.442695
    %v326 = vpow.pop %v325
    %v327 = vadd.f32 %v326, 1.0
    %v328 = vrcp.pop %v327
    %v329 = vmul.f32 1.0, %v328
    %v331 = vrot.slane %v323, 2
    %v333 = vxor.u32 %v331, 2147483648
    %v334 = vmul.f32 %v333, 1.442695
    %v335 = vpow.pop %v334
    %v336 = vadd.f32 %v335, 1.0
    %v337 = vrcp.pop %v336
    %v338 = vmul.f32 1.0, %v337
    %v339 = vrot.slane %v323, 4
    %v341 = vtanh.pop %v339
    %v342 = vrot.slane %v323, 6
    %v344 = vxor.u32 %v342, 2147483648
    %v345 = vmul.f32 %v344, 1.442695
    %v346 = vpow.pop %v345
    %v347 = vadd.f32 %v346, 1.0
    %v348 = vrcp.pop %v347
    %v349 = vmul.f32 1.0, %v348
    %v350 = vld [vmem:[#allocation3] sm:$0x3]
    %v351 = vmul.f32 %v338, %v350
    %v352 = vmul.f32 %v329, %v341
    %v353 = vadd.f32 %v351, %v352
    %v354 = vtanh.pop %v353
    %v355 = vmul.f32 %v349, %v354
    %v356 = vld [vmem:[%s1] sm:$0x3]
    %358 = vset.pattern.permute.xlu0 0
    %359 = vperm.xlu0 %358, %v356
    %v360 = vpop.permute.xlu0 %359
    %v362 = vmul.f32 %v360, %v353
    %v363 = vsub.f32 1.0, %v356
    %365 = vset.pattern.permute.xlu0 0
    %366 = vperm.xlu0 %365, %v363
    %v367 = vpop.permute.xlu0 %366
    %v369 = vmul.f32 %v367, %v350
    %v370 = vadd.f32 %v362, %v369
    %371 = vst [vmem:[#allocation3] sm:$0x3] %v370
    %v372 = vmul.f32 %v360, %v355
    %v373 = vld [vmem:[#allocation2] sm:$0x3]
    %v374 = vmul.f32 %v367, %v373
    %v375 = vadd.f32 %v372, %v374
    %376 = vst [vmem:[#allocation2] sm:$0x3] %v375
    %s377 = scalar_lea.vmem %s0, 8
    %v378 = vld [vmem:[%s377] sm:$0xff]
    %v379 = vld [vmem:[#allocation2] sm:$0x3]
    %v380 = vpack.c.bf16 %v379, %v379
    %v381 = vld [vmem:[%s2] sm:$0xff]
    %v382 = vld [vmem:[%s2 + $0x8] sm:$0xff]
    %v383 = vld [vmem:[%s2 + $0x10] sm:$0xff]
    %v384 = vld [vmem:[%s2 + $0x18] sm:$0xff]
    %v385 = vld [vmem:[%s2 + $0x20] sm:$0xff]
    %v386 = vld [vmem:[%s2 + $0x28] sm:$0xff]
    %v387 = vld [vmem:[%s2 + $0x30] sm:$0xff]
    %v388 = vld [vmem:[%s2 + $0x38] sm:$0xff]
    %v389 = vld [vmem:[%s2 + $0x40] sm:$0xff]
    %v390 = vld [vmem:[%s2 + $0x48] sm:$0xff]
    %v391 = vld [vmem:[%s2 + $0x50] sm:$0xff]
    %v392 = vld [vmem:[%s2 + $0x58] sm:$0xff]
    %v393 = vld [vmem:[%s2 + $0x60] sm:$0xff]
    %v394 = vld [vmem:[%s2 + $0x68] sm:$0xff]
    %v395 = vld [vmem:[%s2 + $0x70] sm:$0xff]
    %v396 = vld [vmem:[%s2 + $0x78] sm:$0xff]
    %v397 = vld [vmem:[%s2 + $0x80] sm:$0xff]
    %v398 = vld [vmem:[%s2 + $0x88] sm:$0xff]
    %v399 = vld [vmem:[%s2 + $0x90] sm:$0xff]
    %v400 = vld [vmem:[%s2 + $0x98] sm:$0xff]
    %v401 = vld [vmem:[%s2 + $0xa0] sm:$0xff]
    %v402 = vld [vmem:[%s2 + $0xa8] sm:$0xff]
    %v403 = vld [vmem:[%s2 + $0xb0] sm:$0xff]
    %v404 = vld [vmem:[%s2 + $0xb8] sm:$0xff]
    %v405 = vld [vmem:[%s2 + $0xc0] sm:$0xff]
    %v406 = vld [vmem:[%s2 + $0xc8] sm:$0xff]
    %v407 = vld [vmem:[%s2 + $0xd0] sm:$0xff]
    %v408 = vld [vmem:[%s2 + $0xd8] sm:$0xff]
    %v409 = vld [vmem:[%s2 + $0xe0] sm:$0xff]
    %v410 = vld [vmem:[%s2 + $0xe8] sm:$0xff]
    %v411 = vld [vmem:[%s2 + $0xf0] sm:$0xff]
    %v412 = vld [vmem:[%s2 + $0xf8] sm:$0xff]
    %v445 = vunpack.c.l.b16 %v381
    %v446 = vunpack.c.h.b16 %v381
    %v447 = vunpack.c.l.b16 %v382
    %v448 = vunpack.c.h.b16 %v382
    %v449 = vunpack.c.l.b16 %v383
    %v450 = vunpack.c.h.b16 %v383
    %v451 = vunpack.c.l.b16 %v384
    %v452 = vunpack.c.h.b16 %v384
    %v453 = vunpack.c.l.b16 %v385
    %v454 = vunpack.c.h.b16 %v385
    %v455 = vunpack.c.l.b16 %v386
    %v456 = vunpack.c.h.b16 %v386
    %v457 = vunpack.c.l.b16 %v387
    %v458 = vunpack.c.h.b16 %v387
    %v459 = vunpack.c.l.b16 %v388
    %v460 = vunpack.c.h.b16 %v388
    %v461 = vunpack.c.l.b16 %v389
    %v462 = vunpack.c.h.b16 %v389
    %v463 = vunpack.c.l.b16 %v390
    %v464 = vunpack.c.h.b16 %v390
    %v465 = vunpack.c.l.b16 %v391
    %v466 = vunpack.c.h.b16 %v391
    %v467 = vunpack.c.l.b16 %v392
    %v468 = vunpack.c.h.b16 %v392
    %v469 = vunpack.c.l.b16 %v393
    %v470 = vunpack.c.h.b16 %v393
    %v471 = vunpack.c.l.b16 %v394
    %v472 = vunpack.c.h.b16 %v394
    %v473 = vunpack.c.l.b16 %v395
    %v474 = vunpack.c.h.b16 %v395
    %v475 = vunpack.c.l.b16 %v396
    %v476 = vunpack.c.h.b16 %v396
    %v477 = vunpack.c.l.b16 %v397
    %v478 = vunpack.c.h.b16 %v397
    %v479 = vunpack.c.l.b16 %v398
    %v480 = vunpack.c.h.b16 %v398
    %v481 = vunpack.c.l.b16 %v399
    %v482 = vunpack.c.h.b16 %v399
    %v483 = vunpack.c.l.b16 %v400
    %v484 = vunpack.c.h.b16 %v400
    %v485 = vunpack.c.l.b16 %v401
    %v486 = vunpack.c.h.b16 %v401
    %v487 = vunpack.c.l.b16 %v402
    %v488 = vunpack.c.h.b16 %v402
    %v489 = vunpack.c.l.b16 %v403
    %v490 = vunpack.c.h.b16 %v403
    %v491 = vunpack.c.l.b16 %v404
    %v492 = vunpack.c.h.b16 %v404
    %v493 = vunpack.c.l.b16 %v405
    %v494 = vunpack.c.h.b16 %v405
    %v495 = vunpack.c.l.b16 %v406
    %v496 = vunpack.c.h.b16 %v406
    %v497 = vunpack.c.l.b16 %v407
    %v498 = vunpack.c.h.b16 %v407
    %v499 = vunpack.c.l.b16 %v408
    %v500 = vunpack.c.h.b16 %v408
    %v501 = vunpack.c.l.b16 %v409
    %v502 = vunpack.c.h.b16 %v409
    %v503 = vunpack.c.l.b16 %v410
    %v504 = vunpack.c.h.b16 %v410
    %v505 = vunpack.c.l.b16 %v411
    %v506 = vunpack.c.h.b16 %v411
    %v507 = vunpack.c.l.b16 %v412
    %v508 = vunpack.c.h.b16 %v412
    %v509 = vpack.c.b16 %v449, %v445
    %v510 = vpack.c.b16 %v450, %v446
    %v511 = vpack.c.b16 %v451, %v447
    %v512 = vpack.c.b16 %v452, %v448
    %v513 = vpack.c.b16 %v457, %v453
    %v514 = vpack.c.b16 %v458, %v454
    %v515 = vpack.c.b16 %v459, %v455
    %v516 = vpack.c.b16 %v460, %v456
    %v517 = vpack.c.b16 %v465, %v461
    %v518 = vpack.c.b16 %v466, %v462
    %v519 = vpack.c.b16 %v467, %v463
    %v520 = vpack.c.b16 %v468, %v464
    %v521 = vpack.c.b16 %v473, %v469
    %v522 = vpack.c.b16 %v474, %v470
    %v523 = vpack.c.b16 %v475, %v471
    %v524 = vpack.c.b16 %v476, %v472
    %v525 = vpack.c.b16 %v481, %v477
    %v526 = vpack.c.b16 %v482, %v478
    %v527 = vpack.c.b16 %v483, %v479
    %v528 = vpack.c.b16 %v484, %v480
    %v529 = vpack.c.b16 %v489, %v485
    %v530 = vpack.c.b16 %v490, %v486
    %v531 = vpack.c.b16 %v491, %v487
    %v532 = vpack.c.b16 %v492, %v488
    %v533 = vpack.c.b16 %v497, %v493
    %v534 = vpack.c.b16 %v498, %v494
    %v535 = vpack.c.b16 %v499, %v495
    %v536 = vpack.c.b16 %v500, %v496
    %v537 = vpack.c.b16 %v505, %v501
    %v538 = vpack.c.b16 %v506, %v502
    %v539 = vpack.c.b16 %v507, %v503
    %v540 = vpack.c.b16 %v508, %v504
    %573 = vmatprep.subr.bf16.mxu0 %v538
    %574 = vmatpush1.bf16.msra.mxu0 %v537
    %575 = vmatprep.subr.bf16.mxu0 %v534
    %576 = vmatpush1.bf16.msra.mxu0 %v533
    %577 = vmatprep.subr.bf16.mxu0 %v530
    %578 = vmatpush1.bf16.msra.mxu0 %v529
    %579 = vmatprep.subr.bf16.mxu0 %v526
    %580 = vmatpush1.bf16.msra.mxu0 %v525
    %581 = vmatprep.subr.bf16.mxu0 %v522
    %582 = vmatpush1.bf16.msra.mxu0 %v521
    %583 = vmatprep.subr.bf16.mxu0 %v518
    %584 = vmatpush1.bf16.msra.mxu0 %v517
    %585 = vmatprep.subr.bf16.mxu0 %v514
    %586 = vmatpush1.bf16.msra.mxu0 %v513
    %587 = vmatprep.subr.bf16.mxu0 %v510
    %588 = vmatpush1.bf16.msra.mxu0 %v509
    %589 = vmatprep.subr.bf16.mxu0 0
    %590 = vmatpush2.bf16.msra.mxu0 0
    %591 = vmatprep.subr.bf16.mxu0 0
    %592 = vmatpush2.bf16.msra.mxu0 0
    %593 = vmatprep.subr.bf16.mxu0 0
    %594 = vmatpush2.bf16.msra.mxu0 0
    %595 = vmatprep.subr.bf16.mxu0 0
    %596 = vmatpush2.bf16.msra.mxu0 0
    %597 = vmatprep.subr.bf16.mxu0 0
    %598 = vmatpush2.bf16.msra.mxu0 0
    %599 = vmatprep.subr.bf16.mxu0 0
    %600 = vmatpush2.bf16.msra.mxu0 0
    %601 = vmatprep.subr.bf16.mxu0 0
    %602 = vmatpush2.bf16.msra.mxu0 0
    %603 = vmatprep.subr.bf16.mxu0 0
    %604 = vmatpush2.bf16.msra.mxu0 0
    %605 = vmatprep.mubr.bf16.mxu0 0
    %606 = vmatmul.mubr.bf16.gmra.mxu0 %v380
    %v607 = vpop.f32.mrf.mxu0
    %v608 = vadd.f32 0.0, %v607
    %v609 = vpop.f32.mrf.mxu0
    %v610 = vadd.f32 0.0, %v609
    %v611 = vpop.f32.mrf.mxu0
    %v612 = vpop.f32.mrf.mxu0
    %613 = vdwg.mxu0
    %614 = vmatprep.subr.bf16.mxu0 %v540
    %615 = vmatpush1.bf16.msra.mxu0 %v539
    %616 = vmatprep.subr.bf16.mxu0 %v536
    %617 = vmatpush1.bf16.msra.mxu0 %v535
    %618 = vmatprep.subr.bf16.mxu0 %v532
    %619 = vmatpush1.bf16.msra.mxu0 %v531
    %620 = vmatprep.subr.bf16.mxu0 %v528
    %621 = vmatpush1.bf16.msra.mxu0 %v527
    %622 = vmatprep.subr.bf16.mxu0 %v524
    %623 = vmatpush1.bf16.msra.mxu0 %v523
    %624 = vmatprep.subr.bf16.mxu0 %v520
    %625 = vmatpush1.bf16.msra.mxu0 %v519
    %626 = vmatprep.subr.bf16.mxu0 %v516
    %627 = vmatpush1.bf16.msra.mxu0 %v515
    %628 = vmatprep.subr.bf16.mxu0 %v512
    %629 = vmatpush1.bf16.msra.mxu0 %v511
    %630 = vmatprep.subr.bf16.mxu0 0
    %631 = vmatpush2.bf16.msra.mxu0 0
    %632 = vmatprep.subr.bf16.mxu0 0
    %633 = vmatpush2.bf16.msra.mxu0 0
    %634 = vmatprep.subr.bf16.mxu0 0
    %635 = vmatpush2.bf16.msra.mxu0 0
    %636 = vmatprep.subr.bf16.mxu0 0
    %637 = vmatpush2.bf16.msra.mxu0 0
    %638 = vmatprep.subr.bf16.mxu0 0
    %639 = vmatpush2.bf16.msra.mxu0 0
    %640 = vmatprep.subr.bf16.mxu0 0
    %641 = vmatpush2.bf16.msra.mxu0 0
    %642 = vmatprep.subr.bf16.mxu0 0
    %643 = vmatpush2.bf16.msra.mxu0 0
    %644 = vmatprep.subr.bf16.mxu0 0
    %645 = vmatpush2.bf16.msra.mxu0 0
    %646 = vmatprep.mubr.bf16.mxu0 0
    %647 = vmatmul.mubr.bf16.gmra.mxu0 %v380
    %v648 = vpop.f32.mrf.mxu0
    %v649 = vadd.f32 0.0, %v648
    %v650 = vpop.f32.mrf.mxu0
    %v651 = vadd.f32 0.0, %v650
    %v652 = vpop.f32.mrf.mxu0
    %v653 = vpop.f32.mrf.mxu0
    %654 = vdwg.mxu0
    %v659 = vcombine.low %v608, %v610
    %v660 = vcombine.low %v649, %v651
    %v662 = vunpack.c.l.s4 1983009808
    %v663 = vunpack.c.0.s8 %v662
    %v664 = vlaneseq
    %v665 = vshrl.u32 %v664, 7
    %v666 = vsub.s32 %v663, %v665
    %v667 = vrot.slane %v659, %v666
    %v669 = vunpack.c.l.s4 1983009808
    %v670 = vunpack.c.0.s8 %v669
    %v671 = vlaneseq
    %v672 = vshrl.u32 %v671, 7
    %v673 = vsub.s32 %v670, %v672
    %v674 = vrot.slane %v660, %v673
    %v675 = vcombine.low %v667, %v674
    %v677 = vadd.f32 %v378, %v675
    %v678 = vxor.u32 %v677, 2147483648
    %v679 = vmul.f32 %v678, 1.442695
    %v680 = vpow.pop %v679
    %v681 = vadd.f32 %v680, 1.0
    %v682 = vrcp.pop %v681
    %v683 = vmul.f32 1.0, %v682
    %v685 = vrot.slane %v677, 2
    %v687 = vxor.u32 %v685, 2147483648
    %v688 = vmul.f32 %v687, 1.442695
    %v689 = vpow.pop %v688
    %v690 = vadd.f32 %v689, 1.0
    %v691 = vrcp.pop %v690
    %v692 = vmul.f32 1.0, %v691
    %v693 = vrot.slane %v677, 4
    %v695 = vtanh.pop %v693
    %v696 = vrot.slane %v677, 6
    %v698 = vxor.u32 %v696, 2147483648
    %v699 = vmul.f32 %v698, 1.442695
    %v700 = vpow.pop %v699
    %v701 = vadd.f32 %v700, 1.0
    %v702 = vrcp.pop %v701
    %v703 = vmul.f32 1.0, %v702
    %v704 = vld [vmem:[#allocation3] sm:$0x3]
    %v705 = vmul.f32 %v692, %v704
    %v706 = vmul.f32 %v683, %v695
    %v707 = vadd.f32 %v705, %v706
    %v708 = vtanh.pop %v707
    %v709 = vmul.f32 %v703, %v708
    %s710 = scalar_lea.vmem %s1, 2
    %v711 = vld [vmem:[%s710] sm:$0x3]
    %713 = vset.pattern.permute.xlu0 0
    %714 = vperm.xlu0 %713, %v711
    %v715 = vpop.permute.xlu0 %714
    %v717 = vmul.f32 %v715, %v707
    %v718 = vsub.f32 1.0, %v711
    %720 = vset.pattern.permute.xlu0 0
    %721 = vperm.xlu0 %720, %v718
    %v722 = vpop.permute.xlu0 %721
    %v724 = vmul.f32 %v722, %v704
    %v725 = vadd.f32 %v717, %v724
    %726 = vst [vmem:[#allocation3] sm:$0x3] %v725
    %v727 = vmul.f32 %v715, %v709
    %v728 = vld [vmem:[#allocation2] sm:$0x3]
    %v729 = vmul.f32 %v722, %v728
    %v730 = vadd.f32 %v727, %v729
    %731 = vst [vmem:[#allocation2] sm:$0x3] %v730
    %s732 = scalar_lea.vmem %s0, 16
    %v733 = vld [vmem:[%s732] sm:$0xff]
    %v734 = vld [vmem:[#allocation2] sm:$0x3]
    %v735 = vpack.c.bf16 %v734, %v734
    %v736 = vld [vmem:[%s2] sm:$0xff]
    %v737 = vld [vmem:[%s2 + $0x8] sm:$0xff]
    %v738 = vld [vmem:[%s2 + $0x10] sm:$0xff]
    %v739 = vld [vmem:[%s2 + $0x18] sm:$0xff]
    %v740 = vld [vmem:[%s2 + $0x20] sm:$0xff]
    %v741 = vld [vmem:[%s2 + $0x28] sm:$0xff]
    %v742 = vld [vmem:[%s2 + $0x30] sm:$0xff]
    %v743 = vld [vmem:[%s2 + $0x38] sm:$0xff]
    %v744 = vld [vmem:[%s2 + $0x40] sm:$0xff]
    %v745 = vld [vmem:[%s2 + $0x48] sm:$0xff]
    %v746 = vld [vmem:[%s2 + $0x50] sm:$0xff]
    %v747 = vld [vmem:[%s2 + $0x58] sm:$0xff]
    %v748 = vld [vmem:[%s2 + $0x60] sm:$0xff]
    %v749 = vld [vmem:[%s2 + $0x68] sm:$0xff]
    %v750 = vld [vmem:[%s2 + $0x70] sm:$0xff]
    %v751 = vld [vmem:[%s2 + $0x78] sm:$0xff]
    %v752 = vld [vmem:[%s2 + $0x80] sm:$0xff]
    %v753 = vld [vmem:[%s2 + $0x88] sm:$0xff]
    %v754 = vld [vmem:[%s2 + $0x90] sm:$0xff]
    %v755 = vld [vmem:[%s2 + $0x98] sm:$0xff]
    %v756 = vld [vmem:[%s2 + $0xa0] sm:$0xff]
    %v757 = vld [vmem:[%s2 + $0xa8] sm:$0xff]
    %v758 = vld [vmem:[%s2 + $0xb0] sm:$0xff]
    %v759 = vld [vmem:[%s2 + $0xb8] sm:$0xff]
    %v760 = vld [vmem:[%s2 + $0xc0] sm:$0xff]
    %v761 = vld [vmem:[%s2 + $0xc8] sm:$0xff]
    %v762 = vld [vmem:[%s2 + $0xd0] sm:$0xff]
    %v763 = vld [vmem:[%s2 + $0xd8] sm:$0xff]
    %v764 = vld [vmem:[%s2 + $0xe0] sm:$0xff]
    %v765 = vld [vmem:[%s2 + $0xe8] sm:$0xff]
    %v766 = vld [vmem:[%s2 + $0xf0] sm:$0xff]
    %v767 = vld [vmem:[%s2 + $0xf8] sm:$0xff]
    %v800 = vunpack.c.l.b16 %v736
    %v801 = vunpack.c.h.b16 %v736
    %v802 = vunpack.c.l.b16 %v737
    %v803 = vunpack.c.h.b16 %v737
    %v804 = vunpack.c.l.b16 %v738
    %v805 = vunpack.c.h.b16 %v738
    %v806 = vunpack.c.l.b16 %v739
    %v807 = vunpack.c.h.b16 %v739
    %v808 = vunpack.c.l.b16 %v740
    %v809 = vunpack.c.h.b16 %v740
    %v810 = vunpack.c.l.b16 %v741
    %v811 = vunpack.c.h.b16 %v741
    %v812 = vunpack.c.l.b16 %v742
    %v813 = vunpack.c.h.b16 %v742
    %v814 = vunpack.c.l.b16 %v743
    %v815 = vunpack.c.h.b16 %v743
    %v816 = vunpack.c.l.b16 %v744
    %v817 = vunpack.c.h.b16 %v744
    %v818 = vunpack.c.l.b16 %v745
    %v819 = vunpack.c.h.b16 %v745
    %v820 = vunpack.c.l.b16 %v746
    %v821 = vunpack.c.h.b16 %v746
    %v822 = vunpack.c.l.b16 %v747
    %v823 = vunpack.c.h.b16 %v747
    %v824 = vunpack.c.l.b16 %v748
    %v825 = vunpack.c.h.b16 %v748
    %v826 = vunpack.c.l.b16 %v749
    %v827 = vunpack.c.h.b16 %v749
    %v828 = vunpack.c.l.b16 %v750
    %v829 = vunpack.c.h.b16 %v750
    %v830 = vunpack.c.l.b16 %v751
    %v831 = vunpack.c.h.b16 %v751
    %v832 = vunpack.c.l.b16 %v752
    %v833 = vunpack.c.h.b16 %v752
    %v834 = vunpack.c.l.b16 %v753
    %v835 = vunpack.c.h.b16 %v753
    %v836 = vunpack.c.l.b16 %v754
    %v837 = vunpack.c.h.b16 %v754
    %v838 = vunpack.c.l.b16 %v755
    %v839 = vunpack.c.h.b16 %v755
    %v840 = vunpack.c.l.b16 %v756
    %v841 = vunpack.c.h.b16 %v756
    %v842 = vunpack.c.l.b16 %v757
    %v843 = vunpack.c.h.b16 %v757
    %v844 = vunpack.c.l.b16 %v758
    %v845 = vunpack.c.h.b16 %v758
    %v846 = vunpack.c.l.b16 %v759
    %v847 = vunpack.c.h.b16 %v759
    %v848 = vunpack.c.l.b16 %v760
    %v849 = vunpack.c.h.b16 %v760
    %v850 = vunpack.c.l.b16 %v761
    %v851 = vunpack.c.h.b16 %v761
    %v852 = vunpack.c.l.b16 %v762
    %v853 = vunpack.c.h.b16 %v762
    %v854 = vunpack.c.l.b16 %v763
    %v855 = vunpack.c.h.b16 %v763
    %v856 = vunpack.c.l.b16 %v764
    %v857 = vunpack.c.h.b16 %v764
    %v858 = vunpack.c.l.b16 %v765
    %v859 = vunpack.c.h.b16 %v765
    %v860 = vunpack.c.l.b16 %v766
    %v861 = vunpack.c.h.b16 %v766
    %v862 = vunpack.c.l.b16 %v767
    %v863 = vunpack.c.h.b16 %v767
    %v864 = vpack.c.b16 %v804, %v800
    %v865 = vpack.c.b16 %v805, %v801
    %v866 = vpack.c.b16 %v806, %v802
    %v867 = vpack.c.b16 %v807, %v803
    %v868 = vpack.c.b16 %v812, %v808
    %v869 = vpack.c.b16 %v813, %v809
    %v870 = vpack.c.b16 %v814, %v810
    %v871 = vpack.c.b16 %v815, %v811
    %v872 = vpack.c.b16 %v820, %v816
    %v873 = vpack.c.b16 %v821, %v817
    %v874 = vpack.c.b16 %v822, %v818
    %v875 = vpack.c.b16 %v823, %v819
    %v876 = vpack.c.b16 %v828, %v824
    %v877 = vpack.c.b16 %v829, %v825
    %v878 = vpack.c.b16 %v830, %v826
    %v879 = vpack.c.b16 %v831, %v827
    %v880 = vpack.c.b16 %v836, %v832
    %v881 = vpack.c.b16 %v837, %v833
    %v882 = vpack.c.b16 %v838, %v834
    %v883 = vpack.c.b16 %v839, %v835
    %v884 = vpack.c.b16 %v844, %v840
    %v885 = vpack.c.b16 %v845, %v841
    %v886 = vpack.c.b16 %v846, %v842
    %v887 = vpack.c.b16 %v847, %v843
    %v888 = vpack.c.b16 %v852, %v848
    %v889 = vpack.c.b16 %v853, %v849
    %v890 = vpack.c.b16 %v854, %v850
    %v891 = vpack.c.b16 %v855, %v851
    %v892 = vpack.c.b16 %v860, %v856
    %v893 = vpack.c.b16 %v861, %v857
    %v894 = vpack.c.b16 %v862, %v858
    %v895 = vpack.c.b16 %v863, %v859
    %928 = vmatprep.subr.bf16.mxu0 %v893
    %929 = vmatpush1.bf16.msra.mxu0 %v892
    %930 = vmatprep.subr.bf16.mxu0 %v889
    %931 = vmatpush1.bf16.msra.mxu0 %v888
    %932 = vmatprep.subr.bf16.mxu0 %v885
    %933 = vmatpush1.bf16.msra.mxu0 %v884
    %934 = vmatprep.subr.bf16.mxu0 %v881
    %935 = vmatpush1.bf16.msra.mxu0 %v880
    %936 = vmatprep.subr.bf16.mxu0 %v877
    %937 = vmatpush1.bf16.msra.mxu0 %v876
    %938 = vmatprep.subr.bf16.mxu0 %v873
    %939 = vmatpush1.bf16.msra.mxu0 %v872
    %940 = vmatprep.subr.bf16.mxu0 %v869
    %941 = vmatpush1.bf16.msra.mxu0 %v868
    %942 = vmatprep.subr.bf16.mxu0 %v865
    %943 = vmatpush1.bf16.msra.mxu0 %v864
    %944 = vmatprep.subr.bf16.mxu0 0
    %945 = vmatpush2.bf16.msra.mxu0 0
    %946 = vmatprep.subr.bf16.mxu0 0
    %947 = vmatpush2.bf16.msra.mxu0 0
    %948 = vmatprep.subr.bf16.mxu0 0
    %949 = vmatpush2.bf16.msra.mxu0 0
    %950 = vmatprep.subr.bf16.mxu0 0
    %951 = vmatpush2.bf16.msra.mxu0 0
    %952 = vmatprep.subr.bf16.mxu0 0
    %953 = vmatpush2.bf16.msra.mxu0 0
    %954 = vmatprep.subr.bf16.mxu0 0
    %955 = vmatpush2.bf16.msra.mxu0 0
    %956 = vmatprep.subr.bf16.mxu0 0
    %957 = vmatpush2.bf16.msra.mxu0 0
    %958 = vmatprep.subr.bf16.mxu0 0
    %959 = vmatpush2.bf16.msra.mxu0 0
    %960 = vmatprep.mubr.bf16.mxu0 0
    %961 = vmatmul.mubr.bf16.gmra.mxu0 %v735
    %v962 = vpop.f32.mrf.mxu0
    %v963 = vadd.f32 0.0, %v962
    %v964 = vpop.f32.mrf.mxu0
    %v965 = vadd.f32 0.0, %v964
    %v966 = vpop.f32.mrf.mxu0
    %v967 = vpop.f32.mrf.mxu0
    %968 = vdwg.mxu0
    %969 = vmatprep.subr.bf16.mxu0 %v895
    %970 = vmatpush1.bf16.msra.mxu0 %v894
    %971 = vmatprep.subr.bf16.mxu0 %v891
    %972 = vmatpush1.bf16.msra.mxu0 %v890
    %973 = vmatprep.subr.bf16.mxu0 %v887
    %974 = vmatpush1.bf16.msra.mxu0 %v886
    %975 = vmatprep.subr.bf16.mxu0 %v883
    %976 = vmatpush1.bf16.msra.mxu0 %v882
    %977 = vmatprep.subr.bf16.mxu0 %v879
    %978 = vmatpush1.bf16.msra.mxu0 %v878
    %979 = vmatprep.subr.bf16.mxu0 %v875
    %980 = vmatpush1.bf16.msra.mxu0 %v874
    %981 = vmatprep.subr.bf16.mxu0 %v871
    %982 = vmatpush1.bf16.msra.mxu0 %v870
    %983 = vmatprep.subr.bf16.mxu0 %v867
    %984 = vmatpush1.bf16.msra.mxu0 %v866
    %985 = vmatprep.subr.bf16.mxu0 0
    %986 = vmatpush2.bf16.msra.mxu0 0
    %987 = vmatprep.subr.bf16.mxu0 0
    %988 = vmatpush2.bf16.msra.mxu0 0
    %989 = vmatprep.subr.bf16.mxu0 0
    %990 = vmatpush2.bf16.msra.mxu0 0
    %991 = vmatprep.subr.bf16.mxu0 0
    %992 = vmatpush2.bf16.msra.mxu0 0
    %993 = vmatprep.subr.bf16.mxu0 0
    %994 = vmatpush2.bf16.msra.mxu0 0
    %995 = vmatprep.subr.bf16.mxu0 0
    %996 = vmatpush2.bf16.msra.mxu0 0
    %997 = vmatprep.subr.bf16.mxu0 0
    %998 = vmatpush2.bf16.msra.mxu0 0
    %999 = vmatprep.subr.bf16.mxu0 0
    %1000 = vmatpush2.bf16.msra.mxu0 0
    %1001 = vmatprep.mubr.bf16.mxu0 0
    %1002 = vmatmul.mubr.bf16.gmra.mxu0 %v735
    %v1003 = vpop.f32.mrf.mxu0
    %v1004 = vadd.f32 0.0, %v1003
    %v1005 = vpop.f32.mrf.mxu0
    %v1006 = vadd.f32 0.0, %v1005
    %v1007 = vpop.f32.mrf.mxu0
    %v1008 = vpop.f32.mrf.mxu0
    %1009 = vdwg.mxu0
    %v1014 = vcombine.low %v963, %v965
    %v1015 = vcombine.low %v1004, %v1006
    %v1017 = vunpack.c.l.s4 1983009808
    %v1018 = vunpack.c.0.s8 %v1017
    %v1019 = vlaneseq
    %v1020 = vshrl.u32 %v1019, 7
    %v1021 = vsub.s32 %v1018, %v1020
    %v1022 = vrot.slane %v1014, %v1021
    %v1024 = vunpack.c.l.s4 1983009808
    %v1025 = vunpack.c.0.s8 %v1024
    %v1026 = vlaneseq
    %v1027 = vshrl.u32 %v1026, 7
    %v1028 = vsub.s32 %v1025, %v1027
    %v1029 = vrot.slane %v1015, %v1028
    %v1030 = vcombine.low %v1022, %v1029
    %v1032 = vadd.f32 %v733, %v1030
    %v1033 = vxor.u32 %v1032, 2147483648
    %v1034 = vmul.f32 %v1033, 1.442695
    %v1035 = vpow.pop %v1034
    %v1036 = vadd.f32 %v1035, 1.0
    %v1037 = vrcp.pop %v1036
    %v1038 = vmul.f32 1.0, %v1037
    %v1040 = vrot.slane %v1032, 2
    %v1042 = vxor.u32 %v1040, 2147483648
    %v1043 = vmul.f32 %v1042, 1.442695
    %v1044 = vpow.pop %v1043
    %v1045 = vadd.f32 %v1044, 1.0
    %v1046 = vrcp.pop %v1045
    %v1047 = vmul.f32 1.0, %v1046
    %v1048 = vrot.slane %v1032, 4
    %v1050 = vtanh.pop %v1048
    %v1051 = vrot.slane %v1032, 6
    %v1053 = vxor.u32 %v1051, 2147483648
    %v1054 = vmul.f32 %v1053, 1.442695
    %v1055 = vpow.pop %v1054
    %v1056 = vadd.f32 %v1055, 1.0
    %v1057 = vrcp.pop %v1056
    %v1058 = vmul.f32 1.0, %v1057
    %v1059 = vld [vmem:[#allocation3] sm:$0x3]
    %v1060 = vmul.f32 %v1047, %v1059
    %v1061 = vmul.f32 %v1038, %v1050
    %v1062 = vadd.f32 %v1060, %v1061
    %v1063 = vtanh.pop %v1062
    %v1064 = vmul.f32 %v1058, %v1063
    %s1065 = scalar_lea.vmem %s1, 4
    %v1066 = vld [vmem:[%s1065] sm:$0x3]
    %1068 = vset.pattern.permute.xlu0 0
    %1069 = vperm.xlu0 %1068, %v1066
    %v1070 = vpop.permute.xlu0 %1069
    %v1072 = vmul.f32 %v1070, %v1062
    %v1073 = vsub.f32 1.0, %v1066
    %1075 = vset.pattern.permute.xlu0 0
    %1076 = vperm.xlu0 %1075, %v1073
    %v1077 = vpop.permute.xlu0 %1076
    %v1079 = vmul.f32 %v1077, %v1059
    %v1080 = vadd.f32 %v1072, %v1079
    %1081 = vst [vmem:[#allocation3] sm:$0x3] %v1080
    %v1082 = vmul.f32 %v1070, %v1064
    %v1083 = vld [vmem:[#allocation2] sm:$0x3]
    %v1084 = vmul.f32 %v1077, %v1083
    %v1085 = vadd.f32 %v1082, %v1084
    %1086 = vst [vmem:[#allocation2] sm:$0x3] %v1085
    %s1087 = scalar_lea.vmem %s0, 24
    %v1088 = vld [vmem:[%s1087] sm:$0xff]
    %v1089 = vld [vmem:[#allocation2] sm:$0x3]
    %v1090 = vpack.c.bf16 %v1089, %v1089
    %v1091 = vld [vmem:[%s2] sm:$0xff]
    %v1092 = vld [vmem:[%s2 + $0x8] sm:$0xff]
    %v1093 = vld [vmem:[%s2 + $0x10] sm:$0xff]
    %v1094 = vld [vmem:[%s2 + $0x18] sm:$0xff]
    %v1095 = vld [vmem:[%s2 + $0x20] sm:$0xff]
    %v1096 = vld [vmem:[%s2 + $0x28] sm:$0xff]
    %v1097 = vld [vmem:[%s2 + $0x30] sm:$0xff]
    %v1098 = vld [vmem:[%s2 + $0x38] sm:$0xff]
    %v1099 = vld [vmem:[%s2 + $0x40] sm:$0xff]
    %v1100 = vld [vmem:[%s2 + $0x48] sm:$0xff]
    %v1101 = vld [vmem:[%s2 + $0x50] sm:$0xff]
    %v1102 = vld [vmem:[%s2 + $0x58] sm:$0xff]
    %v1103 = vld [vmem:[%s2 + $0x60] sm:$0xff]
    %v1104 = vld [vmem:[%s2 + $0x68] sm:$0xff]
    %v1105 = vld [vmem:[%s2 + $0x70] sm:$0xff]
    %v1106 = vld [vmem:[%s2 + $0x78] sm:$0xff]
    %v1107 = vld [vmem:[%s2 + $0x80] sm:$0xff]
    %v1108 = vld [vmem:[%s2 + $0x88] sm:$0xff]
    %v1109 = vld [vmem:[%s2 + $0x90] sm:$0xff]
    %v1110 = vld [vmem:[%s2 + $0x98] sm:$0xff]
    %v1111 = vld [vmem:[%s2 + $0xa0] sm:$0xff]
    %v1112 = vld [vmem:[%s2 + $0xa8] sm:$0xff]
    %v1113 = vld [vmem:[%s2 + $0xb0] sm:$0xff]
    %v1114 = vld [vmem:[%s2 + $0xb8] sm:$0xff]
    %v1115 = vld [vmem:[%s2 + $0xc0] sm:$0xff]
    %v1116 = vld [vmem:[%s2 + $0xc8] sm:$0xff]
    %v1117 = vld [vmem:[%s2 + $0xd0] sm:$0xff]
    %v1118 = vld [vmem:[%s2 + $0xd8] sm:$0xff]
    %v1119 = vld [vmem:[%s2 + $0xe0] sm:$0xff]
    %v1120 = vld [vmem:[%s2 + $0xe8] sm:$0xff]
    %v1121 = vld [vmem:[%s2 + $0xf0] sm:$0xff]
    %v1122 = vld [vmem:[%s2 + $0xf8] sm:$0xff]
    %v1155 = vunpack.c.l.b16 %v1091
    %v1156 = vunpack.c.h.b16 %v1091
    %v1157 = vunpack.c.l.b16 %v1092
    %v1158 = vunpack.c.h.b16 %v1092
    %v1159 = vunpack.c.l.b16 %v1093
    %v1160 = vunpack.c.h.b16 %v1093
    %v1161 = vunpack.c.l.b16 %v1094
    %v1162 = vunpack.c.h.b16 %v1094
    %v1163 = vunpack.c.l.b16 %v1095
    %v1164 = vunpack.c.h.b16 %v1095
    %v1165 = vunpack.c.l.b16 %v1096
    %v1166 = vunpack.c.h.b16 %v1096
    %v1167 = vunpack.c.l.b16 %v1097
    %v1168 = vunpack.c.h.b16 %v1097
    %v1169 = vunpack.c.l.b16 %v1098
    %v1170 = vunpack.c.h.b16 %v1098
    %v1171 = vunpack.c.l.b16 %v1099
    %v1172 = vunpack.c.h.b16 %v1099
    %v1173 = vunpack.c.l.b16 %v1100
    %v1174 = vunpack.c.h.b16 %v1100
    %v1175 = vunpack.c.l.b16 %v1101
    %v1176 = vunpack.c.h.b16 %v1101
    %v1177 = vunpack.c.l.b16 %v1102
    %v1178 = vunpack.c.h.b16 %v1102
    %v1179 = vunpack.c.l.b16 %v1103
    %v1180 = vunpack.c.h.b16 %v1103
    %v1181 = vunpack.c.l.b16 %v1104
    %v1182 = vunpack.c.h.b16 %v1104
    %v1183 = vunpack.c.l.b16 %v1105
    %v1184 = vunpack.c.h.b16 %v1105
    %v1185 = vunpack.c.l.b16 %v1106
    %v1186 = vunpack.c.h.b16 %v1106
    %v1187 = vunpack.c.l.b16 %v1107
    %v1188 = vunpack.c.h.b16 %v1107
    %v1189 = vunpack.c.l.b16 %v1108
    %v1190 = vunpack.c.h.b16 %v1108
    %v1191 = vunpack.c.l.b16 %v1109
    %v1192 = vunpack.c.h.b16 %v1109
    %v1193 = vunpack.c.l.b16 %v1110
    %v1194 = vunpack.c.h.b16 %v1110
    %v1195 = vunpack.c.l.b16 %v1111
    %v1196 = vunpack.c.h.b16 %v1111
    %v1197 = vunpack.c.l.b16 %v1112
    %v1198 = vunpack.c.h.b16 %v1112
    %v1199 = vunpack.c.l.b16 %v1113
    %v1200 = vunpack.c.h.b16 %v1113
    %v1201 = vunpack.c.l.b16 %v1114
    %v1202 = vunpack.c.h.b16 %v1114
    %v1203 = vunpack.c.l.b16 %v1115
    %v1204 = vunpack.c.h.b16 %v1115
    %v1205 = vunpack.c.l.b16 %v1116
    %v1206 = vunpack.c.h.b16 %v1116
    %v1207 = vunpack.c.l.b16 %v1117
    %v1208 = vunpack.c.h.b16 %v1117
    %v1209 = vunpack.c.l.b16 %v1118
    %v1210 = vunpack.c.h.b16 %v1118
    %v1211 = vunpack.c.l.b16 %v1119
    %v1212 = vunpack.c.h.b16 %v1119
    %v1213 = vunpack.c.l.b16 %v1120
    %v1214 = vunpack.c.h.b16 %v1120
    %v1215 = vunpack.c.l.b16 %v1121
    %v1216 = vunpack.c.h.b16 %v1121
    %v1217 = vunpack.c.l.b16 %v1122
    %v1218 = vunpack.c.h.b16 %v1122
    %v1219 = vpack.c.b16 %v1159, %v1155
    %v1220 = vpack.c.b16 %v1160, %v1156
    %v1221 = vpack.c.b16 %v1161, %v1157
    %v1222 = vpack.c.b16 %v1162, %v1158
    %v1223 = vpack.c.b16 %v1167, %v1163
    %v1224 = vpack.c.b16 %v1168, %v1164
    %v1225 = vpack.c.b16 %v1169, %v1165
    %v1226 = vpack.c.b16 %v1170, %v1166
    %v1227 = vpack.c.b16 %v1175, %v1171
    %v1228 = vpack.c.b16 %v1176, %v1172
    %v1229 = vpack.c.b16 %v1177, %v1173
    %v1230 = vpack.c.b16 %v1178, %v1174
    %v1231 = vpack.c.b16 %v1183, %v1179
    %v1232 = vpack.c.b16 %v1184, %v1180
    %v1233 = vpack.c.b16 %v1185, %v1181
    %v1234 = vpack.c.b16 %v1186, %v1182
    %v1235 = vpack.c.b16 %v1191, %v1187
    %v1236 = vpack.c.b16 %v1192, %v1188
    %v1237 = vpack.c.b16 %v1193, %v1189
    %v1238 = vpack.c.b16 %v1194, %v1190
    %v1239 = vpack.c.b16 %v1199, %v1195
    %v1240 = vpack.c.b16 %v1200, %v1196
    %v1241 = vpack.c.b16 %v1201, %v1197
    %v1242 = vpack.c.b16 %v1202, %v1198
    %v1243 = vpack.c.b16 %v1207, %v1203
    %v1244 = vpack.c.b16 %v1208, %v1204
    %v1245 = vpack.c.b16 %v1209, %v1205
    %v1246 = vpack.c.b16 %v1210, %v1206
    %v1247 = vpack.c.b16 %v1215, %v1211
    %v1248 = vpack.c.b16 %v1216, %v1212
    %v1249 = vpack.c.b16 %v1217, %v1213
    %v1250 = vpack.c.b16 %v1218, %v1214
    %1283 = vmatprep.subr.bf16.mxu0 %v1248
    %1284 = vmatpush1.bf16.msra.mxu0 %v1247
    %1285 = vmatprep.subr.bf16.mxu0 %v1244
    %1286 = vmatpush1.bf16.msra.mxu0 %v1243
    %1287 = vmatprep.subr.bf16.mxu0 %v1240
    %1288 = vmatpush1.bf16.msra.mxu0 %v1239
    %1289 = vmatprep.subr.bf16.mxu0 %v1236
    %1290 = vmatpush1.bf16.msra.mxu0 %v1235
    %1291 = vmatprep.subr.bf16.mxu0 %v1232
    %1292 = vmatpush1.bf16.msra.mxu0 %v1231
    %1293 = vmatprep.subr.bf16.mxu0 %v1228
    %1294 = vmatpush1.bf16.msra.mxu0 %v1227
    %1295 = vmatprep.subr.bf16.mxu0 %v1224
    %1296 = vmatpush1.bf16.msra.mxu0 %v1223
    %1297 = vmatprep.subr.bf16.mxu0 %v1220
    %1298 = vmatpush1.bf16.msra.mxu0 %v1219
    %1299 = vmatprep.subr.bf16.mxu0 0
    %1300 = vmatpush2.bf16.msra.mxu0 0
    %1301 = vmatprep.subr.bf16.mxu0 0
    %1302 = vmatpush2.bf16.msra.mxu0 0
    %1303 = vmatprep.subr.bf16.mxu0 0
    %1304 = vmatpush2.bf16.msra.mxu0 0
    %1305 = vmatprep.subr.bf16.mxu0 0
    %1306 = vmatpush2.bf16.msra.mxu0 0
    %1307 = vmatprep.subr.bf16.mxu0 0
    %1308 = vmatpush2.bf16.msra.mxu0 0
    %1309 = vmatprep.subr.bf16.mxu0 0
    %1310 = vmatpush2.bf16.msra.mxu0 0
    %1311 = vmatprep.subr.bf16.mxu0 0
    %1312 = vmatpush2.bf16.msra.mxu0 0
    %1313 = vmatprep.subr.bf16.mxu0 0
    %1314 = vmatpush2.bf16.msra.mxu0 0
    %1315 = vmatprep.mubr.bf16.mxu0 0
    %1316 = vmatmul.mubr.bf16.gmra.mxu0 %v1090
    %v1317 = vpop.f32.mrf.mxu0
    %v1318 = vadd.f32 0.0, %v1317
    %v1319 = vpop.f32.mrf.mxu0
    %v1320 = vadd.f32 0.0, %v1319
    %v1321 = vpop.f32.mrf.mxu0
    %v1322 = vpop.f32.mrf.mxu0
    %1323 = vdwg.mxu0
    %1324 = vmatprep.subr.bf16.mxu0 %v1250
    %1325 = vmatpush1.bf16.msra.mxu0 %v1249
    %1326 = vmatprep.subr.bf16.mxu0 %v1246
    %1327 = vmatpush1.bf16.msra.mxu0 %v1245
    %1328 = vmatprep.subr.bf16.mxu0 %v1242
    %1329 = vmatpush1.bf16.msra.mxu0 %v1241
    %1330 = vmatprep.subr.bf16.mxu0 %v1238
    %1331 = vmatpush1.bf16.msra.mxu0 %v1237
    %1332 = vmatprep.subr.bf16.mxu0 %v1234
    %1333 = vmatpush1.bf16.msra.mxu0 %v1233
    %1334 = vmatprep.subr.bf16.mxu0 %v1230
    %1335 = vmatpush1.bf16.msra.mxu0 %v1229
    %1336 = vmatprep.subr.bf16.mxu0 %v1226
    %1337 = vmatpush1.bf16.msra.mxu0 %v1225
    %1338 = vmatprep.subr.bf16.mxu0 %v1222
    %1339 = vmatpush1.bf16.msra.mxu0 %v1221
    %1340 = vmatprep.subr.bf16.mxu0 0
    %1341 = vmatpush2.bf16.msra.mxu0 0
    %1342 = vmatprep.subr.bf16.mxu0 0
    %1343 = vmatpush2.bf16.msra.mxu0 0
    %1344 = vmatprep.subr.bf16.mxu0 0
    %1345 = vmatpush2.bf16.msra.mxu0 0
    %1346 = vmatprep.subr.bf16.mxu0 0
    %1347 = vmatpush2.bf16.msra.mxu0 0
    %1348 = vmatprep.subr.bf16.mxu0 0
    %1349 = vmatpush2.bf16.msra.mxu0 0
    %1350 = vmatprep.subr.bf16.mxu0 0
    %1351 = vmatpush2.bf16.msra.mxu0 0
    %1352 = vmatprep.subr.bf16.mxu0 0
    %1353 = vmatpush2.bf16.msra.mxu0 0
    %1354 = vmatprep.subr.bf16.mxu0 0
    %1355 = vmatpush2.bf16.msra.mxu0 0
    %1356 = vmatprep.mubr.bf16.mxu0 0
    %1357 = vmatmul.mubr.bf16.gmra.mxu0 %v1090
    %v1358 = vpop.f32.mrf.mxu0
    %v1359 = vadd.f32 0.0, %v1358
    %v1360 = vpop.f32.mrf.mxu0
    %v1361 = vadd.f32 0.0, %v1360
    %v1362 = vpop.f32.mrf.mxu0
    %v1363 = vpop.f32.mrf.mxu0
    %1364 = vdwg.mxu0
    %v1369 = vcombine.low %v1318, %v1320
    %v1370 = vcombine.low %v1359, %v1361
    %v1372 = vunpack.c.l.s4 1983009808
    %v1373 = vunpack.c.0.s8 %v1372
    %v1374 = vlaneseq
    %v1375 = vshrl.u32 %v1374, 7
    %v1376 = vsub.s32 %v1373, %v1375
    %v1377 = vrot.slane %v1369, %v1376
    %v1379 = vunpack.c.l.s4 1983009808
    %v1380 = vunpack.c.0.s8 %v1379
    %v1381 = vlaneseq
    %v1382 = vshrl.u32 %v1381, 7
    %v1383 = vsub.s32 %v1380, %v1382
    %v1384 = vrot.slane %v1370, %v1383
    %v1385 = vcombine.low %v1377, %v1384
    %v1387 = vadd.f32 %v1088, %v1385
    %v1388 = vxor.u32 %v1387, 2147483648
    %v1389 = vmul.f32 %v1388, 1.442695
    %v1390 = vpow.pop %v1389
    %v1391 = vadd.f32 %v1390, 1.0
    %v1392 = vrcp.pop %v1391
    %v1393 = vmul.f32 1.0, %v1392
    %v1395 = vrot.slane %v1387, 2
    %v1397 = vxor.u32 %v1395, 2147483648
    %v1398 = vmul.f32 %v1397, 1.442695
    %v1399 = vpow.pop %v1398
    %v1400 = vadd.f32 %v1399, 1.0
    %v1401 = vrcp.pop %v1400
    %v1402 = vmul.f32 1.0, %v1401
    %v1403 = vrot.slane %v1387, 4
    %v1405 = vtanh.pop %v1403
    %v1406 = vrot.slane %v1387, 6
    %v1408 = vxor.u32 %v1406, 2147483648
    %v1409 = vmul.f32 %v1408, 1.442695
    %v1410 = vpow.pop %v1409
    %v1411 = vadd.f32 %v1410, 1.0
    %v1412 = vrcp.pop %v1411
    %v1413 = vmul.f32 1.0, %v1412
    %v1414 = vld [vmem:[#allocation3] sm:$0x3]
    %v1415 = vmul.f32 %v1402, %v1414
    %v1416 = vmul.f32 %v1393, %v1405
    %v1417 = vadd.f32 %v1415, %v1416
    %v1418 = vtanh.pop %v1417
    %v1419 = vmul.f32 %v1413, %v1418
    %s1420 = scalar_lea.vmem %s1, 6
    %v1421 = vld [vmem:[%s1420] sm:$0x3]
    %1423 = vset.pattern.permute.xlu0 0
    %1424 = vperm.xlu0 %1423, %v1421
    %v1425 = vpop.permute.xlu0 %1424
    %v1427 = vmul.f32 %v1425, %v1417
    %v1428 = vsub.f32 1.0, %v1421
    %1430 = vset.pattern.permute.xlu0 0
    %1431 = vperm.xlu0 %1430, %v1428
    %v1432 = vpop.permute.xlu0 %1431
    %v1434 = vmul.f32 %v1432, %v1414
    %v1435 = vadd.f32 %v1427, %v1434
    %1436 = vst [vmem:[#allocation3] sm:$0x3] %v1435
    %v1437 = vmul.f32 %v1425, %v1419
    %v1438 = vld [vmem:[#allocation2] sm:$0x3]
    %v1439 = vmul.f32 %v1432, %v1438
    %v1440 = vadd.f32 %v1437, %v1439
    %1441 = vst [vmem:[#allocation2] sm:$0x3] %v1440
    %s1442 = scalar_lea.vmem %s0, 32
    %v1443 = vld [vmem:[%s1442] sm:$0xff]
    %v1444 = vld [vmem:[#allocation2] sm:$0x3]
    %v1445 = vpack.c.bf16 %v1444, %v1444
    %v1446 = vld [vmem:[%s2] sm:$0xff]
    %v1447 = vld [vmem:[%s2 + $0x8] sm:$0xff]
    %v1448 = vld [vmem:[%s2 + $0x10] sm:$0xff]
    %v1449 = vld [vmem:[%s2 + $0x18] sm:$0xff]
    %v1450 = vld [vmem:[%s2 + $0x20] sm:$0xff]
    %v1451 = vld [vmem:[%s2 + $0x28] sm:$0xff]
    %v1452 = vld [vmem:[%s2 + $0x30] sm:$0xff]
    %v1453 = vld [vmem:[%s2 + $0x38] sm:$0xff]
    %v1454 = vld [vmem:[%s2 + $0x40] sm:$0xff]
    %v1455 = vld [vmem:[%s2 + $0x48] sm:$0xff]
    %v1456 = vld [vmem:[%s2 + $0x50] sm:$0xff]
    %v1457 = vld [vmem:[%s2 + $0x58] sm:$0xff]
    %v1458 = vld [vmem:[%s2 + $0x60] sm:$0xff]
    %v1459 = vld [vmem:[%s2 + $0x68] sm:$0xff]
    %v1460 = vld [vmem:[%s2 + $0x70] sm:$0xff]
    %v1461 = vld [vmem:[%s2 + $0x78] sm:$0xff]
    %v1462 = vld [vmem:[%s2 + $0x80] sm:$0xff]
    %v1463 = vld [vmem:[%s2 + $0x88] sm:$0xff]
    %v1464 = vld [vmem:[%s2 + $0x90] sm:$0xff]
    %v1465 = vld [vmem:[%s2 + $0x98] sm:$0xff]
    %v1466 = vld [vmem:[%s2 + $0xa0] sm:$0xff]
    %v1467 = vld [vmem:[%s2 + $0xa8] sm:$0xff]
    %v1468 = vld [vmem:[%s2 + $0xb0] sm:$0xff]
    %v1469 = vld [vmem:[%s2 + $0xb8] sm:$0xff]
    %v1470 = vld [vmem:[%s2 + $0xc0] sm:$0xff]
    %v1471 = vld [vmem:[%s2 + $0xc8] sm:$0xff]
    %v1472 = vld [vmem:[%s2 + $0xd0] sm:$0xff]
    %v1473 = vld [vmem:[%s2 + $0xd8] sm:$0xff]
    %v1474 = vld [vmem:[%s2 + $0xe0] sm:$0xff]
    %v1475 = vld [vmem:[%s2 + $0xe8] sm:$0xff]
    %v1476 = vld [vmem:[%s2 + $0xf0] sm:$0xff]
    %v1477 = vld [vmem:[%s2 + $0xf8] sm:$0xff]
    %v1510 = vunpack.c.l.b16 %v1446
    %v1511 = vunpack.c.h.b16 %v1446
    %v1512 = vunpack.c.l.b16 %v1447
    %v1513 = vunpack.c.h.b16 %v1447
    %v1514 = vunpack.c.l.b16 %v1448
    %v1515 = vunpack.c.h.b16 %v1448
    %v1516 = vunpack.c.l.b16 %v1449
    %v1517 = vunpack.c.h.b16 %v1449
    %v1518 = vunpack.c.l.b16 %v1450
    %v1519 = vunpack.c.h.b16 %v1450
    %v1520 = vunpack.c.l.b16 %v1451
    %v1521 = vunpack.c.h.b16 %v1451
    %v1522 = vunpack.c.l.b16 %v1452
    %v1523 = vunpack.c.h.b16 %v1452
    %v1524 = vunpack.c.l.b16 %v1453
    %v1525 = vunpack.c.h.b16 %v1453
    %v1526 = vunpack.c.l.b16 %v1454
    %v1527 = vunpack.c.h.b16 %v1454
    %v1528 = vunpack.c.l.b16 %v1455
    %v1529 = vunpack.c.h.b16 %v1455
    %v1530 = vunpack.c.l.b16 %v1456
    %v1531 = vunpack.c.h.b16 %v1456
    %v1532 = vunpack.c.l.b16 %v1457
    %v1533 = vunpack.c.h.b16 %v1457
    %v1534 = vunpack.c.l.b16 %v1458
    %v1535 = vunpack.c.h.b16 %v1458
    %v1536 = vunpack.c.l.b16 %v1459
    %v1537 = vunpack.c.h.b16 %v1459
    %v1538 = vunpack.c.l.b16 %v1460
    %v1539 = vunpack.c.h.b16 %v1460
    %v1540 = vunpack.c.l.b16 %v1461
    %v1541 = vunpack.c.h.b16 %v1461
    %v1542 = vunpack.c.l.b16 %v1462
    %v1543 = vunpack.c.h.b16 %v1462
    %v1544 = vunpack.c.l.b16 %v1463
    %v1545 = vunpack.c.h.b16 %v1463
    %v1546 = vunpack.c.l.b16 %v1464
    %v1547 = vunpack.c.h.b16 %v1464
    %v1548 = vunpack.c.l.b16 %v1465
    %v1549 = vunpack.c.h.b16 %v1465
    %v1550 = vunpack.c.l.b16 %v1466
    %v1551 = vunpack.c.h.b16 %v1466
    %v1552 = vunpack.c.l.b16 %v1467
    %v1553 = vunpack.c.h.b16 %v1467
    %v1554 = vunpack.c.l.b16 %v1468
    %v1555 = vunpack.c.h.b16 %v1468
    %v1556 = vunpack.c.l.b16 %v1469
    %v1557 = vunpack.c.h.b16 %v1469
    %v1558 = vunpack.c.l.b16 %v1470
    %v1559 = vunpack.c.h.b16 %v1470
    %v1560 = vunpack.c.l.b16 %v1471
    %v1561 = vunpack.c.h.b16 %v1471
    %v1562 = vunpack.c.l.b16 %v1472
    %v1563 = vunpack.c.h.b16 %v1472
    %v1564 = vunpack.c.l.b16 %v1473
    %v1565 = vunpack.c.h.b16 %v1473
    %v1566 = vunpack.c.l.b16 %v1474
    %v1567 = vunpack.c.h.b16 %v1474
    %v1568 = vunpack.c.l.b16 %v1475
    %v1569 = vunpack.c.h.b16 %v1475
    %v1570 = vunpack.c.l.b16 %v1476
    %v1571 = vunpack.c.h.b16 %v1476
    %v1572 = vunpack.c.l.b16 %v1477
    %v1573 = vunpack.c.h.b16 %v1477
    %v1574 = vpack.c.b16 %v1514, %v1510
    %v1575 = vpack.c.b16 %v1515, %v1511
    %v1576 = vpack.c.b16 %v1516, %v1512
    %v1577 = vpack.c.b16 %v1517, %v1513
    %v1578 = vpack.c.b16 %v1522, %v1518
    %v1579 = vpack.c.b16 %v1523, %v1519
    %v1580 = vpack.c.b16 %v1524, %v1520
    %v1581 = vpack.c.b16 %v1525, %v1521
    %v1582 = vpack.c.b16 %v1530, %v1526
    %v1583 = vpack.c.b16 %v1531, %v1527
    %v1584 = vpack.c.b16 %v1532, %v1528
    %v1585 = vpack.c.b16 %v1533, %v1529
    %v1586 = vpack.c.b16 %v1538, %v1534
    %v1587 = vpack.c.b16 %v1539, %v1535
    %v1588 = vpack.c.b16 %v1540, %v1536
    %v1589 = vpack.c.b16 %v1541, %v1537
    %v1590 = vpack.c.b16 %v1546, %v1542
    %v1591 = vpack.c.b16 %v1547, %v1543
    %v1592 = vpack.c.b16 %v1548, %v1544
    %v1593 = vpack.c.b16 %v1549, %v1545
    %v1594 = vpack.c.b16 %v1554, %v1550
    %v1595 = vpack.c.b16 %v1555, %v1551
    %v1596 = vpack.c.b16 %v1556, %v1552
    %v1597 = vpack.c.b16 %v1557, %v1553
    %v1598 = vpack.c.b16 %v1562, %v1558
    %v1599 = vpack.c.b16 %v1563, %v1559
    %v1600 = vpack.c.b16 %v1564, %v1560
    %v1601 = vpack.c.b16 %v1565, %v1561
    %v1602 = vpack.c.b16 %v1570, %v1566
    %v1603 = vpack.c.b16 %v1571, %v1567
    %v1604 = vpack.c.b16 %v1572, %v1568
    %v1605 = vpack.c.b16 %v1573, %v1569
    %1638 = vmatprep.subr.bf16.mxu0 %v1603
    %1639 = vmatpush1.bf16.msra.mxu0 %v1602
    %1640 = vmatprep.subr.bf16.mxu0 %v1599
    %1641 = vmatpush1.bf16.msra.mxu0 %v1598
    %1642 = vmatprep.subr.bf16.mxu0 %v1595
    %1643 = vmatpush1.bf16.msra.mxu0 %v1594
    %1644 = vmatprep.subr.bf16.mxu0 %v1591
    %1645 = vmatpush1.bf16.msra.mxu0 %v1590
    %1646 = vmatprep.subr.bf16.mxu0 %v1587
    %1647 = vmatpush1.bf16.msra.mxu0 %v1586
    %1648 = vmatprep.subr.bf16.mxu0 %v1583
    %1649 = vmatpush1.bf16.msra.mxu0 %v1582
    %1650 = vmatprep.subr.bf16.mxu0 %v1579
    %1651 = vmatpush1.bf16.msra.mxu0 %v1578
    %1652 = vmatprep.subr.bf16.mxu0 %v1575
    %1653 = vmatpush1.bf16.msra.mxu0 %v1574
    %1654 = vmatprep.subr.bf16.mxu0 0
    %1655 = vmatpush2.bf16.msra.mxu0 0
    %1656 = vmatprep.subr.bf16.mxu0 0
    %1657 = vmatpush2.bf16.msra.mxu0 0
    %1658 = vmatprep.subr.bf16.mxu0 0
    %1659 = vmatpush2.bf16.msra.mxu0 0
    %1660 = vmatprep.subr.bf16.mxu0 0
    %1661 = vmatpush2.bf16.msra.mxu0 0
    %1662 = vmatprep.subr.bf16.mxu0 0
    %1663 = vmatpush2.bf16.msra.mxu0 0
    %1664 = vmatprep.subr.bf16.mxu0 0
    %1665 = vmatpush2.bf16.msra.mxu0 0
    %1666 = vmatprep.subr.bf16.mxu0 0
    %1667 = vmatpush2.bf16.msra.mxu0 0
    %1668 = vmatprep.subr.bf16.mxu0 0
    %1669 = vmatpush2.bf16.msra.mxu0 0
    %1670 = vmatprep.mubr.bf16.mxu0 0
    %1671 = vmatmul.mubr.bf16.gmra.mxu0 %v1445
    %v1672 = vpop.f32.mrf.mxu0
    %v1673 = vadd.f32 0.0, %v1672
    %v1674 = vpop.f32.mrf.mxu0
    %v1675 = vadd.f32 0.0, %v1674
    %v1676 = vpop.f32.mrf.mxu0
    %v1677 = vpop.f32.mrf.mxu0
    %1678 = vdwg.mxu0
    %1679 = vmatprep.subr.bf16.mxu0 %v1605
    %1680 = vmatpush1.bf16.msra.mxu0 %v1604
    %1681 = vmatprep.subr.bf16.mxu0 %v1601
    %1682 = vmatpush1.bf16.msra.mxu0 %v1600
    %1683 = vmatprep.subr.bf16.mxu0 %v1597
    %1684 = vmatpush1.bf16.msra.mxu0 %v1596
    %1685 = vmatprep.subr.bf16.mxu0 %v1593
    %1686 = vmatpush1.bf16.msra.mxu0 %v1592
    %1687 = vmatprep.subr.bf16.mxu0 %v1589
    %1688 = vmatpush1.bf16.msra.mxu0 %v1588
    %1689 = vmatprep.subr.bf16.mxu0 %v1585
    %1690 = vmatpush1.bf16.msra.mxu0 %v1584
    %1691 = vmatprep.subr.bf16.mxu0 %v1581
    %1692 = vmatpush1.bf16.msra.mxu0 %v1580
    %1693 = vmatprep.subr.bf16.mxu0 %v1577
    %1694 = vmatpush1.bf16.msra.mxu0 %v1576
    %1695 = vmatprep.subr.bf16.mxu0 0
    %1696 = vmatpush2.bf16.msra.mxu0 0
    %1697 = vmatprep.subr.bf16.mxu0 0
    %1698 = vmatpush2.bf16.msra.mxu0 0
    %1699 = vmatprep.subr.bf16.mxu0 0
    %1700 = vmatpush2.bf16.msra.mxu0 0
    %1701 = vmatprep.subr.bf16.mxu0 0
    %1702 = vmatpush2.bf16.msra.mxu0 0
    %1703 = vmatprep.subr.bf16.mxu0 0
    %1704 = vmatpush2.bf16.msra.mxu0 0
    %1705 = vmatprep.subr.bf16.mxu0 0
    %1706 = vmatpush2.bf16.msra.mxu0 0
    %1707 = vmatprep.subr.bf16.mxu0 0
    %1708 = vmatpush2.bf16.msra.mxu0 0
    %1709 = vmatprep.subr.bf16.mxu0 0
    %1710 = vmatpush2.bf16.msra.mxu0 0
    %1711 = vmatprep.mubr.bf16.mxu0 0
    %1712 = vmatmul.mubr.bf16.gmra.mxu0 %v1445
    %v1713 = vpop.f32.mrf.mxu0
    %v1714 = vadd.f32 0.0, %v1713
    %v1715 = vpop.f32.mrf.mxu0
    %v1716 = vadd.f32 0.0, %v1715
    %v1717 = vpop.f32.mrf.mxu0
    %v1718 = vpop.f32.mrf.mxu0
    %1719 = vdwg.mxu0
    %v1724 = vcombine.low %v1673, %v1675
    %v1725 = vcombine.low %v1714, %v1716
    %v1727 = vunpack.c.l.s4 1983009808
    %v1728 = vunpack.c.0.s8 %v1727
    %v1729 = vlaneseq
    %v1730 = vshrl.u32 %v1729, 7
    %v1731 = vsub.s32 %v1728, %v1730
    %v1732 = vrot.slane %v1724, %v1731
    %v1734 = vunpack.c.l.s4 1983009808
    %v1735 = vunpack.c.0.s8 %v1734
    %v1736 = vlaneseq
    %v1737 = vshrl.u32 %v1736, 7
    %v1738 = vsub.s32 %v1735, %v1737
    %v1739 = vrot.slane %v1725, %v1738
    %v1740 = vcombine.low %v1732, %v1739
    %v1742 = vadd.f32 %v1443, %v1740
    %v1743 = vxor.u32 %v1742, 2147483648
    %v1744 = vmul.f32 %v1743, 1.442695
    %v1745 = vpow.pop %v1744
    %v1746 = vadd.f32 %v1745, 1.0
    %v1747 = vrcp.pop %v1746
    %v1748 = vmul.f32 1.0, %v1747
    %v1750 = vrot.slane %v1742, 2
    %v1752 = vxor.u32 %v1750, 2147483648
    %v1753 = vmul.f32 %v1752, 1.442695
    %v1754 = vpow.pop %v1753
    %v1755 = vadd.f32 %v1754, 1.0
    %v1756 = vrcp.pop %v1755
    %v1757 = vmul.f32 1.0, %v1756
    %v1758 = vrot.slane %v1742, 4
    %v1760 = vtanh.pop %v1758
    %v1761 = vrot.slane %v1742, 6
    %v1763 = vxor.u32 %v1761, 2147483648
    %v1764 = vmul.f32 %v1763, 1.442695
    %v1765 = vpow.pop %v1764
    %v1766 = vadd.f32 %v1765, 1.0
    %v1767 = vrcp.pop %v1766
    %v1768 = vmul.f32 1.0, %v1767
    %v1769 = vld [vmem:[#allocation3] sm:$0x3]
    %v1770 = vmul.f32 %v1757, %v1769
    %v1771 = vmul.f32 %v1748, %v1760
    %v1772 = vadd.f32 %v1770, %v1771
    %v1773 = vtanh.pop %v1772
    %v1774 = vmul.f32 %v1768, %v1773
    %s1775 = scalar_lea.vmem %s1, 8
    %v1776 = vld [vmem:[%s1775] sm:$0x3]
    %1778 = vset.pattern.permute.xlu0 0
    %1779 = vperm.xlu0 %1778, %v1776
    %v1780 = vpop.permute.xlu0 %1779
    %v1782 = vmul.f32 %v1780, %v1772
    %v1783 = vsub.f32 1.0, %v1776
    %1785 = vset.pattern.permute.xlu0 0
    %1786 = vperm.xlu0 %1785, %v1783
    %v1787 = vpop.permute.xlu0 %1786
    %v1789 = vmul.f32 %v1787, %v1769
    %v1790 = vadd.f32 %v1782, %v1789
    %1791 = vst [vmem:[#allocation3] sm:$0x3] %v1790
    %v1792 = vmul.f32 %v1780, %v1774
    %v1793 = vld [vmem:[#allocation2] sm:$0x3]
    %v1794 = vmul.f32 %v1787, %v1793
    %v1795 = vadd.f32 %v1792, %v1794
    %1796 = vst [vmem:[#allocation2] sm:$0x3] %v1795
    %s1797 = scalar_lea.vmem %s0, 40
    %v1798 = vld [vmem:[%s1797] sm:$0xff]
    %v1799 = vld [vmem:[#allocation2] sm:$0x3]
    %v1800 = vpack.c.bf16 %v1799, %v1799
    %v1801 = vld [vmem:[%s2] sm:$0xff]
    %v1802 = vld [vmem:[%s2 + $0x8] sm:$0xff]
    %v1803 = vld [vmem:[%s2 + $0x10] sm:$0xff]
    %v1804 = vld [vmem:[%s2 + $0x18] sm:$0xff]
    %v1805 = vld [vmem:[%s2 + $0x20] sm:$0xff]
    %v1806 = vld [vmem:[%s2 + $0x28] sm:$0xff]
    %v1807 = vld [vmem:[%s2 + $0x30] sm:$0xff]
    %v1808 = vld [vmem:[%s2 + $0x38] sm:$0xff]
    %v1809 = vld [vmem:[%s2 + $0x40] sm:$0xff]
    %v1810 = vld [vmem:[%s2 + $0x48] sm:$0xff]
    %v1811 = vld [vmem:[%s2 + $0x50] sm:$0xff]
    %v1812 = vld [vmem:[%s2 + $0x58] sm:$0xff]
    %v1813 = vld [vmem:[%s2 + $0x60] sm:$0xff]
    %v1814 = vld [vmem:[%s2 + $0x68] sm:$0xff]
    %v1815 = vld [vmem:[%s2 + $0x70] sm:$0xff]
    %v1816 = vld [vmem:[%s2 + $0x78] sm:$0xff]
    %v1817 = vld [vmem:[%s2 + $0x80] sm:$0xff]
    %v1818 = vld [vmem:[%s2 + $0x88] sm:$0xff]
    %v1819 = vld [vmem:[%s2 + $0x90] sm:$0xff]
    %v1820 = vld [vmem:[%s2 + $0x98] sm:$0xff]
    %v1821 = vld [vmem:[%s2 + $0xa0] sm:$0xff]
    %v1822 = vld [vmem:[%s2 + $0xa8] sm:$0xff]
    %v1823 = vld [vmem:[%s2 + $0xb0] sm:$0xff]
    %v1824 = vld [vmem:[%s2 + $0xb8] sm:$0xff]
    %v1825 = vld [vmem:[%s2 + $0xc0] sm:$0xff]
    %v1826 = vld [vmem:[%s2 + $0xc8] sm:$0xff]
    %v1827 = vld [vmem:[%s2 + $0xd0] sm:$0xff]
    %v1828 = vld [vmem:[%s2 + $0xd8] sm:$0xff]
    %v1829 = vld [vmem:[%s2 + $0xe0] sm:$0xff]
    %v1830 = vld [vmem:[%s2 + $0xe8] sm:$0xff]
    %v1831 = vld [vmem:[%s2 + $0xf0] sm:$0xff]
    %v1832 = vld [vmem:[%s2 + $0xf8] sm:$0xff]
    %v1865 = vunpack.c.l.b16 %v1801
    %v1866 = vunpack.c.h.b16 %v1801
    %v1867 = vunpack.c.l.b16 %v1802
    %v1868 = vunpack.c.h.b16 %v1802
    %v1869 = vunpack.c.l.b16 %v1803
    %v1870 = vunpack.c.h.b16 %v1803
    %v1871 = vunpack.c.l.b16 %v1804
    %v1872 = vunpack.c.h.b16 %v1804
    %v1873 = vunpack.c.l.b16 %v1805
    %v1874 = vunpack.c.h.b16 %v1805
    %v1875 = vunpack.c.l.b16 %v1806
    %v1876 = vunpack.c.h.b16 %v1806
    %v1877 = vunpack.c.l.b16 %v1807
    %v1878 = vunpack.c.h.b16 %v1807
    %v1879 = vunpack.c.l.b16 %v1808
    %v1880 = vunpack.c.h.b16 %v1808
    %v1881 = vunpack.c.l.b16 %v1809
    %v1882 = vunpack.c.h.b16 %v1809
    %v1883 = vunpack.c.l.b16 %v1810
    %v1884 = vunpack.c.h.b16 %v1810
    %v1885 = vunpack.c.l.b16 %v1811
    %v1886 = vunpack.c.h.b16 %v1811
    %v1887 = vunpack.c.l.b16 %v1812
    %v1888 = vunpack.c.h.b16 %v1812
    %v1889 = vunpack.c.l.b16 %v1813
    %v1890 = vunpack.c.h.b16 %v1813
    %v1891 = vunpack.c.l.b16 %v1814
    %v1892 = vunpack.c.h.b16 %v1814
    %v1893 = vunpack.c.l.b16 %v1815
    %v1894 = vunpack.c.h.b16 %v1815
    %v1895 = vunpack.c.l.b16 %v1816
    %v1896 = vunpack.c.h.b16 %v1816
    %v1897 = vunpack.c.l.b16 %v1817
    %v1898 = vunpack.c.h.b16 %v1817
    %v1899 = vunpack.c.l.b16 %v1818
    %v1900 = vunpack.c.h.b16 %v1818
    %v1901 = vunpack.c.l.b16 %v1819
    %v1902 = vunpack.c.h.b16 %v1819
    %v1903 = vunpack.c.l.b16 %v1820
    %v1904 = vunpack.c.h.b16 %v1820
    %v1905 = vunpack.c.l.b16 %v1821
    %v1906 = vunpack.c.h.b16 %v1821
    %v1907 = vunpack.c.l.b16 %v1822
    %v1908 = vunpack.c.h.b16 %v1822
    %v1909 = vunpack.c.l.b16 %v1823
    %v1910 = vunpack.c.h.b16 %v1823
    %v1911 = vunpack.c.l.b16 %v1824
    %v1912 = vunpack.c.h.b16 %v1824
    %v1913 = vunpack.c.l.b16 %v1825
    %v1914 = vunpack.c.h.b16 %v1825
    %v1915 = vunpack.c.l.b16 %v1826
    %v1916 = vunpack.c.h.b16 %v1826
    %v1917 = vunpack.c.l.b16 %v1827
    %v1918 = vunpack.c.h.b16 %v1827
    %v1919 = vunpack.c.l.b16 %v1828
    %v1920 = vunpack.c.h.b16 %v1828
    %v1921 = vunpack.c.l.b16 %v1829
    %v1922 = vunpack.c.h.b16 %v1829
    %v1923 = vunpack.c.l.b16 %v1830
    %v1924 = vunpack.c.h.b16 %v1830
    %v1925 = vunpack.c.l.b16 %v1831
    %v1926 = vunpack.c.h.b16 %v1831
    %v1927 = vunpack.c.l.b16 %v1832
    %v1928 = vunpack.c.h.b16 %v1832
    %v1929 = vpack.c.b16 %v1869, %v1865
    %v1930 = vpack.c.b16 %v1870, %v1866
    %v1931 = vpack.c.b16 %v1871, %v1867
    %v1932 = vpack.c.b16 %v1872, %v1868
    %v1933 = vpack.c.b16 %v1877, %v1873
    %v1934 = vpack.c.b16 %v1878, %v1874
    %v1935 = vpack.c.b16 %v1879, %v1875
    %v1936 = vpack.c.b16 %v1880, %v1876
    %v1937 = vpack.c.b16 %v1885, %v1881
    %v1938 = vpack.c.b16 %v1886, %v1882
    %v1939 = vpack.c.b16 %v1887, %v1883
    %v1940 = vpack.c.b16 %v1888, %v1884
    %v1941 = vpack.c.b16 %v1893, %v1889
    %v1942 = vpack.c.b16 %v1894, %v1890
    %v1943 = vpack.c.b16 %v1895, %v1891
    %v1944 = vpack.c.b16 %v1896, %v1892
    %v1945 = vpack.c.b16 %v1901, %v1897
    %v1946 = vpack.c.b16 %v1902, %v1898
    %v1947 = vpack.c.b16 %v1903, %v1899
    %v1948 = vpack.c.b16 %v1904, %v1900
    %v1949 = vpack.c.b16 %v1909, %v1905
    %v1950 = vpack.c.b16 %v1910, %v1906
    %v1951 = vpack.c.b16 %v1911, %v1907
    %v1952 = vpack.c.b16 %v1912, %v1908
    %v1953 = vpack.c.b16 %v1917, %v1913
    %v1954 = vpack.c.b16 %v1918, %v1914
    %v1955 = vpack.c.b16 %v1919, %v1915
    %v1956 = vpack.c.b16 %v1920, %v1916
    %v1957 = vpack.c.b16 %v1925, %v1921
    %v1958 = vpack.c.b16 %v1926, %v1922
    %v1959 = vpack.c.b16 %v1927, %v1923
    %v1960 = vpack.c.b16 %v1928, %v1924
    %1993 = vmatprep.subr.bf16.mxu0 %v1958
    %1994 = vmatpush1.bf16.msra.mxu0 %v1957
    %1995 = vmatprep.subr.bf16.mxu0 %v1954
    %1996 = vmatpush1.bf16.msra.mxu0 %v1953
    %1997 = vmatprep.subr.bf16.mxu0 %v1950
    %1998 = vmatpush1.bf16.msra.mxu0 %v1949
    %1999 = vmatprep.subr.bf16.mxu0 %v1946
    %2000 = vmatpush1.bf16.msra.mxu0 %v1945
    %2001 = vmatprep.subr.bf16.mxu0 %v1942
    %2002 = vmatpush1.bf16.msra.mxu0 %v1941
    %2003 = vmatprep.subr.bf16.mxu0 %v1938
    %2004 = vmatpush1.bf16.msra.mxu0 %v1937
    %2005 = vmatprep.subr.bf16.mxu0 %v1934
    %2006 = vmatpush1.bf16.msra.mxu0 %v1933
    %2007 = vmatprep.subr.bf16.mxu0 %v1930
    %2008 = vmatpush1.bf16.msra.mxu0 %v1929
    %2009 = vmatprep.subr.bf16.mxu0 0
    %2010 = vmatpush2.bf16.msra.mxu0 0
    %2011 = vmatprep.subr.bf16.mxu0 0
    %2012 = vmatpush2.bf16.msra.mxu0 0
    %2013 = vmatprep.subr.bf16.mxu0 0
    %2014 = vmatpush2.bf16.msra.mxu0 0
    %2015 = vmatprep.subr.bf16.mxu0 0
    %2016 = vmatpush2.bf16.msra.mxu0 0
    %2017 = vmatprep.subr.bf16.mxu0 0
    %2018 = vmatpush2.bf16.msra.mxu0 0
    %2019 = vmatprep.subr.bf16.mxu0 0
    %2020 = vmatpush2.bf16.msra.mxu0 0
    %2021 = vmatprep.subr.bf16.mxu0 0
    %2022 = vmatpush2.bf16.msra.mxu0 0
    %2023 = vmatprep.subr.bf16.mxu0 0
    %2024 = vmatpush2.bf16.msra.mxu0 0
    %2025 = vmatprep.mubr.bf16.mxu0 0
    %2026 = vmatmul.mubr.bf16.gmra.mxu0 %v1800
    %v2027 = vpop.f32.mrf.mxu0
    %v2028 = vadd.f32 0.0, %v2027
    %v2029 = vpop.f32.mrf.mxu0
    %v2030 = vadd.f32 0.0, %v2029
    %v2031 = vpop.f32.mrf.mxu0
    %v2032 = vpop.f32.mrf.mxu0
    %2033 = vdwg.mxu0
    %2034 = vmatprep.subr.bf16.mxu0 %v1960
    %2035 = vmatpush1.bf16.msra.mxu0 %v1959
    %2036 = vmatprep.subr.bf16.mxu0 %v1956
    %2037 = vmatpush1.bf16.msra.mxu0 %v1955
    %2038 = vmatprep.subr.bf16.mxu0 %v1952
    %2039 = vmatpush1.bf16.msra.mxu0 %v1951
    %2040 = vmatprep.subr.bf16.mxu0 %v1948
    %2041 = vmatpush1.bf16.msra.mxu0 %v1947
    %2042 = vmatprep.subr.bf16.mxu0 %v1944
    %2043 = vmatpush1.bf16.msra.mxu0 %v1943
    %2044 = vmatprep.subr.bf16.mxu0 %v1940
    %2045 = vmatpush1.bf16.msra.mxu0 %v1939
    %2046 = vmatprep.subr.bf16.mxu0 %v1936
    %2047 = vmatpush1.bf16.msra.mxu0 %v1935
    %2048 = vmatprep.subr.bf16.mxu0 %v1932
    %2049 = vmatpush1.bf16.msra.mxu0 %v1931
    %2050 = vmatprep.subr.bf16.mxu0 0
    %2051 = vmatpush2.bf16.msra.mxu0 0
    %2052 = vmatprep.subr.bf16.mxu0 0
    %2053 = vmatpush2.bf16.msra.mxu0 0
    %2054 = vmatprep.subr.bf16.mxu0 0
    %2055 = vmatpush2.bf16.msra.mxu0 0
    %2056 = vmatprep.subr.bf16.mxu0 0
    %2057 = vmatpush2.bf16.msra.mxu0 0
    %2058 = vmatprep.subr.bf16.mxu0 0
    %2059 = vmatpush2.bf16.msra.mxu0 0
    %2060 = vmatprep.subr.bf16.mxu0 0
    %2061 = vmatpush2.bf16.msra.mxu0 0
    %2062 = vmatprep.subr.bf16.mxu0 0
    %2063 = vmatpush2.bf16.msra.mxu0 0
    %2064 = vmatprep.subr.bf16.mxu0 0
    %2065 = vmatpush2.bf16.msra.mxu0 0
    %2066 = vmatprep.mubr.bf16.mxu0 0
    %2067 = vmatmul.mubr.bf16.gmra.mxu0 %v1800
    %v2068 = vpop.f32.mrf.mxu0
    %v2069 = vadd.f32 0.0, %v2068
    %v2070 = vpop.f32.mrf.mxu0
    %v2071 = vadd.f32 0.0, %v2070
    %v2072 = vpop.f32.mrf.mxu0
    %v2073 = vpop.f32.mrf.mxu0
    %2074 = vdwg.mxu0
    %v2079 = vcombine.low %v2028, %v2030
    %v2080 = vcombine.low %v2069, %v2071
    %v2082 = vunpack.c.l.s4 1983009808
    %v2083 = vunpack.c.0.s8 %v2082
    %v2084 = vlaneseq
    %v2085 = vshrl.u32 %v2084, 7
    %v2086 = vsub.s32 %v2083, %v2085
    %v2087 = vrot.slane %v2079, %v2086
    %v2089 = vunpack.c.l.s4 1983009808
    %v2090 = vunpack.c.0.s8 %v2089
    %v2091 = vlaneseq
    %v2092 = vshrl.u32 %v2091, 7
    %v2093 = vsub.s32 %v2090, %v2092
    %v2094 = vrot.slane %v2080, %v2093
    %v2095 = vcombine.low %v2087, %v2094
    %v2097 = vadd.f32 %v1798, %v2095
    %v2098 = vxor.u32 %v2097, 2147483648
    %v2099 = vmul.f32 %v2098, 1.442695
    %v2100 = vpow.pop %v2099
    %v2101 = vadd.f32 %v2100, 1.0
    %v2102 = vrcp.pop %v2101
    %v2103 = vmul.f32 1.0, %v2102
    %v2105 = vrot.slane %v2097, 2
    %v2107 = vxor.u32 %v2105, 2147483648
    %v2108 = vmul.f32 %v2107, 1.442695
    %v2109 = vpow.pop %v2108
    %v2110 = vadd.f32 %v2109, 1.0
    %v2111 = vrcp.pop %v2110
    %v2112 = vmul.f32 1.0, %v2111
    %v2113 = vrot.slane %v2097, 4
    %v2115 = vtanh.pop %v2113
    %v2116 = vrot.slane %v2097, 6
    %v2118 = vxor.u32 %v2116, 2147483648
    %v2119 = vmul.f32 %v2118, 1.442695
    %v2120 = vpow.pop %v2119
    %v2121 = vadd.f32 %v2120, 1.0
    %v2122 = vrcp.pop %v2121
    %v2123 = vmul.f32 1.0, %v2122
    %v2124 = vld [vmem:[#allocation3] sm:$0x3]
    %v2125 = vmul.f32 %v2112, %v2124
    %v2126 = vmul.f32 %v2103, %v2115
    %v2127 = vadd.f32 %v2125, %v2126
    %v2128 = vtanh.pop %v2127
    %v2129 = vmul.f32 %v2123, %v2128
    %s2130 = scalar_lea.vmem %s1, 10
    %v2131 = vld [vmem:[%s2130] sm:$0x3]
    %2133 = vset.pattern.permute.xlu0 0
    %2134 = vperm.xlu0 %2133, %v2131
    %v2135 = vpop.permute.xlu0 %2134
    %v2137 = vmul.f32 %v2135, %v2127
    %v2138 = vsub.f32 1.0, %v2131
    %2140 = vset.pattern.permute.xlu0 0
    %2141 = vperm.xlu0 %2140, %v2138
    %v2142 = vpop.permute.xlu0 %2141
    %v2144 = vmul.f32 %v2142, %v2124
    %v2145 = vadd.f32 %v2137, %v2144
    %2146 = vst [vmem:[#allocation3] sm:$0x3] %v2145
    %v2147 = vmul.f32 %v2135, %v2129
    %v2148 = vld [vmem:[#allocation2] sm:$0x3]
    %v2149 = vmul.f32 %v2142, %v2148
    %v2150 = vadd.f32 %v2147, %v2149
    %2151 = vst [vmem:[#allocation2] sm:$0x3] %v2150
    %s2152 = scalar_lea.vmem %s0, 48
    %v2153 = vld [vmem:[%s2152] sm:$0xff]
    %v2154 = vld [vmem:[#allocation2] sm:$0x3]
    %v2155 = vpack.c.bf16 %v2154, %v2154
    %v2156 = vld [vmem:[%s2] sm:$0xff]
    %v2157 = vld [vmem:[%s2 + $0x8] sm:$0xff]
    %v2158 = vld [vmem:[%s2 + $0x10] sm:$0xff]
    %v2159 = vld [vmem:[%s2 + $0x18] sm:$0xff]
    %v2160 = vld [vmem:[%s2 + $0x20] sm:$0xff]
    %v2161 = vld [vmem:[%s2 + $0x28] sm:$0xff]
    %v2162 = vld [vmem:[%s2 + $0x30] sm:$0xff]
    %v2163 = vld [vmem:[%s2 + $0x38] sm:$0xff]
    %v2164 = vld [vmem:[%s2 + $0x40] sm:$0xff]
    %v2165 = vld [vmem:[%s2 + $0x48] sm:$0xff]
    %v2166 = vld [vmem:[%s2 + $0x50] sm:$0xff]
    %v2167 = vld [vmem:[%s2 + $0x58] sm:$0xff]
    %v2168 = vld [vmem:[%s2 + $0x60] sm:$0xff]
    %v2169 = vld [vmem:[%s2 + $0x68] sm:$0xff]
    %v2170 = vld [vmem:[%s2 + $0x70] sm:$0xff]
    %v2171 = vld [vmem:[%s2 + $0x78] sm:$0xff]
    %v2172 = vld [vmem:[%s2 + $0x80] sm:$0xff]
    %v2173 = vld [vmem:[%s2 + $0x88] sm:$0xff]
    %v2174 = vld [vmem:[%s2 + $0x90] sm:$0xff]
    %v2175 = vld [vmem:[%s2 + $0x98] sm:$0xff]
    %v2176 = vld [vmem:[%s2 + $0xa0] sm:$0xff]
    %v2177 = vld [vmem:[%s2 + $0xa8] sm:$0xff]
    %v2178 = vld [vmem:[%s2 + $0xb0] sm:$0xff]
    %v2179 = vld [vmem:[%s2 + $0xb8] sm:$0xff]
    %v2180 = vld [vmem:[%s2 + $0xc0] sm:$0xff]
    %v2181 = vld [vmem:[%s2 + $0xc8] sm:$0xff]
    %v2182 = vld [vmem:[%s2 + $0xd0] sm:$0xff]
    %v2183 = vld [vmem:[%s2 + $0xd8] sm:$0xff]
    %v2184 = vld [vmem:[%s2 + $0xe0] sm:$0xff]
    %v2185 = vld [vmem:[%s2 + $0xe8] sm:$0xff]
    %v2186 = vld [vmem:[%s2 + $0xf0] sm:$0xff]
    %v2187 = vld [vmem:[%s2 + $0xf8] sm:$0xff]
    %v2220 = vunpack.c.l.b16 %v2156
    %v2221 = vunpack.c.h.b16 %v2156
    %v2222 = vunpack.c.l.b16 %v2157
    %v2223 = vunpack.c.h.b16 %v2157
    %v2224 = vunpack.c.l.b16 %v2158
    %v2225 = vunpack.c.h.b16 %v2158
    %v2226 = vunpack.c.l.b16 %v2159
    %v2227 = vunpack.c.h.b16 %v2159
    %v2228 = vunpack.c.l.b16 %v2160
    %v2229 = vunpack.c.h.b16 %v2160
    %v2230 = vunpack.c.l.b16 %v2161
    %v2231 = vunpack.c.h.b16 %v2161
    %v2232 = vunpack.c.l.b16 %v2162
    %v2233 = vunpack.c.h.b16 %v2162
    %v2234 = vunpack.c.l.b16 %v2163
    %v2235 = vunpack.c.h.b16 %v2163
    %v2236 = vunpack.c.l.b16 %v2164
    %v2237 = vunpack.c.h.b16 %v2164
    %v2238 = vunpack.c.l.b16 %v2165
    %v2239 = vunpack.c.h.b16 %v2165
    %v2240 = vunpack.c.l.b16 %v2166
    %v2241 = vunpack.c.h.b16 %v2166
    %v2242 = vunpack.c.l.b16 %v2167
    %v2243 = vunpack.c.h.b16 %v2167
    %v2244 = vunpack.c.l.b16 %v2168
    %v2245 = vunpack.c.h.b16 %v2168
    %v2246 = vunpack.c.l.b16 %v2169
    %v2247 = vunpack.c.h.b16 %v2169
    %v2248 = vunpack.c.l.b16 %v2170
    %v2249 = vunpack.c.h.b16 %v2170
    %v2250 = vunpack.c.l.b16 %v2171
    %v2251 = vunpack.c.h.b16 %v2171
    %v2252 = vunpack.c.l.b16 %v2172
    %v2253 = vunpack.c.h.b16 %v2172
    %v2254 = vunpack.c.l.b16 %v2173
    %v2255 = vunpack.c.h.b16 %v2173
    %v2256 = vunpack.c.l.b16 %v2174
    %v2257 = vunpack.c.h.b16 %v2174
    %v2258 = vunpack.c.l.b16 %v2175
    %v2259 = vunpack.c.h.b16 %v2175
    %v2260 = vunpack.c.l.b16 %v2176
    %v2261 = vunpack.c.h.b16 %v2176
    %v2262 = vunpack.c.l.b16 %v2177
    %v2263 = vunpack.c.h.b16 %v2177
    %v2264 = vunpack.c.l.b16 %v2178
    %v2265 = vunpack.c.h.b16 %v2178
    %v2266 = vunpack.c.l.b16 %v2179
    %v2267 = vunpack.c.h.b16 %v2179
    %v2268 = vunpack.c.l.b16 %v2180
    %v2269 = vunpack.c.h.b16 %v2180
    %v2270 = vunpack.c.l.b16 %v2181
    %v2271 = vunpack.c.h.b16 %v2181
    %v2272 = vunpack.c.l.b16 %v2182
    %v2273 = vunpack.c.h.b16 %v2182
    %v2274 = vunpack.c.l.b16 %v2183
    %v2275 = vunpack.c.h.b16 %v2183
    %v2276 = vunpack.c.l.b16 %v2184
    %v2277 = vunpack.c.h.b16 %v2184
    %v2278 = vunpack.c.l.b16 %v2185
    %v2279 = vunpack.c.h.b16 %v2185
    %v2280 = vunpack.c.l.b16 %v2186
    %v2281 = vunpack.c.h.b16 %v2186
    %v2282 = vunpack.c.l.b16 %v2187
    %v2283 = vunpack.c.h.b16 %v2187
    %v2284 = vpack.c.b16 %v2224, %v2220
    %v2285 = vpack.c.b16 %v2225, %v2221
    %v2286 = vpack.c.b16 %v2226, %v2222
    %v2287 = vpack.c.b16 %v2227, %v2223
    %v2288 = vpack.c.b16 %v2232, %v2228
    %v2289 = vpack.c.b16 %v2233, %v2229
    %v2290 = vpack.c.b16 %v2234, %v2230
    %v2291 = vpack.c.b16 %v2235, %v2231
    %v2292 = vpack.c.b16 %v2240, %v2236
    %v2293 = vpack.c.b16 %v2241, %v2237
    %v2294 = vpack.c.b16 %v2242, %v2238
    %v2295 = vpack.c.b16 %v2243, %v2239
    %v2296 = vpack.c.b16 %v2248, %v2244
    %v2297 = vpack.c.b16 %v2249, %v2245
    %v2298 = vpack.c.b16 %v2250, %v2246
    %v2299 = vpack.c.b16 %v2251, %v2247
    %v2300 = vpack.c.b16 %v2256, %v2252
    %v2301 = vpack.c.b16 %v2257, %v2253
    %v2302 = vpack.c.b16 %v2258, %v2254
    %v2303 = vpack.c.b16 %v2259, %v2255
    %v2304 = vpack.c.b16 %v2264, %v2260
    %v2305 = vpack.c.b16 %v2265, %v2261
    %v2306 = vpack.c.b16 %v2266, %v2262
    %v2307 = vpack.c.b16 %v2267, %v2263
    %v2308 = vpack.c.b16 %v2272, %v2268
    %v2309 = vpack.c.b16 %v2273, %v2269
    %v2310 = vpack.c.b16 %v2274, %v2270
    %v2311 = vpack.c.b16 %v2275, %v2271
    %v2312 = vpack.c.b16 %v2280, %v2276
    %v2313 = vpack.c.b16 %v2281, %v2277
    %v2314 = vpack.c.b16 %v2282, %v2278
    %v2315 = vpack.c.b16 %v2283, %v2279
    %2348 = vmatprep.subr.bf16.mxu0 %v2313
    %2349 = vmatpush1.bf16.msra.mxu0 %v2312
    %2350 = vmatprep.subr.bf16.mxu0 %v2309
    %2351 = vmatpush1.bf16.msra.mxu0 %v2308
    %2352 = vmatprep.subr.bf16.mxu0 %v2305
    %2353 = vmatpush1.bf16.msra.mxu0 %v2304
    %2354 = vmatprep.subr.bf16.mxu0 %v2301
    %2355 = vmatpush1.bf16.msra.mxu0 %v2300
    %2356 = vmatprep.subr.bf16.mxu0 %v2297
    %2357 = vmatpush1.bf16.msra.mxu0 %v2296
    %2358 = vmatprep.subr.bf16.mxu0 %v2293
    %2359 = vmatpush1.bf16.msra.mxu0 %v2292
    %2360 = vmatprep.subr.bf16.mxu0 %v2289
    %2361 = vmatpush1.bf16.msra.mxu0 %v2288
    %2362 = vmatprep.subr.bf16.mxu0 %v2285
    %2363 = vmatpush1.bf16.msra.mxu0 %v2284
    %2364 = vmatprep.subr.bf16.mxu0 0
    %2365 = vmatpush2.bf16.msra.mxu0 0
    %2366 = vmatprep.subr.bf16.mxu0 0
    %2367 = vmatpush2.bf16.msra.mxu0 0
    %2368 = vmatprep.subr.bf16.mxu0 0
    %2369 = vmatpush2.bf16.msra.mxu0 0
    %2370 = vmatprep.subr.bf16.mxu0 0
    %2371 = vmatpush2.bf16.msra.mxu0 0
    %2372 = vmatprep.subr.bf16.mxu0 0
    %2373 = vmatpush2.bf16.msra.mxu0 0
    %2374 = vmatprep.subr.bf16.mxu0 0
    %2375 = vmatpush2.bf16.msra.mxu0 0
    %2376 = vmatprep.subr.bf16.mxu0 0
    %2377 = vmatpush2.bf16.msra.mxu0 0
    %2378 = vmatprep.subr.bf16.mxu0 0
    %2379 = vmatpush2.bf16.msra.mxu0 0
    %2380 = vmatprep.mubr.bf16.mxu0 0
    %2381 = vmatmul.mubr.bf16.gmra.mxu0 %v2155
    %v2382 = vpop.f32.mrf.mxu0
    %v2383 = vadd.f32 0.0, %v2382
    %v2384 = vpop.f32.mrf.mxu0
    %v2385 = vadd.f32 0.0, %v2384
    %v2386 = vpop.f32.mrf.mxu0
    %v2387 = vpop.f32.mrf.mxu0
    %2388 = vdwg.mxu0
    %2389 = vmatprep.subr.bf16.mxu0 %v2315
    %2390 = vmatpush1.bf16.msra.mxu0 %v2314
    %2391 = vmatprep.subr.bf16.mxu0 %v2311
    %2392 = vmatpush1.bf16.msra.mxu0 %v2310
    %2393 = vmatprep.subr.bf16.mxu0 %v2307
    %2394 = vmatpush1.bf16.msra.mxu0 %v2306
    %2395 = vmatprep.subr.bf16.mxu0 %v2303
    %2396 = vmatpush1.bf16.msra.mxu0 %v2302
    %2397 = vmatprep.subr.bf16.mxu0 %v2299
    %2398 = vmatpush1.bf16.msra.mxu0 %v2298
    %2399 = vmatprep.subr.bf16.mxu0 %v2295
    %2400 = vmatpush1.bf16.msra.mxu0 %v2294
    %2401 = vmatprep.subr.bf16.mxu0 %v2291
    %2402 = vmatpush1.bf16.msra.mxu0 %v2290
    %2403 = vmatprep.subr.bf16.mxu0 %v2287
    %2404 = vmatpush1.bf16.msra.mxu0 %v2286
    %2405 = vmatprep.subr.bf16.mxu0 0
    %2406 = vmatpush2.bf16.msra.mxu0 0
    %2407 = vmatprep.subr.bf16.mxu0 0
    %2408 = vmatpush2.bf16.msra.mxu0 0
    %2409 = vmatprep.subr.bf16.mxu0 0
    %2410 = vmatpush2.bf16.msra.mxu0 0
    %2411 = vmatprep.subr.bf16.mxu0 0
    %2412 = vmatpush2.bf16.msra.mxu0 0
    %2413 = vmatprep.subr.bf16.mxu0 0
    %2414 = vmatpush2.bf16.msra.mxu0 0
    %2415 = vmatprep.subr.bf16.mxu0 0
    %2416 = vmatpush2.bf16.msra.mxu0 0
    %2417 = vmatprep.subr.bf16.mxu0 0
    %2418 = vmatpush2.bf16.msra.mxu0 0
    %2419 = vmatprep.subr.bf16.mxu0 0
    %2420 = vmatpush2.bf16.msra.mxu0 0
    %2421 = vmatprep.mubr.bf16.mxu0 0
    %2422 = vmatmul.mubr.bf16.gmra.mxu0 %v2155
    %v2423 = vpop.f32.mrf.mxu0
    %v2424 = vadd.f32 0.0, %v2423
    %v2425 = vpop.f32.mrf.mxu0
    %v2426 = vadd.f32 0.0, %v2425
    %v2427 = vpop.f32.mrf.mxu0
    %v2428 = vpop.f32.mrf.mxu0
    %2429 = vdwg.mxu0
    %v2434 = vcombine.low %v2383, %v2385
    %v2435 = vcombine.low %v2424, %v2426
    %v2437 = vunpack.c.l.s4 1983009808
    %v2438 = vunpack.c.0.s8 %v2437
    %v2439 = vlaneseq
    %v2440 = vshrl.u32 %v2439, 7
    %v2441 = vsub.s32 %v2438, %v2440
    %v2442 = vrot.slane %v2434, %v2441
    %v2444 = vunpack.c.l.s4 1983009808
    %v2445 = vunpack.c.0.s8 %v2444
    %v2446 = vlaneseq
    %v2447 = vshrl.u32 %v2446, 7
    %v2448 = vsub.s32 %v2445, %v2447
    %v2449 = vrot.slane %v2435, %v2448
    %v2450 = vcombine.low %v2442, %v2449
    %v2452 = vadd.f32 %v2153, %v2450
    %v2453 = vxor.u32 %v2452, 2147483648
    %v2454 = vmul.f32 %v2453, 1.442695
    %v2455 = vpow.pop %v2454
    %v2456 = vadd.f32 %v2455, 1.0
    %v2457 = vrcp.pop %v2456
    %v2458 = vmul.f32 1.0, %v2457
    %v2460 = vrot.slane %v2452, 2
    %v2462 = vxor.u32 %v2460, 2147483648
    %v2463 = vmul.f32 %v2462, 1.442695
    %v2464 = vpow.pop %v2463
    %v2465 = vadd.f32 %v2464, 1.0
    %v2466 = vrcp.pop %v2465
    %v2467 = vmul.f32 1.0, %v2466
    %v2468 = vrot.slane %v2452, 4
    %v2470 = vtanh.pop %v2468
    %v2471 = vrot.slane %v2452, 6
    %v2473 = vxor.u32 %v2471, 2147483648
    %v2474 = vmul.f32 %v2473, 1.442695
    %v2475 = vpow.pop %v2474
    %v2476 = vadd.f32 %v2475, 1.0
    %v2477 = vrcp.pop %v2476
    %v2478 = vmul.f32 1.0, %v2477
    %v2479 = vld [vmem:[#allocation3] sm:$0x3]
    %v2480 = vmul.f32 %v2467, %v2479
    %v2481 = vmul.f32 %v2458, %v2470
    %v2482 = vadd.f32 %v2480, %v2481
    %v2483 = vtanh.pop %v2482
    %v2484 = vmul.f32 %v2478, %v2483
    %s2485 = scalar_lea.vmem %s1, 12
    %v2486 = vld [vmem:[%s2485] sm:$0x3]
    %2488 = vset.pattern.permute.xlu0 0
    %2489 = vperm.xlu0 %2488, %v2486
    %v2490 = vpop.permute.xlu0 %2489
    %v2492 = vmul.f32 %v2490, %v2482
    %v2493 = vsub.f32 1.0, %v2486
    %2495 = vset.pattern.permute.xlu0 0
    %2496 = vperm.xlu0 %2495, %v2493
    %v2497 = vpop.permute.xlu0 %2496
    %v2499 = vmul.f32 %v2497, %v2479
    %v2500 = vadd.f32 %v2492, %v2499
    %2501 = vst [vmem:[#allocation3] sm:$0x3] %v2500
    %v2502 = vmul.f32 %v2490, %v2484
    %v2503 = vld [vmem:[#allocation2] sm:$0x3]
    %v2504 = vmul.f32 %v2497, %v2503
    %v2505 = vadd.f32 %v2502, %v2504
    %2506 = vst [vmem:[#allocation2] sm:$0x3] %v2505
    %s2507 = scalar_lea.vmem %s0, 56
    %v2508 = vld [vmem:[%s2507] sm:$0xff]
    %v2509 = vld [vmem:[#allocation2] sm:$0x3]
    %v2510 = vpack.c.bf16 %v2509, %v2509
    %v2511 = vld [vmem:[%s2] sm:$0xff]
    %v2512 = vld [vmem:[%s2 + $0x8] sm:$0xff]
    %v2513 = vld [vmem:[%s2 + $0x10] sm:$0xff]
    %v2514 = vld [vmem:[%s2 + $0x18] sm:$0xff]
    %v2515 = vld [vmem:[%s2 + $0x20] sm:$0xff]
    %v2516 = vld [vmem:[%s2 + $0x28] sm:$0xff]
    %v2517 = vld [vmem:[%s2 + $0x30] sm:$0xff]
    %v2518 = vld [vmem:[%s2 + $0x38] sm:$0xff]
    %v2519 = vld [vmem:[%s2 + $0x40] sm:$0xff]
    %v2520 = vld [vmem:[%s2 + $0x48] sm:$0xff]
    %v2521 = vld [vmem:[%s2 + $0x50] sm:$0xff]
    %v2522 = vld [vmem:[%s2 + $0x58] sm:$0xff]
    %v2523 = vld [vmem:[%s2 + $0x60] sm:$0xff]
    %v2524 = vld [vmem:[%s2 + $0x68] sm:$0xff]
    %v2525 = vld [vmem:[%s2 + $0x70] sm:$0xff]
    %v2526 = vld [vmem:[%s2 + $0x78] sm:$0xff]
    %v2527 = vld [vmem:[%s2 + $0x80] sm:$0xff]
    %v2528 = vld [vmem:[%s2 + $0x88] sm:$0xff]
    %v2529 = vld [vmem:[%s2 + $0x90] sm:$0xff]
    %v2530 = vld [vmem:[%s2 + $0x98] sm:$0xff]
    %v2531 = vld [vmem:[%s2 + $0xa0] sm:$0xff]
    %v2532 = vld [vmem:[%s2 + $0xa8] sm:$0xff]
    %v2533 = vld [vmem:[%s2 + $0xb0] sm:$0xff]
    %v2534 = vld [vmem:[%s2 + $0xb8] sm:$0xff]
    %v2535 = vld [vmem:[%s2 + $0xc0] sm:$0xff]
    %v2536 = vld [vmem:[%s2 + $0xc8] sm:$0xff]
    %v2537 = vld [vmem:[%s2 + $0xd0] sm:$0xff]
    %v2538 = vld [vmem:[%s2 + $0xd8] sm:$0xff]
    %v2539 = vld [vmem:[%s2 + $0xe0] sm:$0xff]
    %v2540 = vld [vmem:[%s2 + $0xe8] sm:$0xff]
    %v2541 = vld [vmem:[%s2 + $0xf0] sm:$0xff]
    %v2542 = vld [vmem:[%s2 + $0xf8] sm:$0xff]
    %v2575 = vunpack.c.l.b16 %v2511
    %v2576 = vunpack.c.h.b16 %v2511
    %v2577 = vunpack.c.l.b16 %v2512
    %v2578 = vunpack.c.h.b16 %v2512
    %v2579 = vunpack.c.l.b16 %v2513
    %v2580 = vunpack.c.h.b16 %v2513
    %v2581 = vunpack.c.l.b16 %v2514
    %v2582 = vunpack.c.h.b16 %v2514
    %v2583 = vunpack.c.l.b16 %v2515
    %v2584 = vunpack.c.h.b16 %v2515
    %v2585 = vunpack.c.l.b16 %v2516
    %v2586 = vunpack.c.h.b16 %v2516
    %v2587 = vunpack.c.l.b16 %v2517
    %v2588 = vunpack.c.h.b16 %v2517
    %v2589 = vunpack.c.l.b16 %v2518
    %v2590 = vunpack.c.h.b16 %v2518
    %v2591 = vunpack.c.l.b16 %v2519
    %v2592 = vunpack.c.h.b16 %v2519
    %v2593 = vunpack.c.l.b16 %v2520
    %v2594 = vunpack.c.h.b16 %v2520
    %v2595 = vunpack.c.l.b16 %v2521
    %v2596 = vunpack.c.h.b16 %v2521
    %v2597 = vunpack.c.l.b16 %v2522
    %v2598 = vunpack.c.h.b16 %v2522
    %v2599 = vunpack.c.l.b16 %v2523
    %v2600 = vunpack.c.h.b16 %v2523
    %v2601 = vunpack.c.l.b16 %v2524
    %v2602 = vunpack.c.h.b16 %v2524
    %v2603 = vunpack.c.l.b16 %v2525
    %v2604 = vunpack.c.h.b16 %v2525
    %v2605 = vunpack.c.l.b16 %v2526
    %v2606 = vunpack.c.h.b16 %v2526
    %v2607 = vunpack.c.l.b16 %v2527
    %v2608 = vunpack.c.h.b16 %v2527
    %v2609 = vunpack.c.l.b16 %v2528
    %v2610 = vunpack.c.h.b16 %v2528
    %v2611 = vunpack.c.l.b16 %v2529
    %v2612 = vunpack.c.h.b16 %v2529
    %v2613 = vunpack.c.l.b16 %v2530
    %v2614 = vunpack.c.h.b16 %v2530
    %v2615 = vunpack.c.l.b16 %v2531
    %v2616 = vunpack.c.h.b16 %v2531
    %v2617 = vunpack.c.l.b16 %v2532
    %v2618 = vunpack.c.h.b16 %v2532
    %v2619 = vunpack.c.l.b16 %v2533
    %v2620 = vunpack.c.h.b16 %v2533
    %v2621 = vunpack.c.l.b16 %v2534
    %v2622 = vunpack.c.h.b16 %v2534
    %v2623 = vunpack.c.l.b16 %v2535
    %v2624 = vunpack.c.h.b16 %v2535
    %v2625 = vunpack.c.l.b16 %v2536
    %v2626 = vunpack.c.h.b16 %v2536
    %v2627 = vunpack.c.l.b16 %v2537
    %v2628 = vunpack.c.h.b16 %v2537
    %v2629 = vunpack.c.l.b16 %v2538
    %v2630 = vunpack.c.h.b16 %v2538
    %v2631 = vunpack.c.l.b16 %v2539
    %v2632 = vunpack.c.h.b16 %v2539
    %v2633 = vunpack.c.l.b16 %v2540
    %v2634 = vunpack.c.h.b16 %v2540
    %v2635 = vunpack.c.l.b16 %v2541
    %v2636 = vunpack.c.h.b16 %v2541
    %v2637 = vunpack.c.l.b16 %v2542
    %v2638 = vunpack.c.h.b16 %v2542
    %v2639 = vpack.c.b16 %v2579, %v2575
    %v2640 = vpack.c.b16 %v2580, %v2576
    %v2641 = vpack.c.b16 %v2581, %v2577
    %v2642 = vpack.c.b16 %v2582, %v2578
    %v2643 = vpack.c.b16 %v2587, %v2583
    %v2644 = vpack.c.b16 %v2588, %v2584
    %v2645 = vpack.c.b16 %v2589, %v2585
    %v2646 = vpack.c.b16 %v2590, %v2586
    %v2647 = vpack.c.b16 %v2595, %v2591
    %v2648 = vpack.c.b16 %v2596, %v2592
    %v2649 = vpack.c.b16 %v2597, %v2593
    %v2650 = vpack.c.b16 %v2598, %v2594
    %v2651 = vpack.c.b16 %v2603, %v2599
    %v2652 = vpack.c.b16 %v2604, %v2600
    %v2653 = vpack.c.b16 %v2605, %v2601
    %v2654 = vpack.c.b16 %v2606, %v2602
    %v2655 = vpack.c.b16 %v2611, %v2607
    %v2656 = vpack.c.b16 %v2612, %v2608
    %v2657 = vpack.c.b16 %v2613, %v2609
    %v2658 = vpack.c.b16 %v2614, %v2610
    %v2659 = vpack.c.b16 %v2619, %v2615
    %v2660 = vpack.c.b16 %v2620, %v2616
    %v2661 = vpack.c.b16 %v2621, %v2617
    %v2662 = vpack.c.b16 %v2622, %v2618
    %v2663 = vpack.c.b16 %v2627, %v2623
    %v2664 = vpack.c.b16 %v2628, %v2624
    %v2665 = vpack.c.b16 %v2629, %v2625
    %v2666 = vpack.c.b16 %v2630, %v2626
    %v2667 = vpack.c.b16 %v2635, %v2631
    %v2668 = vpack.c.b16 %v2636, %v2632
    %v2669 = vpack.c.b16 %v2637, %v2633
    %v2670 = vpack.c.b16 %v2638, %v2634
    %2703 = vmatprep.subr.bf16.mxu0 %v2668
    %2704 = vmatpush1.bf16.msra.mxu0 %v2667
    %2705 = vmatprep.subr.bf16.mxu0 %v2664
    %2706 = vmatpush1.bf16.msra.mxu0 %v2663
    %2707 = vmatprep.subr.bf16.mxu0 %v2660
    %2708 = vmatpush1.bf16.msra.mxu0 %v2659
    %2709 = vmatprep.subr.bf16.mxu0 %v2656
    %2710 = vmatpush1.bf16.msra.mxu0 %v2655
    %2711 = vmatprep.subr.bf16.mxu0 %v2652
    %2712 = vmatpush1.bf16.msra.mxu0 %v2651
    %2713 = vmatprep.subr.bf16.mxu0 %v2648
    %2714 = vmatpush1.bf16.msra.mxu0 %v2647
    %2715 = vmatprep.subr.bf16.mxu0 %v2644
    %2716 = vmatpush1.bf16.msra.mxu0 %v2643
    %2717 = vmatprep.subr.bf16.mxu0 %v2640
    %2718 = vmatpush1.bf16.msra.mxu0 %v2639
    %2719 = vmatprep.subr.bf16.mxu0 0
    %2720 = vmatpush2.bf16.msra.mxu0 0
    %2721 = vmatprep.subr.bf16.mxu0 0
    %2722 = vmatpush2.bf16.msra.mxu0 0
    %2723 = vmatprep.subr.bf16.mxu0 0
    %2724 = vmatpush2.bf16.msra.mxu0 0
    %2725 = vmatprep.subr.bf16.mxu0 0
    %2726 = vmatpush2.bf16.msra.mxu0 0
    %2727 = vmatprep.subr.bf16.mxu0 0
    %2728 = vmatpush2.bf16.msra.mxu0 0
    %2729 = vmatprep.subr.bf16.mxu0 0
    %2730 = vmatpush2.bf16.msra.mxu0 0
    %2731 = vmatprep.subr.bf16.mxu0 0
    %2732 = vmatpush2.bf16.msra.mxu0 0
    %2733 = vmatprep.subr.bf16.mxu0 0
    %2734 = vmatpush2.bf16.msra.mxu0 0
    %2735 = vmatprep.mubr.bf16.mxu0 0
    %2736 = vmatmul.mubr.bf16.gmra.mxu0 %v2510
    %v2737 = vpop.f32.mrf.mxu0
    %v2738 = vadd.f32 0.0, %v2737
    %v2739 = vpop.f32.mrf.mxu0
    %v2740 = vadd.f32 0.0, %v2739
    %v2741 = vpop.f32.mrf.mxu0
    %v2742 = vpop.f32.mrf.mxu0
    %2743 = vdwg.mxu0
    %2744 = vmatprep.subr.bf16.mxu0 %v2670
    %2745 = vmatpush1.bf16.msra.mxu0 %v2669
    %2746 = vmatprep.subr.bf16.mxu0 %v2666
    %2747 = vmatpush1.bf16.msra.mxu0 %v2665
    %2748 = vmatprep.subr.bf16.mxu0 %v2662
    %2749 = vmatpush1.bf16.msra.mxu0 %v2661
    %2750 = vmatprep.subr.bf16.mxu0 %v2658
    %2751 = vmatpush1.bf16.msra.mxu0 %v2657
    %2752 = vmatprep.subr.bf16.mxu0 %v2654
    %2753 = vmatpush1.bf16.msra.mxu0 %v2653
    %2754 = vmatprep.subr.bf16.mxu0 %v2650
    %2755 = vmatpush1.bf16.msra.mxu0 %v2649
    %2756 = vmatprep.subr.bf16.mxu0 %v2646
    %2757 = vmatpush1.bf16.msra.mxu0 %v2645
    %2758 = vmatprep.subr.bf16.mxu0 %v2642
    %2759 = vmatpush1.bf16.msra.mxu0 %v2641
    %2760 = vmatprep.subr.bf16.mxu0 0
    %2761 = vmatpush2.bf16.msra.mxu0 0
    %2762 = vmatprep.subr.bf16.mxu0 0
    %2763 = vmatpush2.bf16.msra.mxu0 0
    %2764 = vmatprep.subr.bf16.mxu0 0
    %2765 = vmatpush2.bf16.msra.mxu0 0
    %2766 = vmatprep.subr.bf16.mxu0 0
    %2767 = vmatpush2.bf16.msra.mxu0 0
    %2768 = vmatprep.subr.bf16.mxu0 0
    %2769 = vmatpush2.bf16.msra.mxu0 0
    %2770 = vmatprep.subr.bf16.mxu0 0
    %2771 = vmatpush2.bf16.msra.mxu0 0
    %2772 = vmatprep.subr.bf16.mxu0 0
    %2773 = vmatpush2.bf16.msra.mxu0 0
    %2774 = vmatprep.subr.bf16.mxu0 0
    %2775 = vmatpush2.bf16.msra.mxu0 0
    %2776 = vmatprep.mubr.bf16.mxu0 0
    %2777 = vmatmul.mubr.bf16.gmra.mxu0 %v2510
    %v2778 = vpop.f32.mrf.mxu0
    %v2779 = vadd.f32 0.0, %v2778
    %v2780 = vpop.f32.mrf.mxu0
    %v2781 = vadd.f32 0.0, %v2780
    %v2782 = vpop.f32.mrf.mxu0
    %v2783 = vpop.f32.mrf.mxu0
    %2784 = vdwg.mxu0
    %v2789 = vcombine.low %v2738, %v2740
    %v2790 = vcombine.low %v2779, %v2781
    %v2792 = vunpack.c.l.s4 1983009808
    %v2793 = vunpack.c.0.s8 %v2792
    %v2794 = vlaneseq
    %v2795 = vshrl.u32 %v2794, 7
    %v2796 = vsub.s32 %v2793, %v2795
    %v2797 = vrot.slane %v2789, %v2796
    %v2799 = vunpack.c.l.s4 1983009808
    %v2800 = vunpack.c.0.s8 %v2799
    %v2801 = vlaneseq
    %v2802 = vshrl.u32 %v2801, 7
    %v2803 = vsub.s32 %v2800, %v2802
    %v2804 = vrot.slane %v2790, %v2803
    %v2805 = vcombine.low %v2797, %v2804
    %v2807 = vadd.f32 %v2508, %v2805
    %v2808 = vxor.u32 %v2807, 2147483648
    %v2809 = vmul.f32 %v2808, 1.442695
    %v2810 = vpow.pop %v2809
    %v2811 = vadd.f32 %v2810, 1.0
    %v2812 = vrcp.pop %v2811
    %v2813 = vmul.f32 1.0, %v2812
    %v2815 = vrot.slane %v2807, 2
    %v2817 = vxor.u32 %v2815, 2147483648
    %v2818 = vmul.f32 %v2817, 1.442695
    %v2819 = vpow.pop %v2818
    %v2820 = vadd.f32 %v2819, 1.0
    %v2821 = vrcp.pop %v2820
    %v2822 = vmul.f32 1.0, %v2821
    %v2823 = vrot.slane %v2807, 4
    %v2825 = vtanh.pop %v2823
    %v2826 = vrot.slane %v2807, 6
    %v2828 = vxor.u32 %v2826, 2147483648
    %v2829 = vmul.f32 %v2828, 1.442695
    %v2830 = vpow.pop %v2829
    %v2831 = vadd.f32 %v2830, 1.0
    %v2832 = vrcp.pop %v2831
    %v2833 = vmul.f32 1.0, %v2832
    %v2834 = vld [vmem:[#allocation3] sm:$0x3]
    %v2835 = vmul.f32 %v2822, %v2834
    %v2836 = vmul.f32 %v2813, %v2825
    %v2837 = vadd.f32 %v2835, %v2836
    %v2838 = vtanh.pop %v2837
    %v2839 = vmul.f32 %v2833, %v2838
    %s2840 = scalar_lea.vmem %s1, 14
    %v2841 = vld [vmem:[%s2840] sm:$0x3]
    %2843 = vset.pattern.permute.xlu0 0
    %2844 = vperm.xlu0 %2843, %v2841
    %v2845 = vpop.permute.xlu0 %2844
    %v2847 = vmul.f32 %v2845, %v2837
    %v2848 = vsub.f32 1.0, %v2841
    %2850 = vset.pattern.permute.xlu0 0
    %2851 = vperm.xlu0 %2850, %v2848
    %v2852 = vpop.permute.xlu0 %2851
    %v2854 = vmul.f32 %v2852, %v2834
    %v2855 = vadd.f32 %v2847, %v2854
    %2856 = vst [vmem:[#allocation3] sm:$0x3] %v2855
    %v2857 = vmul.f32 %v2845, %v2839
    %v2858 = vld [vmem:[#allocation2] sm:$0x3]
    %v2859 = vmul.f32 %v2852, %v2858
    %v2860 = vadd.f32 %v2857, %v2859
    %2861 = vst [vmem:[#allocation2] sm:$0x3] %v2860
    %v2862 = vld [vmem:[#allocation2] sm:$0x3]
    %v2863 = vpack.c.bf16 %v2862, %v2862
    %v2864 = vld [vmem:[%s3] sm:$0xf]
    %v2865 = vld [vmem:[%s3 + $0x4] sm:$0xf]
    %v2866 = vld [vmem:[%s3 + $0x8] sm:$0xf]
    %v2867 = vld [vmem:[%s3 + $0xc] sm:$0xf]
    %v2868 = vld [vmem:[%s3 + $0x10] sm:$0xf]
    %v2869 = vld [vmem:[%s3 + $0x14] sm:$0xf]
    %v2870 = vld [vmem:[%s3 + $0x18] sm:$0xf]
    %v2871 = vld [vmem:[%s3 + $0x1c] sm:$0xf]
    %v2872 = vld [vmem:[%s3 + $0x20] sm:$0xf]
    %v2873 = vld [vmem:[%s3 + $0x24] sm:$0xf]
    %v2874 = vld [vmem:[%s3 + $0x28] sm:$0xf]
    %v2875 = vld [vmem:[%s3 + $0x2c] sm:$0xf]
    %v2876 = vld [vmem:[%s3 + $0x30] sm:$0xf]
    %v2877 = vld [vmem:[%s3 + $0x34] sm:$0xf]
    %v2878 = vld [vmem:[%s3 + $0x38] sm:$0xf]
    %v2879 = vld [vmem:[%s3 + $0x3c] sm:$0xf]
    %v2880 = vld [vmem:[%s4] sm:$0x1]
    %v2882 = vlaneseq
    %v2883 = vshrl.u32 %v2882, 7
    %v2884 = vsub.s32 0, %v2883
    %v2885 = vrot.slane %v2880, %v2884
    %v2903 = vunpack.c.l.b16 %v2864
    %v2904 = vunpack.c.l.b16 %v2865
    %v2905 = vunpack.c.l.b16 %v2866
    %v2906 = vunpack.c.l.b16 %v2867
    %v2907 = vunpack.c.l.b16 %v2868
    %v2908 = vunpack.c.l.b16 %v2869
    %v2909 = vunpack.c.l.b16 %v2870
    %v2910 = vunpack.c.l.b16 %v2871
    %v2911 = vunpack.c.l.b16 %v2872
    %v2912 = vunpack.c.l.b16 %v2873
    %v2913 = vunpack.c.l.b16 %v2874
    %v2914 = vunpack.c.l.b16 %v2875
    %v2915 = vunpack.c.l.b16 %v2876
    %v2916 = vunpack.c.l.b16 %v2877
    %v2917 = vunpack.c.l.b16 %v2878
    %v2918 = vunpack.c.l.b16 %v2879
    %v2919 = vpack.c.b16 %v2904, %v2903
    %v2920 = vpack.c.b16 %v2906, %v2905
    %v2921 = vpack.c.b16 %v2908, %v2907
    %v2922 = vpack.c.b16 %v2910, %v2909
    %v2923 = vpack.c.b16 %v2912, %v2911
    %v2924 = vpack.c.b16 %v2914, %v2913
    %v2925 = vpack.c.b16 %v2916, %v2915
    %v2926 = vpack.c.b16 %v2918, %v2917
    %2935 = vmatprep.subr.bf16.mxu0 0
    %2936 = vmatpush1.bf16.msra.mxu0 %v2926
    %2937 = vmatprep.subr.bf16.mxu0 0
    %2938 = vmatpush1.bf16.msra.mxu0 %v2925
    %2939 = vmatprep.subr.bf16.mxu0 0
    %2940 = vmatpush1.bf16.msra.mxu0 %v2924
    %2941 = vmatprep.subr.bf16.mxu0 0
    %2942 = vmatpush1.bf16.msra.mxu0 %v2923
    %2943 = vmatprep.subr.bf16.mxu0 0
    %2944 = vmatpush1.bf16.msra.mxu0 %v2922
    %2945 = vmatprep.subr.bf16.mxu0 0
    %2946 = vmatpush1.bf16.msra.mxu0 %v2921
    %2947 = vmatprep.subr.bf16.mxu0 0
    %2948 = vmatpush1.bf16.msra.mxu0 %v2920
    %2949 = vmatprep.subr.bf16.mxu0 0
    %2950 = vmatpush1.bf16.msra.mxu0 %v2919
    %2951 = vmatprep.subr.bf16.mxu0 0
    %2952 = vmatpush2.bf16.msra.mxu0 0
    %2953 = vmatprep.subr.bf16.mxu0 0
    %2954 = vmatpush2.bf16.msra.mxu0 0
    %2955 = vmatprep.subr.bf16.mxu0 0
    %2956 = vmatpush2.bf16.msra.mxu0 0
    %2957 = vmatprep.subr.bf16.mxu0 0
    %2958 = vmatpush2.bf16.msra.mxu0 0
    %2959 = vmatprep.subr.bf16.mxu0 0
    %2960 = vmatpush2.bf16.msra.mxu0 0
    %2961 = vmatprep.subr.bf16.mxu0 0
    %2962 = vmatpush2.bf16.msra.mxu0 0
    %2963 = vmatprep.subr.bf16.mxu0 0
    %2964 = vmatpush2.bf16.msra.mxu0 0
    %2965 = vmatprep.subr.bf16.mxu0 0
    %2966 = vmatpush2.bf16.msra.mxu0 0
    %2967 = vmatprep.mubr.bf16.mxu0 0
    %2968 = vmatmul.mubr.bf16.gmra.mxu0 %v2863
    %v2969 = vpop.f32.mrf.mxu0
    %v2970 = vadd.f32 %v2885, %v2969
    %v2971 = vpop.f32.mrf.mxu0
    %v2972 = vpop.f32.mrf.mxu0
    %v2973 = vpop.f32.mrf.mxu0
    %2974 = vdwg.mxu0
    %2975 = vst [vmem:[#allocation4] sm:$0x3] %v2970
    // Predicated region
    $region22: #{net_forward.1} parent=1 // pred_check
      _
    $region23: #{net_forward.1} parent=1 // pred_check_branch
      %2977 = sbr.rel (0) target = $region25
    $region24: #{net_forward.1} parent=1 // pred_region
      %s2979 = ssub.s32 32, 32
      %2980 = vsyncadd [#allocation5], %s2979
      %s2982 = sshll.u32 [#allocation4], 4
      %s2983 = int_to_ptr.vmem [resolvable:$true] %s2982
      %2985 = dma.vmem_to_hbm [thread:$0]  %s2983, 32, %s5, [#allocation5]
    $region25: #{net_forward.1} parent=1 // pred_fallthru
      _
    // Predicated region
    $region26: #{net_forward.1} parent=1 // pred_check
      _
    $region27: #{net_forward.1} parent=1 // pred_check_branch
      %2987 = sbr.rel (0) target = $region29
    $region28: #{net_forward.1} parent=1 // pred_region
      %2988 = dma.done [#allocation5], 32
    $region29: #{net_forward.1} parent=1 // pred_fallthru
      _
    %2989 = vsyncpa [#allocation5], 1

</llo_original>
